<compile_context>
chip_gen: v7x
topology: tpu7x:2x2x1
jax: 0.10.0
libtpu: 0.0.40
codegen_flags: <defaults>
</compile_context>

<pallas_src>
import functools

import jax
import jax.numpy as jnp
from jax.experimental import pallas as pl
from jax.experimental.pallas import tpu as pltpu


# ---------------------------------------------------------------------------
# Kernel A: fused k/v 1x1 projections (bias-free), transposed block-diagonal:
#   kv = [[Wk, 0], [0, Wv]] @ [Xk ; Xv]  ->  [2*Cq, HW]   (bf16 output)
# One MXU push/drain; bf16 writeback halves the stream feeding the gather.
# ---------------------------------------------------------------------------
def _kv_proj_kernel(kvx_ref, wkv_ref, kv_ref):
    kv_ref[0] = jnp.dot(wkv_ref[...], kvx_ref[0],
                        preferred_element_type=jnp.float32).astype(kv_ref.dtype)


def kv_projection(kvx, wkv):
    # kvx: [N, 2C, HW] bf16,  wkv: [2Cq, 2C] bf16  ->  [N, 2Cq, HW] bf16
    N, C2, HW = kvx.shape
    Cq2 = wkv.shape[0]
    return pl.pallas_call(
        _kv_proj_kernel,
        out_shape=jax.ShapeDtypeStruct((N, Cq2, HW), jnp.bfloat16),
        grid_spec=pltpu.PrefetchScalarGridSpec(
            num_scalar_prefetch=0,
            grid=(N,),
            in_specs=[pl.BlockSpec((1, C2, HW), lambda n: (n, 0, 0)),
                      pl.BlockSpec((Cq2, C2), lambda n: (0, 0))],
            out_specs=pl.BlockSpec((1, Cq2, HW), lambda n: (n, 0, 0)),
        ),
        compiler_params=pltpu.CompilerParams(dimension_semantics=("parallel",)),
    )(kvx, wkv)


# ---------------------------------------------------------------------------
# Kernel B+C (fused): q projection + deformation-aware softmax attention +
#   fc (1x1, no bias) + MLP (1x1 -> LeakyReLU(0.2) -> 1x1) + residual +
#   GroupNorm(num_groups=1), one sample per grid step.
# Channel order of q / k / v / fc-input is depth-major: c' = d*nh + h, so the
# per-depth slices below are aligned 8-sublane blocks and all stores are
# full-tile, lane-dense.
# ---------------------------------------------------------------------------
def _attn_mlp_gn_kernel(qx_ref, kvs_ref, wq_ref, wfc_ref, w1_ref, b1_ref,
                        w2_ref, b2_ref, g_ref, be_ref, o_ref,
                        *, nh, dk, dv, cq, eps, slope):
    # q projection; 1/sqrt(dk) already folded into wq at trace time.
    q = jnp.dot(wq_ref[...], qx_ref[0],
                preferred_element_type=jnp.float32)                 # (Cq, HW)

    # Scores for all heads at once: s[p, h, hw] = sum_d q_d[h,hw]*k_d[p,h,hw]
    s = None
    for d in range(dk):                      # dk small; aligned static slices
        lo, hi = d * nh, (d + 1) * nh
        kd = kvs_ref[0, :, lo:hi, :].astype(jnp.float32)            # (P, nh, HW)
        contrib = q[lo:hi, :][None, :, :] * kd
        s = contrib if s is None else s + contrib                   # (P, nh, HW)

    # Softmax over the P candidate offsets (f32 math; v5e-friendly).
    m = jnp.max(s, axis=0, keepdims=True)                           # (1, nh, HW)
    e = jnp.exp(s - m)                                              # (P, nh, HW)
    inv = pl.reciprocal(jnp.sum(e, axis=0), approx=True)            # (nh, HW)

    # Un-normalized weighted sum of sampled v, normalized once per dv block.
    blocks = []
    for d in range(dv):
        lo, hi = cq + d * nh, cq + (d + 1) * nh
        vd = kvs_ref[0, :, lo:hi, :].astype(jnp.float32)            # (P, nh, HW)
        blocks.append(jnp.sum(e * vd, axis=0) * inv)                # (nh, HW)
    attn = jnp.concatenate(blocks, axis=0).astype(jnp.bfloat16)     # (Cq, HW)

    # fc + MLP + residual (bf16 matmul operands, f32 accumulation).
    y = jnp.dot(wfc_ref[...], attn, preferred_element_type=jnp.float32)   # (C, HW)
    h1 = jnp.dot(w1_ref[...], y.astype(jnp.bfloat16),
                 preferred_element_type=jnp.float32) + b1_ref[...]        # (Hid, HW)
    h1 = jnp.where(h1 > 0, h1, slope * h1)                                # LeakyReLU
    z = y + jnp.dot(w2_ref[...], h1.astype(jnp.bfloat16),
                    preferred_element_type=jnp.float32) + b2_ref[...]     # (C, HW)

    # GroupNorm(1, C): one-pass stats (sum / sum-of-squares).
    mu = jnp.mean(z)
    var = jnp.mean(z * z) - mu * mu
    inv_std = jax.lax.rsqrt(var + eps)
    o_ref[0] = ((z - mu) * inv_std * g_ref[...] + be_ref[...]).astype(o_ref.dtype)


def fused_attention_mlp_groupnorm(qx, kv_s, wq, wfc, params,
                                  *, num_head, dk, dv, eps=1e-5):
    # qx: [N, C, HW] bf16;  kv_s: [N, P, 2*Cq, HW] bf16 (depth-major channels)
    N, C, HW = qx.shape
    P = kv_s.shape[1]
    Cq = num_head * dk
    Hid = params["w1"].shape[0]
    w1 = params["w1"].astype(jnp.bfloat16)
    w2 = params["w2"].astype(jnp.bfloat16)
    b1 = params["b1"].reshape(Hid, 1).astype(jnp.float32)
    b2 = params["b2"].reshape(C, 1).astype(jnp.float32)
    gamma = params["gamma"].reshape(C, 1).astype(jnp.float32)
    beta = params["beta"].reshape(C, 1).astype(jnp.float32)
    return pl.pallas_call(
        functools.partial(_attn_mlp_gn_kernel, nh=num_head, dk=dk, dv=dv,
                          cq=Cq, eps=eps, slope=0.2),
        out_shape=jax.ShapeDtypeStruct((N, C, HW), jnp.float32),
        grid_spec=pltpu.PrefetchScalarGridSpec(
            num_scalar_prefetch=0,
            grid=(N,),
            in_specs=[
                pl.BlockSpec((1, C, HW), lambda n: (n, 0, 0)),
                pl.BlockSpec((1, P, 2 * Cq, HW), lambda n: (n, 0, 0, 0)),
                pl.BlockSpec((Cq, C), lambda n: (0, 0)),
                pl.BlockSpec((C, Cq), lambda n: (0, 0)),
                pl.BlockSpec((Hid, C), lambda n: (0, 0)),
                pl.BlockSpec((Hid, 1), lambda n: (0, 0)),
                pl.BlockSpec((C, Hid), lambda n: (0, 0)),
                pl.BlockSpec((C, 1), lambda n: (0, 0)),
                pl.BlockSpec((C, 1), lambda n: (0, 0)),
                pl.BlockSpec((C, 1), lambda n: (0, 0)),
            ],
            out_specs=pl.BlockSpec((1, C, HW), lambda n: (n, 0, 0)),
        ),
        compiler_params=pltpu.CompilerParams(
            dimension_semantics=("parallel",),
            vmem_limit_bytes=32 * 1024 * 1024),
    )(qx, kv_s, wq, wfc, w1, b1, w2, b2, gamma, beta)


# ---------------------------------------------------------------------------
# Plain-JAX glue: deformation grid, bilinear grid_sample (bf16), field resize.
# ---------------------------------------------------------------------------
def resize_deform_field(df, out_hw):
    # F.interpolate(bilinear, align_corners=False) with value rescaling.
    N, _, H, W = df.shape
    oh, ow = out_hw
    scaled = df * jnp.array([ow / W, oh / H], jnp.float32).reshape(1, 2, 1, 1)
    return jax.image.resize(scaled, (N, 2, oh, ow), method="bilinear")


def deformation_coords(deform_field, p_size):
    # Mirrors `deformation_grid`: normalized ([-1, 1]) sample coordinates.
    # deform_field: [N, 2, H, W] (channel 0 = x-offset, channel 1 = y-offset)
    N, _, H, W = deform_field.shape
    pad = (p_size - 1) // 2
    gy = jnp.arange(H, dtype=jnp.float32)[:, None]            # (H, 1)
    gx = jnp.arange(W, dtype=jnp.float32)[None, :]            # (1, W)
    shift = jnp.arange(p_size, dtype=jnp.float32) - pad
    sy = jnp.repeat(shift, p_size)                            # row-major over p**2
    sx = jnp.tile(shift, p_size)
    vx = gx[None, None] + sx[None, :, None, None] + deform_field[:, None, 0]
    vy = gy[None, None] + sy[None, :, None, None] + deform_field[:, None, 1]
    gxn = 2.0 * vx / max(W - 1, 1) - 1.0
    gyn = 2.0 * vy / max(H - 1, 1) - 1.0
    return gxn, gyn                                           # each [N, P, H, W]


def bilinear_sample(feat, gxn, gyn, H, W):
    # F.grid_sample(bilinear, padding_mode='zeros', align_corners=True).
    # feat: [N, C, HW] bf16;  gxn/gyn: [N, P, H, W]  ->  [N, P, C, HW] bf16
    # TODO(synk): data-dependent per-lane gather kept in plain JAX.
    N, C, HW = feat.shape
    P = gxn.shape[1]
    x = ((gxn + 1.0) * 0.5 * (W - 1)).reshape(N, P, HW)
    y = ((gyn + 1.0) * 0.5 * (H - 1)).reshape(N, P, HW)
    x0 = jnp.floor(x); y0 = jnp.floor(y)
    x1 = x0 + 1.0;     y1 = y0 + 1.0
    wx1 = x - x0; wx0 = 1.0 - wx1
    wy1 = y - y0; wy0 = 1.0 - wy1
    featf = feat.reshape(N, 1, C, HW)

    def corner(ix, iy, wght):
        valid = (ix >= 0) & (ix <= W - 1) & (iy >= 0) & (iy <= H - 1)
        ixc = jnp.clip(ix, 0, W - 1).astype(jnp.int32)
        iyc = jnp.clip(iy, 0, H - 1).astype(jnp.int32)
        flat = (iyc * W + ixc).reshape(N, P, 1, HW)
        g = jnp.take_along_axis(featf, flat, axis=3).astype(jnp.float32)
        w = (wght * valid.astype(jnp.float32)).reshape(N, P, 1, HW)
        return g * w

    out = (corner(x0, y0, wy0 * wx0) + corner(x1, y0, wy0 * wx1) +
           corner(x0, y1, wy1 * wx0) + corner(x1, y1, wy1 * wx1))
    return out.astype(jnp.bfloat16)


# ---------------------------------------------------------------------------
# Parameters (deterministic synthetic init; 1x1 conv weights stored [Cout,Cin]).
# ---------------------------------------------------------------------------
def init_params(key, feat_dim=32, num_head=8, mlp_ratio=2):
    dk = feat_dim // num_head
    dv = dk
    hid = int(feat_dim * mlp_ratio)
    ks = jax.random.split(key, 8)
    s = 0.1
    return dict(
        wq=jax.random.normal(ks[0], (num_head * dk, feat_dim), jnp.float32) * s,
        wk=jax.random.normal(ks[1], (num_head * dk, feat_dim), jnp.float32) * s,
        wv=jax.random.normal(ks[2], (num_head * dv, feat_dim), jnp.float32) * s,
        wfc=jax.random.normal(ks[3], (feat_dim, num_head * dv), jnp.float32) * s,
        w1=jax.random.normal(ks[4], (hid, feat_dim), jnp.float32) * s,
        b1=jax.random.normal(ks[5], (hid,), jnp.float32) * s,
        w2=jax.random.normal(ks[6], (feat_dim, hid), jnp.float32) * s,
        b2=jax.random.normal(ks[7], (feat_dim,), jnp.float32) * s,
        gamma=jnp.ones((feat_dim,), jnp.float32),   # GroupNorm affine (default)
        beta=jnp.zeros((feat_dim,), jnp.float32),
    )


# ---------------------------------------------------------------------------
# Full forward pass (Transformer.forward)
# ---------------------------------------------------------------------------
def transformer_forward(params, query, key, value, deform_field,
                        num_head=8, p_size=5):
    N, C, H, W = query.shape
    dk = C // num_head
    dv = dk
    HW = H * W
    Cq = num_head * dk

    if deform_field.shape[-2:] != (H, W):
        deform_field = resize_deform_field(deform_field, (H, W))

    # Depth-major channel permutation: c' = d*num_head + h.  Applied to the
    # projection-weight rows and the fc-weight columns at trace time (free),
    # so in-kernel per-depth slices are aligned 8-sublane blocks.
    perm = jnp.arange(Cq).reshape(num_head, dk).T.reshape(-1)
    scale = 1.0 / (dk ** 0.5)                       # folded into wq
    wq = (params["wq"] * scale)[perm, :].astype(jnp.bfloat16)
    wk = params["wk"][perm, :]
    wv = params["wv"][perm, :]
    wkv = jnp.zeros((2 * Cq, 2 * C), jnp.float32)
    wkv = wkv.at[:Cq, :C].set(wk).at[Cq:, C:].set(wv)
    wkv = wkv.astype(jnp.bfloat16)
    wfc = params["wfc"][:, perm].astype(jnp.bfloat16)

    # NCHW -> [N, C, HW] is a free reshape (no transpose), bf16 operands.
    qx = query.reshape(N, C, HW).astype(jnp.bfloat16)
    kvx = jnp.concatenate([key.reshape(N, C, HW), value.reshape(N, C, HW)],
                          axis=1).astype(jnp.bfloat16)

    # Kernel A: fused k/v 1x1 projections -> [N, 2*Cq, HW] bf16
    kv = kv_projection(kvx, wkv)

    # Deformation-aware sampling of the concatenated k/v slab (one gather pass,
    # bf16 end-to-end on the heavy stream).
    gxn, gyn = deformation_coords(deform_field.astype(jnp.float32), p_size)
    kv_s = bilinear_sample(kv, gxn, gyn, H, W)      # [N, P, 2*Cq, HW] bf16

    # Kernel B+C: q proj + attention + fc + MLP + residual + GroupNorm(1, C)
    out = fused_attention_mlp_groupnorm(qx, kv_s, wq, wfc, params,
                                        num_head=num_head, dk=dk, dv=dv)
    return out.reshape(N, C, H, W)                  # free reshape back to NCHW


# ---------------------------------------------------------------------------
if __name__ == "__main__":
    N, C, H, W = 2, 32, 16, 16
    num_head, p_size = 8, 5

    root = jax.random.PRNGKey(0)
    kq, kk, kvk, kd, kp = jax.random.split(root, 5)
    query = jax.random.normal(kq, (N, C, H, W), jnp.float32)
    key_t = jax.random.normal(kk, (N, C, H, W), jnp.float32)
    value = jax.random.normal(kvk, (N, C, H, W), jnp.float32)
    deform_field = jax.random.normal(kd, (N, 2, H, W), jnp.float32) * 2.0

    params = init_params(kp, feat_dim=C, num_head=num_head, mlp_ratio=2)

    fwd = jax.jit(transformer_forward, static_argnames=("num_head", "p_size"))
    out = fwd(params, query, key_t, value, deform_field,
              num_head=num_head, p_size=p_size)
    out = jax.block_until_ready(out)

    assert out.shape == (N, C, H, W), out.shape
    assert bool(jnp.all(jnp.isfinite(out)))
    print("KERNEL_OK")
</pallas_src>

<mosaic_0001>
module attributes {stable_mosaic.version = 11 : i64} {
  func.func @_kv_proj_kernel(%arg0: i32, %arg1: memref<1x64x256xbf16, #tpu.memory_space<vmem>>, %arg2: memref<64x64xbf16, #tpu.memory_space<vmem>>, %arg3: memref<1x64x256xbf16, #tpu.memory_space<vmem>>) attributes {dimension_semantics = [#tpu.dimension_semantics<parallel>], iteration_bounds = array<i64: 2>, scalar_prefetch = 0 : i64, scratch_operands = 0 : i64, tpu.core_type = #tpu.core_type<tc>, window_params = [{transform_indices = @transform_0, window_bounds = array<i64: 1, 64, 256>}, {pipeline_mode = #tpu.pipeline_mode<synchronous>, transform_indices = @transform_1, window_bounds = array<i64: 64, 64>}, {transform_indices = @transform_2, window_bounds = array<i64: 1, 64, 256>}]} {
    %c0 = arith.constant 0 : index
    %c0_0 = arith.constant 0 : index
    %0 = vector.load %arg2[%c0, %c0_0] : memref<64x64xbf16, #tpu.memory_space<vmem>>, vector<64x64xbf16>
    %c0_1 = arith.constant 0 : index
    %c0_2 = arith.constant 0 : index
    %c0_3 = arith.constant 0 : index
    %1 = vector.load %arg1[%c0_1, %c0_2, %c0_3] : memref<1x64x256xbf16, #tpu.memory_space<vmem>>, vector<1x64x256xbf16>
    %2 = vector.shape_cast %1 : vector<1x64x256xbf16> to vector<64x256xbf16>
    %cst = arith.constant dense<0.000000e+00> : vector<64x256xf32>
    %3 = tpu.matmul %0, %2, %cst {dimension_numbers = #tpu.dot_dimension_numbers<[1], [0], [0], [1], [0, 0, 1, 1], [], []>} : vector<64x64xbf16>, vector<64x256xbf16>, vector<64x256xf32> -> vector<64x256xf32>
    %4 = arith.truncf %3 : vector<64x256xf32> to vector<64x256xbf16>
    %c0_4 = arith.constant 0 : index
    %c0_5 = arith.constant 0 : index
    %c0_6 = arith.constant 0 : index
    %5 = vector.load %arg3[%c0_4, %c0_5, %c0_6] : memref<1x64x256xbf16, #tpu.memory_space<vmem>>, vector<1x64x256xbf16>
    %6 = vector.shape_cast %5 : vector<1x64x256xbf16> to vector<64x256xbf16>
    %7 = vector.shape_cast %4 : vector<64x256xbf16> to vector<1x64x256xbf16>
    tpu.vector_store %arg3[%c0_4, %c0_5, %c0_6], %7 {strides = array<i32>} : memref<1x64x256xbf16, #tpu.memory_space<vmem>>, vector<1x64x256xbf16>,
    return
  }
  func.func @transform_0(%arg0: i32) -> (i32, i32, i32) {
    %c0_i32 = arith.constant 0 : i32
    %c0_i32_0 = arith.constant 0 : i32
    %c0_i32_1 = arith.constant 0 : i32
    return %arg0, %c0_i32, %c0_i32_0 : i32, i32, i32
  }
  func.func @transform_1(%arg0: i32) -> (i32, i32) {
    %c0_i32 = arith.constant 0 : i32
    %c0_i32_0 = arith.constant 0 : i32
    %c0_i32_1 = arith.constant 0 : i32
    return %c0_i32, %c0_i32_0 : i32, i32
  }
  func.func @transform_2(%arg0: i32) -> (i32, i32, i32) {
    %c0_i32 = arith.constant 0 : i32
    %c0_i32_0 = arith.constant 0 : i32
    %c0_i32_1 = arith.constant 0 : i32
    return %arg0, %c0_i32, %c0_i32_0 : i32, i32, i32
  }
}

module attributes {stable_mosaic.version = 11 : i64} {
  func.func @_attn_mlp_gn_kernel(%arg0: i32, %arg1: memref<1x32x256xbf16, #tpu.memory_space<vmem>>, %arg2: memref<1x25x64x256xbf16, #tpu.memory_space<vmem>>, %arg3: memref<32x32xbf16, #tpu.memory_space<vmem>>, %arg4: memref<32x32xbf16, #tpu.memory_space<vmem>>, %arg5: memref<64x32xbf16, #tpu.memory_space<vmem>>, %arg6: memref<64x1xf32, #tpu.memory_space<vmem>>, %arg7: memref<32x64xbf16, #tpu.memory_space<vmem>>, %arg8: memref<32x1xf32, #tpu.memory_space<vmem>>, %arg9: memref<32x1xf32, #tpu.memory_space<vmem>>, %arg10: memref<32x1xf32, #tpu.memory_space<vmem>>, %arg11: memref<1x32x256xf32, #tpu.memory_space<vmem>>) attributes {dimension_semantics = [#tpu.dimension_semantics<parallel>], iteration_bounds = array<i64: 2>, scalar_prefetch = 0 : i64, scratch_operands = 0 : i64, tpu.core_type = #tpu.core_type<tc>, window_params = [{transform_indices = @transform_0, window_bounds = array<i64: 1, 32, 256>}, {transform_indices = @transform_1, window_bounds = array<i64: 1, 25, 64, 256>}, {pipeline_mode = #tpu.pipeline_mode<synchronous>, transform_indices = @transform_2, window_bounds = array<i64: 32, 32>}, {pipeline_mode = #tpu.pipeline_mode<synchronous>, transform_indices = @transform_3, window_bounds = array<i64: 32, 32>}, {pipeline_mode = #tpu.pipeline_mode<synchronous>, transform_indices = @transform_4, window_bounds = array<i64: 64, 32>}, {pipeline_mode = #tpu.pipeline_mode<synchronous>, transform_indices = @transform_5, window_bounds = array<i64: 64, 1>}, {pipeline_mode = #tpu.pipeline_mode<synchronous>, transform_indices = @transform_6, window_bounds = array<i64: 32, 64>}, {pipeline_mode = #tpu.pipeline_mode<synchronous>, transform_indices = @transform_7, window_bounds = array<i64: 32, 1>}, {pipeline_mode = #tpu.pipeline_mode<synchronous>, transform_indices = @transform_8, window_bounds = array<i64: 32, 1>}, {pipeline_mode = #tpu.pipeline_mode<synchronous>, transform_indices = @transform_9, window_bounds = array<i64: 32, 1>}, {transform_indices = @transform_10, window_bounds = array<i64: 1, 32, 256>}]} {
    %c0 = arith.constant 0 : index
    %c0_0 = arith.constant 0 : index
    %0 = vector.load %arg3[%c0, %c0_0] : memref<32x32xbf16, #tpu.memory_space<vmem>>, vector<32x32xbf16>
    %c0_1 = arith.constant 0 : index
    %c0_2 = arith.constant 0 : index
    %c0_3 = arith.constant 0 : index
    %1 = vector.load %arg1[%c0_1, %c0_2, %c0_3] : memref<1x32x256xbf16, #tpu.memory_space<vmem>>, vector<1x32x256xbf16>
    %2 = vector.shape_cast %1 : vector<1x32x256xbf16> to vector<32x256xbf16>
    %cst = arith.constant dense<0.000000e+00> : vector<32x256xf32>
    %3 = tpu.matmul %0, %2, %cst {dimension_numbers = #tpu.dot_dimension_numbers<[1], [0], [0], [1], [0, 0, 1, 1], [], []>} : vector<32x32xbf16>, vector<32x256xbf16>, vector<32x256xf32> -> vector<32x256xf32>
    %c0_4 = arith.constant 0 : index
    %c0_5 = arith.constant 0 : index
    %c0_6 = arith.constant 0 : index
    %c0_7 = arith.constant 0 : index
    %4 = vector.load %arg2[%c0_4, %c0_5, %c0_6, %c0_7] : memref<1x25x64x256xbf16, #tpu.memory_space<vmem>>, vector<1x25x8x256xbf16>
    %5 = vector.shape_cast %4 : vector<1x25x8x256xbf16> to vector<25x8x256xbf16>
    %6 = arith.extf %5 : vector<25x8x256xbf16> to vector<25x8x256xf32>
    %7 = vector.extract_strided_slice %3 {offsets = [0, 0], sizes = [8, 256], strides = [1, 1]} : vector<32x256xf32> to vector<8x256xf32>
    %8 = vector.shape_cast %7 : vector<8x256xf32> to vector<1x8x256xf32>
    %9 = vector.broadcast %8 : vector<1x8x256xf32> to vector<25x8x256xf32>
    %10 = arith.mulf %9, %6 : vector<25x8x256xf32>
    %c0_8 = arith.constant 0 : index
    %c0_9 = arith.constant 0 : index
    %c8 = arith.constant 8 : index
    %c0_10 = arith.constant 0 : index
    %11 = vector.load %arg2[%c0_8, %c0_9, %c8, %c0_10] : memref<1x25x64x256xbf16, #tpu.memory_space<vmem>>, vector<1x25x8x256xbf16>
    %12 = vector.shape_cast %11 : vector<1x25x8x256xbf16> to vector<25x8x256xbf16>
    %13 = arith.extf %12 : vector<25x8x256xbf16> to vector<25x8x256xf32>
    %14 = vector.extract_strided_slice %3 {offsets = [8, 0], sizes = [8, 256], strides = [1, 1]} : vector<32x256xf32> to vector<8x256xf32>
    %15 = vector.shape_cast %14 : vector<8x256xf32> to vector<1x8x256xf32>
    %16 = vector.broadcast %15 : vector<1x8x256xf32> to vector<25x8x256xf32>
    %17 = arith.mulf %16, %13 : vector<25x8x256xf32>
    %18 = arith.addf %10, %17 : vector<25x8x256xf32>
    %c0_11 = arith.constant 0 : index
    %c0_12 = arith.constant 0 : index
    %c16 = arith.constant 16 : index
    %c0_13 = arith.constant 0 : index
    %19 = vector.load %arg2[%c0_11, %c0_12, %c16, %c0_13] : memref<1x25x64x256xbf16, #tpu.memory_space<vmem>>, vector<1x25x8x256xbf16>
    %20 = vector.shape_cast %19 : vector<1x25x8x256xbf16> to vector<25x8x256xbf16>
    %21 = arith.extf %20 : vector<25x8x256xbf16> to vector<25x8x256xf32>
    %22 = vector.extract_strided_slice %3 {offsets = [16, 0], sizes = [8, 256], strides = [1, 1]} : vector<32x256xf32> to vector<8x256xf32>
    %23 = vector.shape_cast %22 : vector<8x256xf32> to vector<1x8x256xf32>
    %24 = vector.broadcast %23 : vector<1x8x256xf32> to vector<25x8x256xf32>
    %25 = arith.mulf %24, %21 : vector<25x8x256xf32>
    %26 = arith.addf %18, %25 : vector<25x8x256xf32>
    %c0_14 = arith.constant 0 : index
    %c0_15 = arith.constant 0 : index
    %c24 = arith.constant 24 : index
    %c0_16 = arith.constant 0 : index
    %27 = vector.load %arg2[%c0_14, %c0_15, %c24, %c0_16] : memref<1x25x64x256xbf16, #tpu.memory_space<vmem>>, vector<1x25x8x256xbf16>
    %28 = vector.shape_cast %27 : vector<1x25x8x256xbf16> to vector<25x8x256xbf16>
    %29 = arith.extf %28 : vector<25x8x256xbf16> to vector<25x8x256xf32>
    %30 = vector.extract_strided_slice %3 {offsets = [24, 0], sizes = [8, 256], strides = [1, 1]} : vector<32x256xf32> to vector<8x256xf32>
    %31 = vector.shape_cast %30 : vector<8x256xf32> to vector<1x8x256xf32>
    %32 = vector.broadcast %31 : vector<1x8x256xf32> to vector<25x8x256xf32>
    %33 = arith.mulf %32, %29 : vector<25x8x256xf32>
    %34 = arith.addf %26, %33 : vector<25x8x256xf32>
    %cst_17 = arith.constant dense<0xFF800000> : vector<8x256xf32>
    %35 = vector.multi_reduction <maximumf>, %34, %cst_17 [0] : vector<25x8x256xf32> to vector<8x256xf32>
    %36 = vector.shape_cast %35 : vector<8x256xf32> to vector<1x8x256xf32>
    %37 = vector.broadcast %36 : vector<1x8x256xf32> to vector<25x8x256xf32>
    %38 = arith.subf %34, %37 : vector<25x8x256xf32>
    %39 = math.exp %38 : vector<25x8x256xf32>
    %cst_18 = arith.constant dense<0.000000e+00> : vector<8x256xf32>
    %40 = vector.multi_reduction <add>, %39, %cst_18 [0] : vector<25x8x256xf32> to vector<8x256xf32>
    %41 = tpu.reciprocal %40 {approx = true} : vector<8x256xf32> -> vector<8x256xf32>
    %c0_19 = arith.constant 0 : index
    %c0_20 = arith.constant 0 : index
    %c32 = arith.constant 32 : index
    %c0_21 = arith.constant 0 : index
    %42 = vector.load %arg2[%c0_19, %c0_20, %c32, %c0_21] : memref<1x25x64x256xbf16, #tpu.memory_space<vmem>>, vector<1x25x8x256xbf16>
    %43 = vector.shape_cast %42 : vector<1x25x8x256xbf16> to vector<25x8x256xbf16>
    %44 = arith.extf %43 : vector<25x8x256xbf16> to vector<25x8x256xf32>
    %45 = arith.mulf %39, %44 : vector<25x8x256xf32>
    %cst_22 = arith.constant dense<0.000000e+00> : vector<8x256xf32>
    %46 = vector.multi_reduction <add>, %45, %cst_22 [0] : vector<25x8x256xf32> to vector<8x256xf32>
    %47 = arith.mulf %46, %41 : vector<8x256xf32>
    %c0_23 = arith.constant 0 : index
    %c0_24 = arith.constant 0 : index
    %c40 = arith.constant 40 : index
    %c0_25 = arith.constant 0 : index
    %48 = vector.load %arg2[%c0_23, %c0_24, %c40, %c0_25] : memref<1x25x64x256xbf16, #tpu.memory_space<vmem>>, vector<1x25x8x256xbf16>
    %49 = vector.shape_cast %48 : vector<1x25x8x256xbf16> to vector<25x8x256xbf16>
    %50 = arith.extf %49 : vector<25x8x256xbf16> to vector<25x8x256xf32>
    %51 = arith.mulf %39, %50 : vector<25x8x256xf32>
    %cst_26 = arith.constant dense<0.000000e+00> : vector<8x256xf32>
    %52 = vector.multi_reduction <add>, %51, %cst_26 [0] : vector<25x8x256xf32> to vector<8x256xf32>
    %53 = arith.mulf %52, %41 : vector<8x256xf32>
    %c0_27 = arith.constant 0 : index
    %c0_28 = arith.constant 0 : index
    %c48 = arith.constant 48 : index
    %c0_29 = arith.constant 0 : index
    %54 = vector.load %arg2[%c0_27, %c0_28, %c48, %c0_29] : memref<1x25x64x256xbf16, #tpu.memory_space<vmem>>, vector<1x25x8x256xbf16>
    %55 = vector.shape_cast %54 : vector<1x25x8x256xbf16> to vector<25x8x256xbf16>
    %56 = arith.extf %55 : vector<25x8x256xbf16> to vector<25x8x256xf32>
    %57 = arith.mulf %39, %56 : vector<25x8x256xf32>
    %cst_30 = arith.constant dense<0.000000e+00> : vector<8x256xf32>
    %58 = vector.multi_reduction <add>, %57, %cst_30 [0] : vector<25x8x256xf32> to vector<8x256xf32>
    %59 = arith.mulf %58, %41 : vector<8x256xf32>
    %c0_31 = arith.constant 0 : index
    %c0_32 = arith.constant 0 : index
    %c56 = arith.constant 56 : index
    %c0_33 = arith.constant 0 : index
    %60 = vector.load %arg2[%c0_31, %c0_32, %c56, %c0_33] : memref<1x25x64x256xbf16, #tpu.memory_space<vmem>>, vector<1x25x8x256xbf16>
    %61 = vector.shape_cast %60 : vector<1x25x8x256xbf16> to vector<25x8x256xbf16>
    %62 = arith.extf %61 : vector<25x8x256xbf16> to vector<25x8x256xf32>
    %63 = arith.mulf %39, %62 : vector<25x8x256xf32>
    %cst_34 = arith.constant dense<0.000000e+00> : vector<8x256xf32>
    %64 = vector.multi_reduction <add>, %63, %cst_34 [0] : vector<25x8x256xf32> to vector<8x256xf32>
    %65 = arith.mulf %64, %41 : vector<8x256xf32>
    %66 = tpu.concatenate %47, %53, %59, %65 in 0 : vector<8x256xf32>, vector<8x256xf32>, vector<8x256xf32>, vector<8x256xf32> -> vector<32x256xf32>
    %67 = arith.truncf %66 : vector<32x256xf32> to vector<32x256xbf16>
    %c0_35 = arith.constant 0 : index
    %c0_36 = arith.constant 0 : index
    %68 = vector.load %arg4[%c0_35, %c0_36] : memref<32x32xbf16, #tpu.memory_space<vmem>>, vector<32x32xbf16>
    %cst_37 = arith.constant dense<0.000000e+00> : vector<32x256xf32>
    %69 = tpu.matmul %68, %67, %cst_37 {dimension_numbers = #tpu.dot_dimension_numbers<[1], [0], [0], [1], [0, 0, 1, 1], [], []>} : vector<32x32xbf16>, vector<32x256xbf16>, vector<32x256xf32> -> vector<32x256xf32>
    %c0_38 = arith.constant 0 : index
    %c0_39 = arith.constant 0 : index
    %70 = vector.load %arg5[%c0_38, %c0_39] : memref<64x32xbf16, #tpu.memory_space<vmem>>, vector<64x32xbf16>
    %71 = arith.truncf %69 : vector<32x256xf32> to vector<32x256xbf16>
    %cst_40 = arith.constant dense<0.000000e+00> : vector<64x256xf32>
    %72 = tpu.matmul %70, %71, %cst_40 {dimension_numbers = #tpu.dot_dimension_numbers<[1], [0], [0], [1], [0, 0, 1, 1], [], []>} : vector<64x32xbf16>, vector<32x256xbf16>, vector<64x256xf32> -> vector<64x256xf32>
    %c0_41 = arith.constant 0 : index
    %c0_42 = arith.constant 0 : index
    %73 = vector.load %arg6[%c0_41, %c0_42] : memref<64x1xf32, #tpu.memory_space<vmem>>, vector<64x1xf32>
    %74 = vector.broadcast %73 : vector<64x1xf32> to vector<64x256xf32>
    %75 = arith.addf %72, %74 : vector<64x256xf32>
    %cst_43 = arith.constant 0.000000e+00 : f32
    %76 = vector.broadcast %cst_43 : f32 to vector<64x256xf32>
    %77 = arith.cmpf ogt, %75, %76 : vector<64x256xf32>
    %cst_44 = arith.constant 2.000000e-01 : f32
    %78 = vector.broadcast %cst_44 : f32 to vector<64x256xf32>
    %79 = arith.mulf %78, %75 : vector<64x256xf32>
    %80 = arith.select %77, %75, %79 : vector<64x256xi1>, vector<64x256xf32>
    %c0_45 = arith.constant 0 : index
    %c0_46 = arith.constant 0 : index
    %81 = vector.load %arg7[%c0_45, %c0_46] : memref<32x64xbf16, #tpu.memory_space<vmem>>, vector<32x64xbf16>
    %82 = arith.truncf %80 : vector<64x256xf32> to vector<64x256xbf16>
    %cst_47 = arith.constant dense<0.000000e+00> : vector<32x256xf32>
    %83 = tpu.matmul %81, %82, %cst_47 {dimension_numbers = #tpu.dot_dimension_numbers<[1], [0], [0], [1], [0, 0, 1, 1], [], []>} : vector<32x64xbf16>, vector<64x256xbf16>, vector<32x256xf32> -> vector<32x256xf32>
    %84 = arith.addf %69, %83 : vector<32x256xf32>
    %c0_48 = arith.constant 0 : index
    %c0_49 = arith.constant 0 : index
    %85 = vector.load %arg8[%c0_48, %c0_49] : memref<32x1xf32, #tpu.memory_space<vmem>>, vector<32x1xf32>
    %86 = vector.broadcast %85 : vector<32x1xf32> to vector<32x256xf32>
    %87 = arith.addf %84, %86 : vector<32x256xf32>
    %88 = vector.shape_cast %87 : vector<32x256xf32> to vector<1x32x256xf32>
    %cst_50 = arith.constant dense<0.000000e+00> : vector<1xf32>
    %89 = vector.multi_reduction <add>, %88, %cst_50 [1, 2] : vector<1x32x256xf32> to vector<1xf32>
    %90 = vector.shape_cast %89 : vector<1xf32> to vector<1x1x1xf32>
    %91 = vector.extract %90[0, 0, 0] : f32 from vector<1x1x1xf32>
    %cst_51 = arith.constant 8.192000e+03 : f32
    %92 = arith.divf %91, %cst_51 : f32
    %93 = arith.mulf %87, %87 : vector<32x256xf32>
    %94 = vector.shape_cast %93 : vector<32x256xf32> to vector<1x32x256xf32>
    %cst_52 = arith.constant dense<0.000000e+00> : vector<1xf32>
    %95 = vector.multi_reduction <add>, %94, %cst_52 [1, 2] : vector<1x32x256xf32> to vector<1xf32>
    %96 = vector.shape_cast %95 : vector<1xf32> to vector<1x1x1xf32>
    %97 = vector.extract %96[0, 0, 0] : f32 from vector<1x1x1xf32>
    %cst_53 = arith.constant 8.192000e+03 : f32
    %98 = arith.divf %97, %cst_53 : f32
    %99 = arith.mulf %92, %92 : f32
    %100 = arith.subf %98, %99 : f32
    %cst_54 = arith.constant 9.99999974E-6 : f32
    %101 = arith.addf %100, %cst_54 : f32
    %102 = math.rsqrt %101 : f32
    %103 = vector.broadcast %92 : f32 to vector<32x256xf32>
    %104 = arith.subf %87, %103 : vector<32x256xf32>
    %105 = vector.broadcast %102 : f32 to vector<32x256xf32>
    %106 = arith.mulf %104, %105 : vector<32x256xf32>
    %c0_55 = arith.constant 0 : index
    %c0_56 = arith.constant 0 : index
    %107 = vector.load %arg9[%c0_55, %c0_56] : memref<32x1xf32, #tpu.memory_space<vmem>>, vector<32x1xf32>
    %108 = vector.broadcast %107 : vector<32x1xf32> to vector<32x256xf32>
    %109 = arith.mulf %106, %108 : vector<32x256xf32>
    %c0_57 = arith.constant 0 : index
    %c0_58 = arith.constant 0 : index
    %110 = vector.load %arg10[%c0_57, %c0_58] : memref<32x1xf32, #tpu.memory_space<vmem>>, vector<32x1xf32>
    %111 = vector.broadcast %110 : vector<32x1xf32> to vector<32x256xf32>
    %112 = arith.addf %109, %111 : vector<32x256xf32>
    %c0_59 = arith.constant 0 : index
    %c0_60 = arith.constant 0 : index
    %c0_61 = arith.constant 0 : index
    %113 = vector.load %arg11[%c0_59, %c0_60, %c0_61] : memref<1x32x256xf32, #tpu.memory_space<vmem>>, vector<1x32x256xf32>
    %114 = vector.shape_cast %113 : vector<1x32x256xf32> to vector<32x256xf32>
    %115 = vector.shape_cast %112 : vector<32x256xf32> to vector<1x32x256xf32>
    tpu.vector_store %arg11[%c0_59, %c0_60, %c0_61], %115 {strides = array<i32>} : memref<1x32x256xf32, #tpu.memory_space<vmem>>, vector<1x32x256xf32>,
    return
  }
  func.func @transform_0(%arg0: i32) -> (i32, i32, i32) {
    %c0_i32 = arith.constant 0 : i32
    %c0_i32_0 = arith.constant 0 : i32
    %c0_i32_1 = arith.constant 0 : i32
    return %arg0, %c0_i32, %c0_i32_0 : i32, i32, i32
  }
  func.func @transform_1(%arg0: i32) -> (i32, i32, i32, i32) {
    %c0_i32 = arith.constant 0 : i32
    %c0_i32_0 = arith.constant 0 : i32
    %c0_i32_1 = arith.constant 0 : i32
    %c0_i32_2 = arith.constant 0 : i32
    return %arg0, %c0_i32, %c0_i32_0, %c0_i32_1 : i32, i32, i32, i32
  }
  func.func @transform_2(%arg0: i32) -> (i32, i32) {
    %c0_i32 = arith.constant 0 : i32
    %c0_i32_0 = arith.constant 0 : i32
    %c0_i32_1 = arith.constant 0 : i32
    return %c0_i32, %c0_i32_0 : i32, i32
  }
  func.func @transform_3(%arg0: i32) -> (i32, i32) {
    %c0_i32 = arith.constant 0 : i32
    %c0_i32_0 = arith.constant 0 : i32
    %c0_i32_1 = arith.constant 0 : i32
    return %c0_i32, %c0_i32_0 : i32, i32
  }
  func.func @transform_4(%arg0: i32) -> (i32, i32) {
    %c0_i32 = arith.constant 0 : i32
    %c0_i32_0 = arith.constant 0 : i32
    %c0_i32_1 = arith.constant 0 : i32
    return %c0_i32, %c0_i32_0 : i32, i32
  }
  func.func @transform_5(%arg0: i32) -> (i32, i32) {
    %c0_i32 = arith.constant 0 : i32
    %c0_i32_0 = arith.constant 0 : i32
    %c0_i32_1 = arith.constant 0 : i32
    return %c0_i32, %c0_i32_0 : i32, i32
  }
  func.func @transform_6(%arg0: i32) -> (i32, i32) {
    %c0_i32 = arith.constant 0 : i32
    %c0_i32_0 = arith.constant 0 : i32
    %c0_i32_1 = arith.constant 0 : i32
    return %c0_i32, %c0_i32_0 : i32, i32
  }
  func.func @transform_7(%arg0: i32) -> (i32, i32) {
    %c0_i32 = arith.constant 0 : i32
    %c0_i32_0 = arith.constant 0 : i32
    %c0_i32_1 = arith.constant 0 : i32
    return %c0_i32, %c0_i32_0 : i32, i32
  }
  func.func @transform_8(%arg0: i32) -> (i32, i32) {
    %c0_i32 = arith.constant 0 : i32
    %c0_i32_0 = arith.constant 0 : i32
    %c0_i32_1 = arith.constant 0 : i32
    return %c0_i32, %c0_i32_0 : i32, i32
  }
  func.func @transform_9(%arg0: i32) -> (i32, i32) {
    %c0_i32 = arith.constant 0 : i32
    %c0_i32_0 = arith.constant 0 : i32
    %c0_i32_1 = arith.constant 0 : i32
    return %c0_i32, %c0_i32_0 : i32, i32
  }
  func.func @transform_10(%arg0: i32) -> (i32, i32, i32) {
    %c0_i32 = arith.constant 0 : i32
    %c0_i32_0 = arith.constant 0 : i32
    %c0_i32_1 = arith.constant 0 : i32
    return %arg0, %c0_i32, %c0_i32_0 : i32, i32, i32
  }
}

</mosaic_0001>

<llo_original>
// kernel: tile.8
$region0: #{tile.8}
  #allocation0 [shape = 's32[1]{0}', space=sflag, size = 0x4, scoped, tag = 'scoped memory for tile.8']
  %s0 = inlined_call_operand.vmem [shape: f32[5], index: 0, kind: input, shape index: {}]
  %s1 = inlined_call_operand.vmem [shape: f32[5,5], index: 1, kind: output, shape index: {}]
  // Predicated region
  $region2: #{tile.8} parent=0 // pred_check
    _
  $region3: #{tile.8} parent=0 // pred_check_branch
    %3 = sbr.rel (0) target = $region5
  $region4: #{tile.8} parent=0 // pred_region
    _
  $region5: #{tile.8} parent=0 // pred_fallthru
    _
  %v4 = vld [vmem:[%s0] ss:$0 sm:$0xff]
  %5 = vst [vmem:[%s1] sm:$0xff] %v4

// kernel: transformer_forward.2
$region0: #{transformer_forward.2}
  #allocation0 [shape = 'u32[]', space=smem, size = 0x4, offset = 0x4, fixed_abs, tag = 'smem constant byte address 0x4 - core index']
  #allocation1 [shape = 'u32[144,128]{1,0:T(1,128)}', space=vmem, size = 0x12000, scoped, tag = 'internal scratch']
  %s0 = inlined_call_operand.vmem [shape: bf16[2,64,256], index: 0, kind: input, shape index: {}]
  %s1 = inlined_call_operand.vmem [shape: bf16[64,64], index: 1, kind: input, shape index: {}]
  %s2 = inlined_call_operand.vmem [shape: bf16[2,64,256], index: 2, kind: output, shape index: {}]
  %s3 = sld [smem:[#allocation0]]
  $region41: #{transformer_forward.2} parent=0
    _
  %s5 = ssub.s32 1, %s3
  %s6 = scalar_select 0, %s5, %s3
  loop: start=0, step=1, limit=4
  $region2: #{transformer_forward.2} parent=0 // loop_pre_header
    _
  $region3: #{transformer_forward.2} parent=0 // loop_header
    %s8 = sphi 0, %s12
    %p9 = scmp.ge.s32.totalorder %s8, 4
    %s18 = sphi 0, %s20
    %s21 = sphi 0, %s18
    %s22 = sphi 0, %s21
    %s38 = sphi 0, %s22
    %s42 = sphi 0, %s42
    %s44 = sphi 0, %s42
    %s45 = sphi 0, %s44
    %s59 = sphi 0, %s45
    %s65 = sphi 0, %s67
    %s68 = sphi 0, %s65
    %s69 = sphi 0, %s68
    %s85 = sphi 0, %s69
  $region4: #{transformer_forward.2} parent=0 // loop_header_branch
    %11 = sbr.rel (%p9) target = $region8
  $region5: #{transformer_forward.2} parent=0 // loop_body
    %s13 = ssub.s32 %s8, 1
    %s14 = ssub.s32 %s8, 2
    %s15 = sadd.s32 %s8, 1
    %s16 = ssub.s32 %s8, %s15
    %p17 = scmp.eq.s32.totalorder %s16, 0
    %s19 = sadd.s32 %s18, 1
    %s20 = scalar_select %p17, %s18, %s19
    %p23 = pneg %p17
    %p24 = scmp.eq.s32.totalorder %s8, 1
    %p25 = por %p23, %p24
    %p26 = scmp.ne.s32.totalorder %s18, %s21
    %p27 = scmp.eq.s32.totalorder %s8, 0
    %p28 = por %p26, %p27
    %p29 = scmp.ne.s32.totalorder %s18, %s21
    %p30 = scmp.eq.s32.totalorder %s13, 1
    %p31 = por %p29, %p30
    %p32 = scmp.ne.s32.totalorder %s21, %s22
    %p33 = scmp.eq.s32.totalorder %s13, 0
    %p34 = por %p32, %p33
    %p35 = scmp.ne.s32.totalorder %s21, %s22
    %p36 = scmp.eq.s32.totalorder %s14, 1
    %p37 = por %p35, %p36
    %p39 = scmp.ne.s32.totalorder %s22, %s38
    %p40 = scmp.eq.s32.totalorder %s14, 0
    %p41 = por %p39, %p40
    %s43 = sadd.s32 %s42, 1
    %p46 = scmp.eq.s32.totalorder %s8, 1
    %p47 = scmp.ne.s32.totalorder %s42, %s44
    %p48 = scmp.eq.s32.totalorder %s8, 0
    %p49 = por %p47, %p48
    %p50 = scmp.ne.s32.totalorder %s42, %s44
    %p51 = scmp.eq.s32.totalorder %s13, 1
    %p52 = por %p50, %p51
    %p53 = scmp.ne.s32.totalorder %s44, %s45
    %p54 = scmp.eq.s32.totalorder %s13, 0
    %p55 = por %p53, %p54
    %p56 = scmp.ne.s32.totalorder %s44, %s45
    %p57 = scmp.eq.s32.totalorder %s14, 1
    %p58 = por %p56, %p57
    %p60 = scmp.ne.s32.totalorder %s45, %s59
    %p61 = scmp.eq.s32.totalorder %s14, 0
    %p62 = por %p60, %p61
    %s63 = ssub.s32 %s8, %s15
    %p64 = scmp.eq.s32.totalorder %s63, 0
    %s66 = sadd.s32 %s65, 1
    %s67 = scalar_select %p64, %s65, %s66
    %p70 = pneg %p64
    %p71 = scmp.eq.s32.totalorder %s8, 1
    %p72 = por %p70, %p71
    %p73 = scmp.ne.s32.totalorder %s65, %s68
    %p74 = scmp.eq.s32.totalorder %s8, 0
    %p75 = por %p73, %p74
    %p76 = scmp.ne.s32.totalorder %s65, %s68
    %p77 = scmp.eq.s32.totalorder %s13, 1
    %p78 = por %p76, %p77
    %p79 = scmp.ne.s32.totalorder %s68, %s69
    %p80 = scmp.eq.s32.totalorder %s13, 0
    %p81 = por %p79, %p80
    %p82 = scmp.ne.s32.totalorder %s68, %s69
    %p83 = scmp.eq.s32.totalorder %s14, 1
    %p84 = por %p82, %p83
    %p86 = scmp.ne.s32.totalorder %s69, %s85
    %p87 = scmp.eq.s32.totalorder %s14, 0
    %p88 = por %p86, %p87
    %p89 = scmp.le.s32.totalorder 1, %s8
    %p90 = scmp.lt.s32.totalorder %s8, 3
    %p91 = pnand %p89, %p90
    %p92 = pneg %p91
    // Predicated region
    $region9: #{transformer_forward.2} parent=5 // pred_check
      _
    $region10: #{transformer_forward.2} parent=5 // pred_check_branch
      %94 = sbr.rel (%p91) target = $region12
    $region11: #{transformer_forward.2} parent=5 // pred_region
      %s95 = ssub.s32 %s8, 1
      // Predicated region
      $region13: #{transformer_forward.2} parent=11 // pred_check
        %p96 = pneg %p55
      $region14: #{transformer_forward.2} parent=11 // pred_check_branch
        %98 = sbr.rel (%p96) target = $region16
      $region15: #{transformer_forward.2} parent=11 // pred_region
        _
      $region16: #{transformer_forward.2} parent=11 // pred_fallthru
        _
    $region12: #{transformer_forward.2} parent=5 // pred_fallthru
      _
    %p99 = scmp.lt.s32.totalorder %s8, 2
    // Predicated region
    $region17: #{transformer_forward.2} parent=5 // pred_check
      %p100 = pneg %p99
    $region18: #{transformer_forward.2} parent=5 // pred_check_branch
      %102 = sbr.rel (%p100) target = $region20
    $region19: #{transformer_forward.2} parent=5 // pred_region
      // Predicated region
      $region21: #{transformer_forward.2} parent=19 // pred_check
        %p103 = pneg %p28
      $region22: #{transformer_forward.2} parent=19 // pred_check_branch
        %105 = sbr.rel (%p103) target = $region24
      $region23: #{transformer_forward.2} parent=19 // pred_region
        %p106 = scmp.lt.s32.totalorder %s8, 1
        %s107 = scalar_select %p106, %s8, 1
        %s108 = smul.addr %s107, 16
        %s109 = smul.addr %s108, 4
        %s110 = scalar_lea.vmem %s0, %s109
      $region24: #{transformer_forward.2} parent=19 // pred_fallthru
        _
    $region20: #{transformer_forward.2} parent=5 // pred_fallthru
      _
    %p111 = scmp.le.s32.totalorder 1, %s8
    %p112 = scmp.lt.s32.totalorder %s8, 3
    %p113 = pnand %p111, %p112
    %p114 = pneg %p113
    // Predicated region
    $region25: #{transformer_forward.2} parent=5 // pred_check
      _
    $region26: #{transformer_forward.2} parent=5 // pred_check_branch
      %116 = sbr.rel (%p113) target = $region28
    $region27: #{transformer_forward.2} parent=5 // pred_region
      %s117 = ssub.s32 %s8, 1
      %p118 = scmp.lt.s32.totalorder %s13, 1
      %s119 = scalar_select %p118, %s13, 1
      %s120 = smul.addr %s119, 16
      %s121 = smul.addr %s120, 4
      %s122 = scalar_lea.vmem %s0, %s121
      %p123 = pneg %p34
      %p124 = pneg %p31
      %p125 = pneg %p55
      %p126 = pneg %p52
      %p127 = pneg %p81
      %p128 = pneg %p78
      %p129 = scmp.lt.s32.totalorder %s13, 1
      %s130 = scalar_select %p129, %s13, 1
      %s131 = smul.addr %s130, 16
      %s132 = smul.addr %s131, 4
      %s133 = scalar_lea.vmem %s2, %s132
      %p134 = scmp.lt.s32.totalorder %s13, 1
      %s135 = scalar_select %p134, %s13, 1
      %s136 = smul.addr %s135, 16
      %s137 = smul.addr %s136, 4
      %s138 = scalar_lea.vmem %s0, %s137
      %p139 = scmp.lt.s32.totalorder %s13, 1
      %s140 = scalar_select %p139, %s13, 1
      %s141 = smul.addr %s140, 16
      %s142 = smul.addr %s141, 4
      %s143 = scalar_lea.vmem %s2, %s142
      %v145 = vld [vmem:[%s1] sm:$0xf]
      %v146 = vld [vmem:[%s1 + $0x4] sm:$0xf]
      %v147 = vld [vmem:[%s1 + $0x8] sm:$0xf]
      %v148 = vld [vmem:[%s1 + $0xc] sm:$0xf]
      %v149 = vld [vmem:[%s1 + $0x10] sm:$0xf]
      %v150 = vld [vmem:[%s1 + $0x14] sm:$0xf]
      %v151 = vld [vmem:[%s1 + $0x18] sm:$0xf]
      %v152 = vld [vmem:[%s1 + $0x1c] sm:$0xf]
      %v153 = vld [vmem:[%s138] sm:$0xff]
      %v154 = vld [vmem:[%s138 + $0x8] sm:$0xff]
      %v155 = vld [vmem:[%s138 + $0x10] sm:$0xff]
      %v156 = vld [vmem:[%s138 + $0x18] sm:$0xff]
      %v157 = vld [vmem:[%s138 + $0x20] sm:$0xff]
      %v158 = vld [vmem:[%s138 + $0x28] sm:$0xff]
      %v159 = vld [vmem:[%s138 + $0x30] sm:$0xff]
      %v160 = vld [vmem:[%s138 + $0x38] sm:$0xff]
      %v169 = vunpack.c.l.b16 %v145
      %v170 = vunpack.c.l.b16 %v146
      %v171 = vunpack.c.l.b16 %v147
      %v172 = vunpack.c.l.b16 %v148
      %v173 = vunpack.c.l.b16 %v149
      %v174 = vunpack.c.l.b16 %v150
      %v175 = vunpack.c.l.b16 %v151
      %v176 = vunpack.c.l.b16 %v152
      %v177 = vpack.c.b16 %v170, %v169
      %v178 = vpack.c.b16 %v172, %v171
      %v179 = vpack.c.b16 %v174, %v173
      %v180 = vpack.c.b16 %v176, %v175
      %v189 = vunpack.c.l.b16 %v153
      %v190 = vunpack.c.h.b16 %v153
      %v191 = vunpack.c.l.b16 %v154
      %v192 = vunpack.c.h.b16 %v154
      %v193 = vunpack.c.l.b16 %v155
      %v194 = vunpack.c.h.b16 %v155
      %v195 = vunpack.c.l.b16 %v156
      %v196 = vunpack.c.h.b16 %v156
      %v197 = vunpack.c.l.b16 %v157
      %v198 = vunpack.c.h.b16 %v157
      %v199 = vunpack.c.l.b16 %v158
      %v200 = vunpack.c.h.b16 %v158
      %v201 = vunpack.c.l.b16 %v159
      %v202 = vunpack.c.h.b16 %v159
      %v203 = vunpack.c.l.b16 %v160
      %v204 = vunpack.c.h.b16 %v160
      %v205 = vpack.c.b16 %v191, %v189
      %v206 = vpack.c.b16 %v192, %v190
      %v207 = vpack.c.b16 %v195, %v193
      %v208 = vpack.c.b16 %v196, %v194
      %v209 = vpack.c.b16 %v199, %v197
      %v210 = vpack.c.b16 %v200, %v198
      %v211 = vpack.c.b16 %v203, %v201
      %v212 = vpack.c.b16 %v204, %v202
      %vm221 = vcmask 523264
      %v223 = vsel %vm221, %v177, 0
      %v226 = vsel %vm221, %v178, 0
      %v229 = vsel %vm221, %v179, 0
      %v232 = vsel %vm221, %v180, 0
      %234 = vmatprep.subr.bf16.mxu0 %v206
      %235 = vmatpush1.bf16.msra.mxu0 %v205
      %236 = vmatprep.subr.bf16.mxu0 %v208
      %237 = vmatpush1.bf16.msra.mxu0 %v207
      %238 = vmatprep.subr.bf16.mxu0 %v210
      %239 = vmatpush1.bf16.msra.mxu0 %v209
      %240 = vmatprep.subr.bf16.mxu0 %v212
      %241 = vmatpush1.bf16.msra.mxu0 %v211
      %242 = vmatprep.subr.bf16.mxu0 0
      %243 = vmatpush1.bf16.msra.mxu0 0
      %244 = vmatprep.subr.bf16.mxu0 0
      %245 = vmatpush1.bf16.msra.mxu0 0
      %246 = vmatprep.subr.bf16.mxu0 0
      %247 = vmatpush1.bf16.msra.mxu0 0
      %248 = vmatprep.subr.bf16.mxu0 0
      %249 = vmatpush1.bf16.msra.mxu0 0
      %250 = vmatprep.subr.bf16.mxu0 0
      %251 = vmatpush1.bf16.msra.mxu0 0
      %252 = vmatprep.subr.bf16.mxu0 0
      %253 = vmatpush1.bf16.msra.mxu0 0
      %254 = vmatprep.subr.bf16.mxu0 0
      %255 = vmatpush1.bf16.msra.mxu0 0
      %256 = vmatprep.subr.bf16.mxu0 0
      %257 = vmatpush1.bf16.msra.mxu0 0
      %258 = vmatprep.subr.bf16.mxu0 0
      %259 = vmatpush1.bf16.msra.mxu0 0
      %260 = vmatprep.subr.bf16.mxu0 0
      %261 = vmatpush1.bf16.msra.mxu0 0
      %262 = vmatprep.subr.bf16.mxu0 0
      %263 = vmatpush1.bf16.msra.mxu0 0
      %264 = vmatprep.subr.bf16.mxu0 0
      %265 = vmatpush1.bf16.msra.mxu0 0
      %266 = vmatprep.mubr.bf16.mxu0 0
      %267 = vmatmul.mubr.bf16.gmra.mrb[0].mxu0 %v223
      %v268 = vpop.f32.mrb[0].mxu0
      %v269 = vadd.f32 0.0, %v268
      %v270 = vpop.f32.mrb[0].mxu0
      %v271 = vadd.f32 0.0, %v270
      %v272 = vpop.f32.mrb[0].mxu0
      %v273 = vadd.f32 0.0, %v272
      %v274 = vpop.f32.mrb[0].mxu0
      %v275 = vadd.f32 0.0, %v274
      %276 = vmatprep.mubr.bf16.mxu0 0
      %277 = vmatmul.mubr.bf16.gmra.mrb[0].mxu0 %v226
      %v278 = vpop.f32.mrb[0].mxu0
      %v279 = vadd.f32 0.0, %v278
      %v280 = vpop.f32.mrb[0].mxu0
      %v281 = vadd.f32 0.0, %v280
      %v282 = vpop.f32.mrb[0].mxu0
      %v283 = vadd.f32 0.0, %v282
      %v284 = vpop.f32.mrb[0].mxu0
      %v285 = vadd.f32 0.0, %v284
      %286 = vmatprep.mubr.bf16.mxu0 0
      %287 = vmatmul.mubr.bf16.gmra.mrb[0].mxu0 %v229
      %v288 = vpop.f32.mrb[0].mxu0
      %v289 = vadd.f32 0.0, %v288
      %v290 = vpop.f32.mrb[0].mxu0
      %v291 = vadd.f32 0.0, %v290
      %v292 = vpop.f32.mrb[0].mxu0
      %v293 = vadd.f32 0.0, %v292
      %v294 = vpop.f32.mrb[0].mxu0
      %v295 = vadd.f32 0.0, %v294
      %296 = vmatprep.mubr.bf16.mxu0 0
      %297 = vmatmul.mubr.bf16.gmra.mrb[0].mxu0 %v232
      %v298 = vpop.f32.mrb[0].mxu0
      %v299 = vadd.f32 0.0, %v298
      %v300 = vpop.f32.mrb[0].mxu0
      %v301 = vadd.f32 0.0, %v300
      %v302 = vpop.f32.mrb[0].mxu0
      %v303 = vadd.f32 0.0, %v302
      %v304 = vpop.f32.mrb[0].mxu0
      %v305 = vadd.f32 0.0, %v304
      %306 = vdwg.mxu0
      %v307 = vpack.c.bf16 %v273, %v269
      %v308 = vpack.c.bf16 %v275, %v271
      %v309 = vpack.c.bf16 %v283, %v279
      %v310 = vpack.c.bf16 %v285, %v281
      %v311 = vpack.c.bf16 %v293, %v289
      %v312 = vpack.c.bf16 %v295, %v291
      %v313 = vpack.c.bf16 %v303, %v299
      %v314 = vpack.c.bf16 %v305, %v301
      %v323 = vunpack.c.l.b16 %v307
      %v324 = vunpack.c.l.b16 %v308
      %v325 = vunpack.c.h.b16 %v307
      %v326 = vunpack.c.h.b16 %v308
      %v327 = vunpack.c.l.b16 %v309
      %v328 = vunpack.c.l.b16 %v310
      %v329 = vunpack.c.h.b16 %v309
      %v330 = vunpack.c.h.b16 %v310
      %v331 = vunpack.c.l.b16 %v311
      %v332 = vunpack.c.l.b16 %v312
      %v333 = vunpack.c.h.b16 %v311
      %v334 = vunpack.c.h.b16 %v312
      %v335 = vunpack.c.l.b16 %v313
      %v336 = vunpack.c.l.b16 %v314
      %v337 = vunpack.c.h.b16 %v313
      %v338 = vunpack.c.h.b16 %v314
      %v339 = vpack.c.b16 %v324, %v323
      %v340 = vpack.c.b16 %v326, %v325
      %v341 = vpack.c.b16 %v328, %v327
      %v342 = vpack.c.b16 %v330, %v329
      %v343 = vpack.c.b16 %v332, %v331
      %v344 = vpack.c.b16 %v334, %v333
      %v345 = vpack.c.b16 %v336, %v335
      %v346 = vpack.c.b16 %v338, %v337
      %355 = vst [vmem:[%s143] sm:$0xff] %v339
      %356 = vst [vmem:[%s143 + $0x8] sm:$0xff] %v340
      %357 = vst [vmem:[%s143 + $0x10] sm:$0xff] %v341
      %358 = vst [vmem:[%s143 + $0x18] sm:$0xff] %v342
      %359 = vst [vmem:[%s143 + $0x20] sm:$0xff] %v343
      %360 = vst [vmem:[%s143 + $0x28] sm:$0xff] %v344
      %361 = vst [vmem:[%s143 + $0x30] sm:$0xff] %v345
      %362 = vst [vmem:[%s143 + $0x38] sm:$0xff] %v346
      %p363 = scmp.lt.s32.totalorder %s13, 1
      %s364 = scalar_select %p363, %s13, 1
      %s365 = smul.addr %s364, 16
      %s366 = smul.addr %s365, 4
      %s367 = scalar_lea.vmem %s2, %s366
      // Predicated region
      $region29: #{transformer_forward.2} parent=27 // pred_check
        %p368 = pneg %p78
      $region30: #{transformer_forward.2} parent=27 // pred_check_branch
        %370 = sbr.rel (%p368) target = $region32
      $region31: #{transformer_forward.2} parent=27 // pred_region
        _
      $region32: #{transformer_forward.2} parent=27 // pred_fallthru
        _
    $region28: #{transformer_forward.2} parent=5 // pred_fallthru
      _
    %p371 = scmp.le.s32.totalorder 2, %s8
    // Predicated region
    $region33: #{transformer_forward.2} parent=5 // pred_check
      %p372 = pneg %p371
    $region34: #{transformer_forward.2} parent=5 // pred_check_branch
      %374 = sbr.rel (%p372) target = $region36
    $region35: #{transformer_forward.2} parent=5 // pred_region
      %s375 = ssub.s32 %s8, 2
      // Predicated region
      $region37: #{transformer_forward.2} parent=35 // pred_check
        %p376 = pneg %p84
      $region38: #{transformer_forward.2} parent=35 // pred_check_branch
        %378 = sbr.rel (%p376) target = $region40
      $region39: #{transformer_forward.2} parent=35 // pred_region
        %p379 = scmp.lt.s32.totalorder %s14, 1
        %s380 = scalar_select %p379, %s14, 1
        %s381 = smul.addr %s380, 16
        %s382 = smul.addr %s381, 4
        %s383 = scalar_lea.vmem %s2, %s382
      $region40: #{transformer_forward.2} parent=35 // pred_fallthru
        _
    $region36: #{transformer_forward.2} parent=5 // pred_fallthru
      _
  $region6: #{transformer_forward.2} parent=0 // loop_footer
    %s12 = sadd.s32 1, %s8
  $region7: #{transformer_forward.2} parent=0 // loop_footer_branch
    %7 = sbr.rel target = $region3
  $region8: #{transformer_forward.2} parent=0 // loop_exit
    _

// kernel: transformer_forward.3
$region0: #{transformer_forward.3}
  #allocation0 [shape = 'u32[]', space=smem, size = 0x4, offset = 0x4, fixed_abs, tag = 'smem constant byte address 0x4 - core index']
  #allocation1 [shape = 'u32[144,128]{1,0:T(1,128)}', space=vmem, size = 0x12000, scoped, tag = 'internal scratch']
  %s0 = inlined_call_operand.vmem [shape: bf16[2,32,256], index: 0, kind: input, shape index: {}]
  %s1 = inlined_call_operand.vmem [shape: bf16[2,25,64,256], index: 1, kind: input, shape index: {}]
  %s2 = inlined_call_operand.vmem [shape: bf16[32,32], index: 2, kind: input, shape index: {}]
  %s3 = inlined_call_operand.vmem [shape: bf16[32,32], index: 3, kind: input, shape index: {}]
  %s4 = inlined_call_operand.vmem [shape: bf16[64,32], index: 4, kind: input, shape index: {}]
  %s5 = inlined_call_operand.vmem [shape: f32[64,1], index: 5, kind: input, shape index: {}]
  %s6 = inlined_call_operand.vmem [shape: bf16[32,64], index: 6, kind: input, shape index: {}]
  %s7 = inlined_call_operand.vmem [shape: f32[32,1], index: 7, kind: input, shape index: {}]
  %s8 = inlined_call_operand.vmem [shape: f32[32,1], index: 8, kind: input, shape index: {}]
  %s9 = inlined_call_operand.vmem [shape: f32[32,1], index: 9, kind: input, shape index: {}]
  %s10 = inlined_call_operand.vmem [shape: f32[2,32,256], index: 10, kind: output, shape index: {}]
  %s11 = sld [smem:[#allocation0]]
  $region73: #{transformer_forward.3} parent=0
    _
  %s13 = ssub.s32 1, %s11
  %s14 = scalar_select 0, %s13, %s11
  loop: start=0, step=1, limit=4
  $region2: #{transformer_forward.3} parent=0 // loop_pre_header
    _
  $region3: #{transformer_forward.3} parent=0 // loop_header
    %s16 = sphi 0, %s20
    %p17 = scmp.ge.s32.totalorder %s16, 4
    %s26 = sphi 0, %s28
    %s29 = sphi 0, %s26
    %s30 = sphi 0, %s29
    %s46 = sphi 0, %s30
    %s52 = sphi 0, %s54
    %s55 = sphi 0, %s52
    %s56 = sphi 0, %s55
    %s72 = sphi 0, %s56
    %s76 = sphi 0, %s76
    %s78 = sphi 0, %s76
    %s79 = sphi 0, %s78
    %s93 = sphi 0, %s79
    %s97 = sphi 0, %s97
    %s99 = sphi 0, %s97
    %s100 = sphi 0, %s99
    %s114 = sphi 0, %s100
    %s118 = sphi 0, %s118
    %s120 = sphi 0, %s118
    %s121 = sphi 0, %s120
    %s135 = sphi 0, %s121
    %s139 = sphi 0, %s139
    %s141 = sphi 0, %s139
    %s142 = sphi 0, %s141
    %s156 = sphi 0, %s142
    %s160 = sphi 0, %s160
    %s162 = sphi 0, %s160
    %s163 = sphi 0, %s162
    %s177 = sphi 0, %s163
    %s181 = sphi 0, %s181
    %s183 = sphi 0, %s181
    %s184 = sphi 0, %s183
    %s198 = sphi 0, %s184
    %s202 = sphi 0, %s202
    %s204 = sphi 0, %s202
    %s205 = sphi 0, %s204
    %s219 = sphi 0, %s205
    %s223 = sphi 0, %s223
    %s225 = sphi 0, %s223
    %s226 = sphi 0, %s225
    %s240 = sphi 0, %s226
    %s246 = sphi 0, %s248
    %s249 = sphi 0, %s246
    %s250 = sphi 0, %s249
    %s266 = sphi 0, %s250
  $region4: #{transformer_forward.3} parent=0 // loop_header_branch
    %19 = sbr.rel (%p17) target = $region8
  $region5: #{transformer_forward.3} parent=0 // loop_body
    %s21 = ssub.s32 %s16, 1
    %s22 = ssub.s32 %s16, 2
    %s23 = sadd.s32 %s16, 1
    %s24 = ssub.s32 %s16, %s23
    %p25 = scmp.eq.s32.totalorder %s24, 0
    %s27 = sadd.s32 %s26, 1
    %s28 = scalar_select %p25, %s26, %s27
    %p31 = pneg %p25
    %p32 = scmp.eq.s32.totalorder %s16, 1
    %p33 = por %p31, %p32
    %p34 = scmp.ne.s32.totalorder %s26, %s29
    %p35 = scmp.eq.s32.totalorder %s16, 0
    %p36 = por %p34, %p35
    %p37 = scmp.ne.s32.totalorder %s26, %s29
    %p38 = scmp.eq.s32.totalorder %s21, 1
    %p39 = por %p37, %p38
    %p40 = scmp.ne.s32.totalorder %s29, %s30
    %p41 = scmp.eq.s32.totalorder %s21, 0
    %p42 = por %p40, %p41
    %p43 = scmp.ne.s32.totalorder %s29, %s30
    %p44 = scmp.eq.s32.totalorder %s22, 1
    %p45 = por %p43, %p44
    %p47 = scmp.ne.s32.totalorder %s30, %s46
    %p48 = scmp.eq.s32.totalorder %s22, 0
    %p49 = por %p47, %p48
    %s50 = ssub.s32 %s16, %s23
    %p51 = scmp.eq.s32.totalorder %s50, 0
    %s53 = sadd.s32 %s52, 1
    %s54 = scalar_select %p51, %s52, %s53
    %p57 = pneg %p51
    %p58 = scmp.eq.s32.totalorder %s16, 1
    %p59 = por %p57, %p58
    %p60 = scmp.ne.s32.totalorder %s52, %s55
    %p61 = scmp.eq.s32.totalorder %s16, 0
    %p62 = por %p60, %p61
    %p63 = scmp.ne.s32.totalorder %s52, %s55
    %p64 = scmp.eq.s32.totalorder %s21, 1
    %p65 = por %p63, %p64
    %p66 = scmp.ne.s32.totalorder %s55, %s56
    %p67 = scmp.eq.s32.totalorder %s21, 0
    %p68 = por %p66, %p67
    %p69 = scmp.ne.s32.totalorder %s55, %s56
    %p70 = scmp.eq.s32.totalorder %s22, 1
    %p71 = por %p69, %p70
    %p73 = scmp.ne.s32.totalorder %s56, %s72
    %p74 = scmp.eq.s32.totalorder %s22, 0
    %p75 = por %p73, %p74
    %s77 = sadd.s32 %s76, 1
    %p80 = scmp.eq.s32.totalorder %s16, 1
    %p81 = scmp.ne.s32.totalorder %s76, %s78
    %p82 = scmp.eq.s32.totalorder %s16, 0
    %p83 = por %p81, %p82
    %p84 = scmp.ne.s32.totalorder %s76, %s78
    %p85 = scmp.eq.s32.totalorder %s21, 1
    %p86 = por %p84, %p85
    %p87 = scmp.ne.s32.totalorder %s78, %s79
    %p88 = scmp.eq.s32.totalorder %s21, 0
    %p89 = por %p87, %p88
    %p90 = scmp.ne.s32.totalorder %s78, %s79
    %p91 = scmp.eq.s32.totalorder %s22, 1
    %p92 = por %p90, %p91
    %p94 = scmp.ne.s32.totalorder %s79, %s93
    %p95 = scmp.eq.s32.totalorder %s22, 0
    %p96 = por %p94, %p95
    %s98 = sadd.s32 %s97, 1
    %p101 = scmp.eq.s32.totalorder %s16, 1
    %p102 = scmp.ne.s32.totalorder %s97, %s99
    %p103 = scmp.eq.s32.totalorder %s16, 0
    %p104 = por %p102, %p103
    %p105 = scmp.ne.s32.totalorder %s97, %s99
    %p106 = scmp.eq.s32.totalorder %s21, 1
    %p107 = por %p105, %p106
    %p108 = scmp.ne.s32.totalorder %s99, %s100
    %p109 = scmp.eq.s32.totalorder %s21, 0
    %p110 = por %p108, %p109
    %p111 = scmp.ne.s32.totalorder %s99, %s100
    %p112 = scmp.eq.s32.totalorder %s22, 1
    %p113 = por %p111, %p112
    %p115 = scmp.ne.s32.totalorder %s100, %s114
    %p116 = scmp.eq.s32.totalorder %s22, 0
    %p117 = por %p115, %p116
    %s119 = sadd.s32 %s118, 1
    %p122 = scmp.eq.s32.totalorder %s16, 1
    %p123 = scmp.ne.s32.totalorder %s118, %s120
    %p124 = scmp.eq.s32.totalorder %s16, 0
    %p125 = por %p123, %p124
    %p126 = scmp.ne.s32.totalorder %s118, %s120
    %p127 = scmp.eq.s32.totalorder %s21, 1
    %p128 = por %p126, %p127
    %p129 = scmp.ne.s32.totalorder %s120, %s121
    %p130 = scmp.eq.s32.totalorder %s21, 0
    %p131 = por %p129, %p130
    %p132 = scmp.ne.s32.totalorder %s120, %s121
    %p133 = scmp.eq.s32.totalorder %s22, 1
    %p134 = por %p132, %p133
    %p136 = scmp.ne.s32.totalorder %s121, %s135
    %p137 = scmp.eq.s32.totalorder %s22, 0
    %p138 = por %p136, %p137
    %s140 = sadd.s32 %s139, 1
    %p143 = scmp.eq.s32.totalorder %s16, 1
    %p144 = scmp.ne.s32.totalorder %s139, %s141
    %p145 = scmp.eq.s32.totalorder %s16, 0
    %p146 = por %p144, %p145
    %p147 = scmp.ne.s32.totalorder %s139, %s141
    %p148 = scmp.eq.s32.totalorder %s21, 1
    %p149 = por %p147, %p148
    %p150 = scmp.ne.s32.totalorder %s141, %s142
    %p151 = scmp.eq.s32.totalorder %s21, 0
    %p152 = por %p150, %p151
    %p153 = scmp.ne.s32.totalorder %s141, %s142
    %p154 = scmp.eq.s32.totalorder %s22, 1
    %p155 = por %p153, %p154
    %p157 = scmp.ne.s32.totalorder %s142, %s156
    %p158 = scmp.eq.s32.totalorder %s22, 0
    %p159 = por %p157, %p158
    %s161 = sadd.s32 %s160, 1
    %p164 = scmp.eq.s32.totalorder %s16, 1
    %p165 = scmp.ne.s32.totalorder %s160, %s162
    %p166 = scmp.eq.s32.totalorder %s16, 0
    %p167 = por %p165, %p166
    %p168 = scmp.ne.s32.totalorder %s160, %s162
    %p169 = scmp.eq.s32.totalorder %s21, 1
    %p170 = por %p168, %p169
    %p171 = scmp.ne.s32.totalorder %s162, %s163
    %p172 = scmp.eq.s32.totalorder %s21, 0
    %p173 = por %p171, %p172
    %p174 = scmp.ne.s32.totalorder %s162, %s163
    %p175 = scmp.eq.s32.totalorder %s22, 1
    %p176 = por %p174, %p175
    %p178 = scmp.ne.s32.totalorder %s163, %s177
    %p179 = scmp.eq.s32.totalorder %s22, 0
    %p180 = por %p178, %p179
    %s182 = sadd.s32 %s181, 1
    %p185 = scmp.eq.s32.totalorder %s16, 1
    %p186 = scmp.ne.s32.totalorder %s181, %s183
    %p187 = scmp.eq.s32.totalorder %s16, 0
    %p188 = por %p186, %p187
    %p189 = scmp.ne.s32.totalorder %s181, %s183
    %p190 = scmp.eq.s32.totalorder %s21, 1
    %p191 = por %p189, %p190
    %p192 = scmp.ne.s32.totalorder %s183, %s184
    %p193 = scmp.eq.s32.totalorder %s21, 0
    %p194 = por %p192, %p193
    %p195 = scmp.ne.s32.totalorder %s183, %s184
    %p196 = scmp.eq.s32.totalorder %s22, 1
    %p197 = por %p195, %p196
    %p199 = scmp.ne.s32.totalorder %s184, %s198
    %p200 = scmp.eq.s32.totalorder %s22, 0
    %p201 = por %p199, %p200
    %s203 = sadd.s32 %s202, 1
    %p206 = scmp.eq.s32.totalorder %s16, 1
    %p207 = scmp.ne.s32.totalorder %s202, %s204
    %p208 = scmp.eq.s32.totalorder %s16, 0
    %p209 = por %p207, %p208
    %p210 = scmp.ne.s32.totalorder %s202, %s204
    %p211 = scmp.eq.s32.totalorder %s21, 1
    %p212 = por %p210, %p211
    %p213 = scmp.ne.s32.totalorder %s204, %s205
    %p214 = scmp.eq.s32.totalorder %s21, 0
    %p215 = por %p213, %p214
    %p216 = scmp.ne.s32.totalorder %s204, %s205
    %p217 = scmp.eq.s32.totalorder %s22, 1
    %p218 = por %p216, %p217
    %p220 = scmp.ne.s32.totalorder %s205, %s219
    %p221 = scmp.eq.s32.totalorder %s22, 0
    %p222 = por %p220, %p221
    %s224 = sadd.s32 %s223, 1
    %p227 = scmp.eq.s32.totalorder %s16, 1
    %p228 = scmp.ne.s32.totalorder %s223, %s225
    %p229 = scmp.eq.s32.totalorder %s16, 0
    %p230 = por %p228, %p229
    %p231 = scmp.ne.s32.totalorder %s223, %s225
    %p232 = scmp.eq.s32.totalorder %s21, 1
    %p233 = por %p231, %p232
    %p234 = scmp.ne.s32.totalorder %s225, %s226
    %p235 = scmp.eq.s32.totalorder %s21, 0
    %p236 = por %p234, %p235
    %p237 = scmp.ne.s32.totalorder %s225, %s226
    %p238 = scmp.eq.s32.totalorder %s22, 1
    %p239 = por %p237, %p238
    %p241 = scmp.ne.s32.totalorder %s226, %s240
    %p242 = scmp.eq.s32.totalorder %s22, 0
    %p243 = por %p241, %p242
    %s244 = ssub.s32 %s16, %s23
    %p245 = scmp.eq.s32.totalorder %s244, 0
    %s247 = sadd.s32 %s246, 1
    %s248 = scalar_select %p245, %s246, %s247
    %p251 = pneg %p245
    %p252 = scmp.eq.s32.totalorder %s16, 1
    %p253 = por %p251, %p252
    %p254 = scmp.ne.s32.totalorder %s246, %s249
    %p255 = scmp.eq.s32.totalorder %s16, 0
    %p256 = por %p254, %p255
    %p257 = scmp.ne.s32.totalorder %s246, %s249
    %p258 = scmp.eq.s32.totalorder %s21, 1
    %p259 = por %p257, %p258
    %p260 = scmp.ne.s32.totalorder %s249, %s250
    %p261 = scmp.eq.s32.totalorder %s21, 0
    %p262 = por %p260, %p261
    %p263 = scmp.ne.s32.totalorder %s249, %s250
    %p264 = scmp.eq.s32.totalorder %s22, 1
    %p265 = por %p263, %p264
    %p267 = scmp.ne.s32.totalorder %s250, %s266
    %p268 = scmp.eq.s32.totalorder %s22, 0
    %p269 = por %p267, %p268
    %p270 = scmp.le.s32.totalorder 1, %s16
    %p271 = scmp.lt.s32.totalorder %s16, 3
    %p272 = pnand %p270, %p271
    %p273 = pneg %p272
    // Predicated region
    $region9: #{transformer_forward.3} parent=5 // pred_check
      _
    $region10: #{transformer_forward.3} parent=5 // pred_check_branch
      %275 = sbr.rel (%p272) target = $region12
    $region11: #{transformer_forward.3} parent=5 // pred_region
      %s276 = ssub.s32 %s16, 1
      // Predicated region
      $region13: #{transformer_forward.3} parent=11 // pred_check
        %p277 = pneg %p89
      $region14: #{transformer_forward.3} parent=11 // pred_check_branch
        %279 = sbr.rel (%p277) target = $region16
      $region15: #{transformer_forward.3} parent=11 // pred_region
        _
      $region16: #{transformer_forward.3} parent=11 // pred_fallthru
        _
      // Predicated region
      $region17: #{transformer_forward.3} parent=11 // pred_check
        %p280 = pneg %p110
      $region18: #{transformer_forward.3} parent=11 // pred_check_branch
        %282 = sbr.rel (%p280) target = $region20
      $region19: #{transformer_forward.3} parent=11 // pred_region
        _
      $region20: #{transformer_forward.3} parent=11 // pred_fallthru
        _
      // Predicated region
      $region21: #{transformer_forward.3} parent=11 // pred_check
        %p283 = pneg %p131
      $region22: #{transformer_forward.3} parent=11 // pred_check_branch
        %285 = sbr.rel (%p283) target = $region24
      $region23: #{transformer_forward.3} parent=11 // pred_region
        _
      $region24: #{transformer_forward.3} parent=11 // pred_fallthru
        _
      // Predicated region
      $region25: #{transformer_forward.3} parent=11 // pred_check
        %p286 = pneg %p152
      $region26: #{transformer_forward.3} parent=11 // pred_check_branch
        %288 = sbr.rel (%p286) target = $region28
      $region27: #{transformer_forward.3} parent=11 // pred_region
        _
      $region28: #{transformer_forward.3} parent=11 // pred_fallthru
        _
      // Predicated region
      $region29: #{transformer_forward.3} parent=11 // pred_check
        %p289 = pneg %p173
      $region30: #{transformer_forward.3} parent=11 // pred_check_branch
        %291 = sbr.rel (%p289) target = $region32
      $region31: #{transformer_forward.3} parent=11 // pred_region
        _
      $region32: #{transformer_forward.3} parent=11 // pred_fallthru
        _
      // Predicated region
      $region33: #{transformer_forward.3} parent=11 // pred_check
        %p292 = pneg %p194
      $region34: #{transformer_forward.3} parent=11 // pred_check_branch
        %294 = sbr.rel (%p292) target = $region36
      $region35: #{transformer_forward.3} parent=11 // pred_region
        _
      $region36: #{transformer_forward.3} parent=11 // pred_fallthru
        _
      // Predicated region
      $region37: #{transformer_forward.3} parent=11 // pred_check
        %p295 = pneg %p215
      $region38: #{transformer_forward.3} parent=11 // pred_check_branch
        %297 = sbr.rel (%p295) target = $region40
      $region39: #{transformer_forward.3} parent=11 // pred_region
        _
      $region40: #{transformer_forward.3} parent=11 // pred_fallthru
        _
      // Predicated region
      $region41: #{transformer_forward.3} parent=11 // pred_check
        %p298 = pneg %p236
      $region42: #{transformer_forward.3} parent=11 // pred_check_branch
        %300 = sbr.rel (%p298) target = $region44
      $region43: #{transformer_forward.3} parent=11 // pred_region
        _
      $region44: #{transformer_forward.3} parent=11 // pred_fallthru
        _
    $region12: #{transformer_forward.3} parent=5 // pred_fallthru
      _
    %p301 = scmp.lt.s32.totalorder %s16, 2
    // Predicated region
    $region45: #{transformer_forward.3} parent=5 // pred_check
      %p302 = pneg %p301
    $region46: #{transformer_forward.3} parent=5 // pred_check_branch
      %304 = sbr.rel (%p302) target = $region48
    $region47: #{transformer_forward.3} parent=5 // pred_region
      // Predicated region
      $region49: #{transformer_forward.3} parent=47 // pred_check
        %p305 = pneg %p36
      $region50: #{transformer_forward.3} parent=47 // pred_check_branch
        %307 = sbr.rel (%p305) target = $region52
      $region51: #{transformer_forward.3} parent=47 // pred_region
        %p308 = scmp.lt.s32.totalorder %s16, 1
        %s309 = scalar_select %p308, %s16, 1
        %s310 = smul.addr %s309, 8
        %s311 = smul.addr %s310, 4
        %s312 = scalar_lea.vmem %s0, %s311
      $region52: #{transformer_forward.3} parent=47 // pred_fallthru
        _
      // Predicated region
      $region53: #{transformer_forward.3} parent=47 // pred_check
        %p313 = pneg %p62
      $region54: #{transformer_forward.3} parent=47 // pred_check_branch
        %315 = sbr.rel (%p313) target = $region56
      $region55: #{transformer_forward.3} parent=47 // pred_region
        %p316 = scmp.lt.s32.totalorder %s16, 1
        %s317 = scalar_select %p316, %s16, 1
        %s318 = smul.addr %s317, 400
        %s319 = smul.addr %s318, 4
        %s320 = scalar_lea.vmem %s1, %s319
      $region56: #{transformer_forward.3} parent=47 // pred_fallthru
        _
    $region48: #{transformer_forward.3} parent=5 // pred_fallthru
      _
    %p321 = scmp.le.s32.totalorder 1, %s16
    %p322 = scmp.lt.s32.totalorder %s16, 3
    %p323 = pnand %p321, %p322
    %p324 = pneg %p323
    // Predicated region
    $region57: #{transformer_forward.3} parent=5 // pred_check
      _
    $region58: #{transformer_forward.3} parent=5 // pred_check_branch
      %326 = sbr.rel (%p323) target = $region60
    $region59: #{transformer_forward.3} parent=5 // pred_region
      %s327 = ssub.s32 %s16, 1
      %p328 = scmp.lt.s32.totalorder %s21, 1
      %s329 = scalar_select %p328, %s21, 1
      %s330 = smul.addr %s329, 8
      %s331 = smul.addr %s330, 4
      %s332 = scalar_lea.vmem %s0, %s331
      %p333 = pneg %p42
      %p334 = pneg %p39
      %p335 = scmp.lt.s32.totalorder %s21, 1
      %s336 = scalar_select %p335, %s21, 1
      %s337 = smul.addr %s336, 400
      %s338 = smul.addr %s337, 4
      %s339 = scalar_lea.vmem %s1, %s338
      %p340 = pneg %p68
      %p341 = pneg %p65
      %p342 = pneg %p89
      %p343 = pneg %p86
      %p344 = pneg %p110
      %p345 = pneg %p107
      %p346 = pneg %p131
      %p347 = pneg %p128
      %p348 = pneg %p152
      %p349 = pneg %p149
      %p350 = pneg %p173
      %p351 = pneg %p170
      %p352 = pneg %p194
      %p353 = pneg %p191
      %p354 = pneg %p215
      %p355 = pneg %p212
      %p356 = pneg %p236
      %p357 = pneg %p233
      %p358 = pneg %p262
      %p359 = pneg %p259
      %p360 = scmp.lt.s32.totalorder %s21, 1
      %s361 = scalar_select %p360, %s21, 1
      %s362 = smul.addr %s361, 8
      %s363 = smul.addr %s362, 8
      %s364 = scalar_lea.vmem %s10, %s363
      %p365 = scmp.lt.s32.totalorder %s21, 1
      %s366 = scalar_select %p365, %s21, 1
      %s367 = smul.addr %s366, 8
      %s368 = smul.addr %s367, 4
      %s369 = scalar_lea.vmem %s0, %s368
      %p370 = scmp.lt.s32.totalorder %s21, 1
      %s371 = scalar_select %p370, %s21, 1
      %s372 = smul.addr %s371, 400
      %s373 = smul.addr %s372, 4
      %s374 = scalar_lea.vmem %s1, %s373
      %p375 = scmp.lt.s32.totalorder %s21, 1
      %s376 = scalar_select %p375, %s21, 1
      %s377 = smul.addr %s376, 8
      %s378 = smul.addr %s377, 8
      %s379 = scalar_lea.vmem %s10, %s378
      %v381 = vld [vmem:[%s2] sm:$0xf]
      %v382 = vld [vmem:[%s2 + $0x4] sm:$0xf]
      %v383 = vld [vmem:[%s2 + $0x8] sm:$0xf]
      %v384 = vld [vmem:[%s2 + $0xc] sm:$0xf]
      %v385 = vld [vmem:[%s369] sm:$0xff]
      %v386 = vld [vmem:[%s369 + $0x8] sm:$0xff]
      %v387 = vld [vmem:[%s369 + $0x10] sm:$0xff]
      %v388 = vld [vmem:[%s369 + $0x18] sm:$0xff]
      %v393 = vunpack.c.l.b16 %v381
      %v394 = vunpack.c.l.b16 %v382
      %v395 = vunpack.c.l.b16 %v383
      %v396 = vunpack.c.l.b16 %v384
      %v397 = vpack.c.b16 %v394, %v393
      %v398 = vpack.c.b16 %v396, %v395
      %v403 = vunpack.c.l.b16 %v385
      %v404 = vunpack.c.h.b16 %v385
      %v405 = vunpack.c.l.b16 %v386
      %v406 = vunpack.c.h.b16 %v386
      %v407 = vunpack.c.l.b16 %v387
      %v408 = vunpack.c.h.b16 %v387
      %v409 = vunpack.c.l.b16 %v388
      %v410 = vunpack.c.h.b16 %v388
      %v411 = vpack.c.b16 %v405, %v403
      %v412 = vpack.c.b16 %v406, %v404
      %v413 = vpack.c.b16 %v409, %v407
      %v414 = vpack.c.b16 %v410, %v408
      %vm419 = vcmask 261120
      %v421 = vsel %vm419, %v397, 0
      %v424 = vsel %vm419, %v398, 0
      %426 = vmatprep.subr.bf16.mxu0 %v412
      %427 = vmatpush1.bf16.msra.mxu0 %v411
      %428 = vmatprep.subr.bf16.mxu0 %v414
      %429 = vmatpush1.bf16.msra.mxu0 %v413
      %430 = vmatprep.subr.bf16.mxu0 0
      %431 = vmatpush1.bf16.msra.mxu0 0
      %432 = vmatprep.subr.bf16.mxu0 0
      %433 = vmatpush1.bf16.msra.mxu0 0
      %434 = vmatprep.subr.bf16.mxu0 0
      %435 = vmatpush1.bf16.msra.mxu0 0
      %436 = vmatprep.subr.bf16.mxu0 0
      %437 = vmatpush1.bf16.msra.mxu0 0
      %438 = vmatprep.subr.bf16.mxu0 0
      %439 = vmatpush1.bf16.msra.mxu0 0
      %440 = vmatprep.subr.bf16.mxu0 0
      %441 = vmatpush1.bf16.msra.mxu0 0
      %442 = vmatprep.subr.bf16.mxu0 0
      %443 = vmatpush1.bf16.msra.mxu0 0
      %444 = vmatprep.subr.bf16.mxu0 0
      %445 = vmatpush1.bf16.msra.mxu0 0
      %446 = vmatprep.subr.bf16.mxu0 0
      %447 = vmatpush1.bf16.msra.mxu0 0
      %448 = vmatprep.subr.bf16.mxu0 0
      %449 = vmatpush1.bf16.msra.mxu0 0
      %450 = vmatprep.subr.bf16.mxu0 0
      %451 = vmatpush1.bf16.msra.mxu0 0
      %452 = vmatprep.subr.bf16.mxu0 0
      %453 = vmatpush1.bf16.msra.mxu0 0
      %454 = vmatprep.subr.bf16.mxu0 0
      %455 = vmatpush1.bf16.msra.mxu0 0
      %456 = vmatprep.subr.bf16.mxu0 0
      %457 = vmatpush1.bf16.msra.mxu0 0
      %458 = vmatprep.mubr.bf16.mxu0 0
      %459 = vmatmul.mubr.bf16.gmra.mrb[0].mxu0 %v421
      %v460 = vpop.f32.mrb[0].mxu0
      %v461 = vadd.f32 0.0, %v460
      %v462 = vpop.f32.mrb[0].mxu0
      %v463 = vadd.f32 0.0, %v462
      %v464 = vpop.f32.mrb[0].mxu0
      %v465 = vadd.f32 0.0, %v464
      %v466 = vpop.f32.mrb[0].mxu0
      %v467 = vadd.f32 0.0, %v466
      %468 = vmatprep.mubr.bf16.mxu0 0
      %469 = vmatmul.mubr.bf16.gmra.mrb[0].mxu0 %v424
      %v470 = vpop.f32.mrb[0].mxu0
      %v471 = vadd.f32 0.0, %v470
      %v472 = vpop.f32.mrb[0].mxu0
      %v473 = vadd.f32 0.0, %v472
      %v474 = vpop.f32.mrb[0].mxu0
      %v475 = vadd.f32 0.0, %v474
      %v476 = vpop.f32.mrb[0].mxu0
      %v477 = vadd.f32 0.0, %v476
      %478 = vdwg.mxu0
      %v479 = vld [vmem:[%s374] sm:$0xff]
      %v480 = vld [vmem:[%s374 + $0x40] sm:$0xff]
      %v481 = vld [vmem:[%s374 + $0x80] sm:$0xff]
      %v482 = vld [vmem:[%s374 + $0xc0] sm:$0xff]
      %v483 = vld [vmem:[%s374 + $0x100] sm:$0xff]
      %v484 = vld [vmem:[%s374 + $0x140] sm:$0xff]
      %v485 = vld [vmem:[%s374 + $0x180] sm:$0xff]
      %v486 = vld [vmem:[%s374 + $0x1c0] sm:$0xff]
      %v487 = vld [vmem:[%s374 + $0x200] sm:$0xff]
      %v488 = vld [vmem:[%s374 + $0x240] sm:$0xff]
      %v489 = vld [vmem:[%s374 + $0x280] sm:$0xff]
      %v490 = vld [vmem:[%s374 + $0x2c0] sm:$0xff]
      %v491 = vld [vmem:[%s374 + $0x300] sm:$0xff]
      %v492 = vld [vmem:[%s374 + $0x340] sm:$0xff]
      %v493 = vld [vmem:[%s374 + $0x380] sm:$0xff]
      %v494 = vld [vmem:[%s374 + $0x3c0] sm:$0xff]
      %v495 = vld [vmem:[%s374 + $0x400] sm:$0xff]
      %v496 = vld [vmem:[%s374 + $0x440] sm:$0xff]
      %v497 = vld [vmem:[%s374 + $0x480] sm:$0xff]
      %v498 = vld [vmem:[%s374 + $0x4c0] sm:$0xff]
      %v499 = vld [vmem:[%s374 + $0x500] sm:$0xff]
      %v500 = vld [vmem:[%s374 + $0x540] sm:$0xff]
      %v501 = vld [vmem:[%s374 + $0x580] sm:$0xff]
      %v502 = vld [vmem:[%s374 + $0x5c0] sm:$0xff]
      %v503 = vld [vmem:[%s374 + $0x600] sm:$0xff]
      %v504 = vunpack.c.l.bf16 %v479
      %v505 = vunpack.c.h.bf16 %v479
      %v506 = vunpack.c.l.bf16 %v480
      %v507 = vunpack.c.h.bf16 %v480
      %v508 = vunpack.c.l.bf16 %v481
      %v509 = vunpack.c.h.bf16 %v481
      %v510 = vunpack.c.l.bf16 %v482
      %v511 = vunpack.c.h.bf16 %v482
      %v512 = vunpack.c.l.bf16 %v483
      %v513 = vunpack.c.h.bf16 %v483
      %v514 = vunpack.c.l.bf16 %v484
      %v515 = vunpack.c.h.bf16 %v484
      %v516 = vunpack.c.l.bf16 %v485
      %v517 = vunpack.c.h.bf16 %v485
      %v518 = vunpack.c.l.bf16 %v486
      %v519 = vunpack.c.h.bf16 %v486
      %v520 = vunpack.c.l.bf16 %v487
      %v521 = vunpack.c.h.bf16 %v487
      %v522 = vunpack.c.l.bf16 %v488
      %v523 = vunpack.c.h.bf16 %v488
      %v524 = vunpack.c.l.bf16 %v489
      %v525 = vunpack.c.h.bf16 %v489
      %v526 = vunpack.c.l.bf16 %v490
      %v527 = vunpack.c.h.bf16 %v490
      %v528 = vunpack.c.l.bf16 %v491
      %v529 = vunpack.c.h.bf16 %v491
      %v530 = vunpack.c.l.bf16 %v492
      %v531 = vunpack.c.h.bf16 %v492
      %v532 = vunpack.c.l.bf16 %v493
      %v533 = vunpack.c.h.bf16 %v493
      %v534 = vunpack.c.l.bf16 %v494
      %v535 = vunpack.c.h.bf16 %v494
      %v536 = vunpack.c.l.bf16 %v495
      %v537 = vunpack.c.h.bf16 %v495
      %v538 = vunpack.c.l.bf16 %v496
      %v539 = vunpack.c.h.bf16 %v496
      %v540 = vunpack.c.l.bf16 %v497
      %v541 = vunpack.c.h.bf16 %v497
      %v542 = vunpack.c.l.bf16 %v498
      %v543 = vunpack.c.h.bf16 %v498
      %v544 = vunpack.c.l.bf16 %v499
      %v545 = vunpack.c.h.bf16 %v499
      %v546 = vunpack.c.l.bf16 %v500
      %v547 = vunpack.c.h.bf16 %v500
      %v548 = vunpack.c.l.bf16 %v501
      %v549 = vunpack.c.h.bf16 %v501
      %v550 = vunpack.c.l.bf16 %v502
      %v551 = vunpack.c.h.bf16 %v502
      %v552 = vunpack.c.l.bf16 %v503
      %v553 = vunpack.c.h.bf16 %v503
      %v554 = vmul.f32 %v461, %v504
      %v555 = vmul.f32 %v463, %v505
      %v556 = vmul.f32 %v461, %v506
      %v557 = vmul.f32 %v463, %v507
      %v558 = vmul.f32 %v461, %v508
      %v559 = vmul.f32 %v463, %v509
      %v560 = vmul.f32 %v461, %v510
      %v561 = vmul.f32 %v463, %v511
      %v562 = vmul.f32 %v461, %v512
      %v563 = vmul.f32 %v463, %v513
      %v564 = vmul.f32 %v461, %v514
      %v565 = vmul.f32 %v463, %v515
      %v566 = vmul.f32 %v461, %v516
      %v567 = vmul.f32 %v463, %v517
      %v568 = vmul.f32 %v461, %v518
      %v569 = vmul.f32 %v463, %v519
      %v570 = vmul.f32 %v461, %v520
      %v571 = vmul.f32 %v463, %v521
      %v572 = vmul.f32 %v461, %v522
      %v573 = vmul.f32 %v463, %v523
      %v574 = vmul.f32 %v461, %v524
      %v575 = vmul.f32 %v463, %v525
      %v576 = vmul.f32 %v461, %v526
      %v577 = vmul.f32 %v463, %v527
      %v578 = vmul.f32 %v461, %v528
      %v579 = vmul.f32 %v463, %v529
      %v580 = vmul.f32 %v461, %v530
      %v581 = vmul.f32 %v463, %v531
      %v582 = vmul.f32 %v461, %v532
      %v583 = vmul.f32 %v463, %v533
      %v584 = vmul.f32 %v461, %v534
      %v585 = vmul.f32 %v463, %v535
      %v586 = vmul.f32 %v461, %v536
      %v587 = vmul.f32 %v463, %v537
      %v588 = vmul.f32 %v461, %v538
      %v589 = vmul.f32 %v463, %v539
      %v590 = vmul.f32 %v461, %v540
      %v591 = vmul.f32 %v463, %v541
      %v592 = vmul.f32 %v461, %v542
      %v593 = vmul.f32 %v463, %v543
      %v594 = vmul.f32 %v461, %v544
      %v595 = vmul.f32 %v463, %v545
      %v596 = vmul.f32 %v461, %v546
      %v597 = vmul.f32 %v463, %v547
      %v598 = vmul.f32 %v461, %v548
      %v599 = vmul.f32 %v463, %v549
      %v600 = vmul.f32 %v461, %v550
      %v601 = vmul.f32 %v463, %v551
      %v602 = vmul.f32 %v461, %v552
      %v603 = vmul.f32 %v463, %v553
      %v604 = vld [vmem:[%s374 + $0x8] sm:$0xff]
      %v605 = vld [vmem:[%s374 + $0x48] sm:$0xff]
      %v606 = vld [vmem:[%s374 + $0x88] sm:$0xff]
      %v607 = vld [vmem:[%s374 + $0xc8] sm:$0xff]
      %v608 = vld [vmem:[%s374 + $0x108] sm:$0xff]
      %v609 = vld [vmem:[%s374 + $0x148] sm:$0xff]
      %v610 = vld [vmem:[%s374 + $0x188] sm:$0xff]
      %v611 = vld [vmem:[%s374 + $0x1c8] sm:$0xff]
      %v612 = vld [vmem:[%s374 + $0x208] sm:$0xff]
      %v613 = vld [vmem:[%s374 + $0x248] sm:$0xff]
      %v614 = vld [vmem:[%s374 + $0x288] sm:$0xff]
      %v615 = vld [vmem:[%s374 + $0x2c8] sm:$0xff]
      %v616 = vld [vmem:[%s374 + $0x308] sm:$0xff]
      %v617 = vld [vmem:[%s374 + $0x348] sm:$0xff]
      %v618 = vld [vmem:[%s374 + $0x388] sm:$0xff]
      %v619 = vld [vmem:[%s374 + $0x3c8] sm:$0xff]
      %v620 = vld [vmem:[%s374 + $0x408] sm:$0xff]
      %v621 = vld [vmem:[%s374 + $0x448] sm:$0xff]
      %v622 = vld [vmem:[%s374 + $0x488] sm:$0xff]
      %v623 = vld [vmem:[%s374 + $0x4c8] sm:$0xff]
      %v624 = vld [vmem:[%s374 + $0x508] sm:$0xff]
      %v625 = vld [vmem:[%s374 + $0x548] sm:$0xff]
      %v626 = vld [vmem:[%s374 + $0x588] sm:$0xff]
      %v627 = vld [vmem:[%s374 + $0x5c8] sm:$0xff]
      %v628 = vld [vmem:[%s374 + $0x608] sm:$0xff]
      %v629 = vunpack.c.l.bf16 %v604
      %v630 = vunpack.c.h.bf16 %v604
      %v631 = vunpack.c.l.bf16 %v605
      %v632 = vunpack.c.h.bf16 %v605
      %v633 = vunpack.c.l.bf16 %v606
      %v634 = vunpack.c.h.bf16 %v606
      %v635 = vunpack.c.l.bf16 %v607
      %v636 = vunpack.c.h.bf16 %v607
      %v637 = vunpack.c.l.bf16 %v608
      %v638 = vunpack.c.h.bf16 %v608
      %v639 = vunpack.c.l.bf16 %v609
      %v640 = vunpack.c.h.bf16 %v609
      %v641 = vunpack.c.l.bf16 %v610
      %v642 = vunpack.c.h.bf16 %v610
      %v643 = vunpack.c.l.bf16 %v611
      %v644 = vunpack.c.h.bf16 %v611
      %v645 = vunpack.c.l.bf16 %v612
      %v646 = vunpack.c.h.bf16 %v612
      %v647 = vunpack.c.l.bf16 %v613
      %v648 = vunpack.c.h.bf16 %v613
      %v649 = vunpack.c.l.bf16 %v614
      %v650 = vunpack.c.h.bf16 %v614
      %v651 = vunpack.c.l.bf16 %v615
      %v652 = vunpack.c.h.bf16 %v615
      %v653 = vunpack.c.l.bf16 %v616
      %v654 = vunpack.c.h.bf16 %v616
      %v655 = vunpack.c.l.bf16 %v617
      %v656 = vunpack.c.h.bf16 %v617
      %v657 = vunpack.c.l.bf16 %v618
      %v658 = vunpack.c.h.bf16 %v618
      %v659 = vunpack.c.l.bf16 %v619
      %v660 = vunpack.c.h.bf16 %v619
      %v661 = vunpack.c.l.bf16 %v620
      %v662 = vunpack.c.h.bf16 %v620
      %v663 = vunpack.c.l.bf16 %v621
      %v664 = vunpack.c.h.bf16 %v621
      %v665 = vunpack.c.l.bf16 %v622
      %v666 = vunpack.c.h.bf16 %v622
      %v667 = vunpack.c.l.bf16 %v623
      %v668 = vunpack.c.h.bf16 %v623
      %v669 = vunpack.c.l.bf16 %v624
      %v670 = vunpack.c.h.bf16 %v624
      %v671 = vunpack.c.l.bf16 %v625
      %v672 = vunpack.c.h.bf16 %v625
      %v673 = vunpack.c.l.bf16 %v626
      %v674 = vunpack.c.h.bf16 %v626
      %v675 = vunpack.c.l.bf16 %v627
      %v676 = vunpack.c.h.bf16 %v627
      %v677 = vunpack.c.l.bf16 %v628
      %v678 = vunpack.c.h.bf16 %v628
      %v679 = vmul.f32 %v465, %v629
      %v680 = vmul.f32 %v467, %v630
      %v681 = vmul.f32 %v465, %v631
      %v682 = vmul.f32 %v467, %v632
      %v683 = vmul.f32 %v465, %v633
      %v684 = vmul.f32 %v467, %v634
      %v685 = vmul.f32 %v465, %v635
      %v686 = vmul.f32 %v467, %v636
      %v687 = vmul.f32 %v465, %v637
      %v688 = vmul.f32 %v467, %v638
      %v689 = vmul.f32 %v465, %v639
      %v690 = vmul.f32 %v467, %v640
      %v691 = vmul.f32 %v465, %v641
      %v692 = vmul.f32 %v467, %v642
      %v693 = vmul.f32 %v465, %v643
      %v694 = vmul.f32 %v467, %v644
      %v695 = vmul.f32 %v465, %v645
      %v696 = vmul.f32 %v467, %v646
      %v697 = vmul.f32 %v465, %v647
      %v698 = vmul.f32 %v467, %v648
      %v699 = vmul.f32 %v465, %v649
      %v700 = vmul.f32 %v467, %v650
      %v701 = vmul.f32 %v465, %v651
      %v702 = vmul.f32 %v467, %v652
      %v703 = vmul.f32 %v465, %v653
      %v704 = vmul.f32 %v467, %v654
      %v705 = vmul.f32 %v465, %v655
      %v706 = vmul.f32 %v467, %v656
      %v707 = vmul.f32 %v465, %v657
      %v708 = vmul.f32 %v467, %v658
      %v709 = vmul.f32 %v465, %v659
      %v710 = vmul.f32 %v467, %v660
      %v711 = vmul.f32 %v465, %v661
      %v712 = vmul.f32 %v467, %v662
      %v713 = vmul.f32 %v465, %v663
      %v714 = vmul.f32 %v467, %v664
      %v715 = vmul.f32 %v465, %v665
      %v716 = vmul.f32 %v467, %v666
      %v717 = vmul.f32 %v465, %v667
      %v718 = vmul.f32 %v467, %v668
      %v719 = vmul.f32 %v465, %v669
      %v720 = vmul.f32 %v467, %v670
      %v721 = vmul.f32 %v465, %v671
      %v722 = vmul.f32 %v467, %v672
      %v723 = vmul.f32 %v465, %v673
      %v724 = vmul.f32 %v467, %v674
      %v725 = vmul.f32 %v465, %v675
      %v726 = vmul.f32 %v467, %v676
      %v727 = vmul.f32 %v465, %v677
      %v728 = vmul.f32 %v467, %v678
      %v729 = vadd.f32 %v554, %v679
      %v730 = vadd.f32 %v555, %v680
      %v731 = vadd.f32 %v556, %v681
      %v732 = vadd.f32 %v557, %v682
      %v733 = vadd.f32 %v558, %v683
      %v734 = vadd.f32 %v559, %v684
      %v735 = vadd.f32 %v560, %v685
      %v736 = vadd.f32 %v561, %v686
      %v737 = vadd.f32 %v562, %v687
      %v738 = vadd.f32 %v563, %v688
      %v739 = vadd.f32 %v564, %v689
      %v740 = vadd.f32 %v565, %v690
      %v741 = vadd.f32 %v566, %v691
      %v742 = vadd.f32 %v567, %v692
      %v743 = vadd.f32 %v568, %v693
      %v744 = vadd.f32 %v569, %v694
      %v745 = vadd.f32 %v570, %v695
      %v746 = vadd.f32 %v571, %v696
      %v747 = vadd.f32 %v572, %v697
      %v748 = vadd.f32 %v573, %v698
      %v749 = vadd.f32 %v574, %v699
      %v750 = vadd.f32 %v575, %v700
      %v751 = vadd.f32 %v576, %v701
      %v752 = vadd.f32 %v577, %v702
      %v753 = vadd.f32 %v578, %v703
      %v754 = vadd.f32 %v579, %v704
      %v755 = vadd.f32 %v580, %v705
      %v756 = vadd.f32 %v581, %v706
      %v757 = vadd.f32 %v582, %v707
      %v758 = vadd.f32 %v583, %v708
      %v759 = vadd.f32 %v584, %v709
      %v760 = vadd.f32 %v585, %v710
      %v761 = vadd.f32 %v586, %v711
      %v762 = vadd.f32 %v587, %v712
      %v763 = vadd.f32 %v588, %v713
      %v764 = vadd.f32 %v589, %v714
      %v765 = vadd.f32 %v590, %v715
      %v766 = vadd.f32 %v591, %v716
      %v767 = vadd.f32 %v592, %v717
      %v768 = vadd.f32 %v593, %v718
      %v769 = vadd.f32 %v594, %v719
      %v770 = vadd.f32 %v595, %v720
      %v771 = vadd.f32 %v596, %v721
      %v772 = vadd.f32 %v597, %v722
      %v773 = vadd.f32 %v598, %v723
      %v774 = vadd.f32 %v599, %v724
      %v775 = vadd.f32 %v600, %v725
      %v776 = vadd.f32 %v601, %v726
      %v777 = vadd.f32 %v602, %v727
      %v778 = vadd.f32 %v603, %v728
      %v779 = vld [vmem:[%s374 + $0x10] sm:$0xff]
      %v780 = vld [vmem:[%s374 + $0x50] sm:$0xff]
      %v781 = vld [vmem:[%s374 + $0x90] sm:$0xff]
      %v782 = vld [vmem:[%s374 + $0xd0] sm:$0xff]
      %v783 = vld [vmem:[%s374 + $0x110] sm:$0xff]
      %v784 = vld [vmem:[%s374 + $0x150] sm:$0xff]
      %v785 = vld [vmem:[%s374 + $0x190] sm:$0xff]
      %v786 = vld [vmem:[%s374 + $0x1d0] sm:$0xff]
      %v787 = vld [vmem:[%s374 + $0x210] sm:$0xff]
      %v788 = vld [vmem:[%s374 + $0x250] sm:$0xff]
      %v789 = vld [vmem:[%s374 + $0x290] sm:$0xff]
      %v790 = vld [vmem:[%s374 + $0x2d0] sm:$0xff]
      %v791 = vld [vmem:[%s374 + $0x310] sm:$0xff]
      %v792 = vld [vmem:[%s374 + $0x350] sm:$0xff]
      %v793 = vld [vmem:[%s374 + $0x390] sm:$0xff]
      %v794 = vld [vmem:[%s374 + $0x3d0] sm:$0xff]
      %v795 = vld [vmem:[%s374 + $0x410] sm:$0xff]
      %v796 = vld [vmem:[%s374 + $0x450] sm:$0xff]
      %v797 = vld [vmem:[%s374 + $0x490] sm:$0xff]
      %v798 = vld [vmem:[%s374 + $0x4d0] sm:$0xff]
      %v799 = vld [vmem:[%s374 + $0x510] sm:$0xff]
      %v800 = vld [vmem:[%s374 + $0x550] sm:$0xff]
      %v801 = vld [vmem:[%s374 + $0x590] sm:$0xff]
      %v802 = vld [vmem:[%s374 + $0x5d0] sm:$0xff]
      %v803 = vld [vmem:[%s374 + $0x610] sm:$0xff]
      %v804 = vunpack.c.l.bf16 %v779
      %v805 = vunpack.c.h.bf16 %v779
      %v806 = vunpack.c.l.bf16 %v780
      %v807 = vunpack.c.h.bf16 %v780
      %v808 = vunpack.c.l.bf16 %v781
      %v809 = vunpack.c.h.bf16 %v781
      %v810 = vunpack.c.l.bf16 %v782
      %v811 = vunpack.c.h.bf16 %v782
      %v812 = vunpack.c.l.bf16 %v783
      %v813 = vunpack.c.h.bf16 %v783
      %v814 = vunpack.c.l.bf16 %v784
      %v815 = vunpack.c.h.bf16 %v784
      %v816 = vunpack.c.l.bf16 %v785
      %v817 = vunpack.c.h.bf16 %v785
      %v818 = vunpack.c.l.bf16 %v786
      %v819 = vunpack.c.h.bf16 %v786
      %v820 = vunpack.c.l.bf16 %v787
      %v821 = vunpack.c.h.bf16 %v787
      %v822 = vunpack.c.l.bf16 %v788
      %v823 = vunpack.c.h.bf16 %v788
      %v824 = vunpack.c.l.bf16 %v789
      %v825 = vunpack.c.h.bf16 %v789
      %v826 = vunpack.c.l.bf16 %v790
      %v827 = vunpack.c.h.bf16 %v790
      %v828 = vunpack.c.l.bf16 %v791
      %v829 = vunpack.c.h.bf16 %v791
      %v830 = vunpack.c.l.bf16 %v792
      %v831 = vunpack.c.h.bf16 %v792
      %v832 = vunpack.c.l.bf16 %v793
      %v833 = vunpack.c.h.bf16 %v793
      %v834 = vunpack.c.l.bf16 %v794
      %v835 = vunpack.c.h.bf16 %v794
      %v836 = vunpack.c.l.bf16 %v795
      %v837 = vunpack.c.h.bf16 %v795
      %v838 = vunpack.c.l.bf16 %v796
      %v839 = vunpack.c.h.bf16 %v796
      %v840 = vunpack.c.l.bf16 %v797
      %v841 = vunpack.c.h.bf16 %v797
      %v842 = vunpack.c.l.bf16 %v798
      %v843 = vunpack.c.h.bf16 %v798
      %v844 = vunpack.c.l.bf16 %v799
      %v845 = vunpack.c.h.bf16 %v799
      %v846 = vunpack.c.l.bf16 %v800
      %v847 = vunpack.c.h.bf16 %v800
      %v848 = vunpack.c.l.bf16 %v801
      %v849 = vunpack.c.h.bf16 %v801
      %v850 = vunpack.c.l.bf16 %v802
      %v851 = vunpack.c.h.bf16 %v802
      %v852 = vunpack.c.l.bf16 %v803
      %v853 = vunpack.c.h.bf16 %v803
      %v854 = vmul.f32 %v471, %v804
      %v855 = vmul.f32 %v473, %v805
      %v856 = vmul.f32 %v471, %v806
      %v857 = vmul.f32 %v473, %v807
      %v858 = vmul.f32 %v471, %v808
      %v859 = vmul.f32 %v473, %v809
      %v860 = vmul.f32 %v471, %v810
      %v861 = vmul.f32 %v473, %v811
      %v862 = vmul.f32 %v471, %v812
      %v863 = vmul.f32 %v473, %v813
      %v864 = vmul.f32 %v471, %v814
      %v865 = vmul.f32 %v473, %v815
      %v866 = vmul.f32 %v471, %v816
      %v867 = vmul.f32 %v473, %v817
      %v868 = vmul.f32 %v471, %v818
      %v869 = vmul.f32 %v473, %v819
      %v870 = vmul.f32 %v471, %v820
      %v871 = vmul.f32 %v473, %v821
      %v872 = vmul.f32 %v471, %v822
      %v873 = vmul.f32 %v473, %v823
      %v874 = vmul.f32 %v471, %v824
      %v875 = vmul.f32 %v473, %v825
      %v876 = vmul.f32 %v471, %v826
      %v877 = vmul.f32 %v473, %v827
      %v878 = vmul.f32 %v471, %v828
      %v879 = vmul.f32 %v473, %v829
      %v880 = vmul.f32 %v471, %v830
      %v881 = vmul.f32 %v473, %v831
      %v882 = vmul.f32 %v471, %v832
      %v883 = vmul.f32 %v473, %v833
      %v884 = vmul.f32 %v471, %v834
      %v885 = vmul.f32 %v473, %v835
      %v886 = vmul.f32 %v471, %v836
      %v887 = vmul.f32 %v473, %v837
      %v888 = vmul.f32 %v471, %v838
      %v889 = vmul.f32 %v473, %v839
      %v890 = vmul.f32 %v471, %v840
      %v891 = vmul.f32 %v473, %v841
      %v892 = vmul.f32 %v471, %v842
      %v893 = vmul.f32 %v473, %v843
      %v894 = vmul.f32 %v471, %v844
      %v895 = vmul.f32 %v473, %v845
      %v896 = vmul.f32 %v471, %v846
      %v897 = vmul.f32 %v473, %v847
      %v898 = vmul.f32 %v471, %v848
      %v899 = vmul.f32 %v473, %v849
      %v900 = vmul.f32 %v471, %v850
      %v901 = vmul.f32 %v473, %v851
      %v902 = vmul.f32 %v471, %v852
      %v903 = vmul.f32 %v473, %v853
      %v904 = vadd.f32 %v729, %v854
      %v905 = vadd.f32 %v730, %v855
      %v906 = vadd.f32 %v731, %v856
      %v907 = vadd.f32 %v732, %v857
      %v908 = vadd.f32 %v733, %v858
      %v909 = vadd.f32 %v734, %v859
      %v910 = vadd.f32 %v735, %v860
      %v911 = vadd.f32 %v736, %v861
      %v912 = vadd.f32 %v737, %v862
      %v913 = vadd.f32 %v738, %v863
      %v914 = vadd.f32 %v739, %v864
      %v915 = vadd.f32 %v740, %v865
      %v916 = vadd.f32 %v741, %v866
      %v917 = vadd.f32 %v742, %v867
      %v918 = vadd.f32 %v743, %v868
      %v919 = vadd.f32 %v744, %v869
      %v920 = vadd.f32 %v745, %v870
      %v921 = vadd.f32 %v746, %v871
      %v922 = vadd.f32 %v747, %v872
      %v923 = vadd.f32 %v748, %v873
      %v924 = vadd.f32 %v749, %v874
      %v925 = vadd.f32 %v750, %v875
      %v926 = vadd.f32 %v751, %v876
      %v927 = vadd.f32 %v752, %v877
      %v928 = vadd.f32 %v753, %v878
      %v929 = vadd.f32 %v754, %v879
      %v930 = vadd.f32 %v755, %v880
      %v931 = vadd.f32 %v756, %v881
      %v932 = vadd.f32 %v757, %v882
      %v933 = vadd.f32 %v758, %v883
      %v934 = vadd.f32 %v759, %v884
      %v935 = vadd.f32 %v760, %v885
      %v936 = vadd.f32 %v761, %v886
      %v937 = vadd.f32 %v762, %v887
      %v938 = vadd.f32 %v763, %v888
      %v939 = vadd.f32 %v764, %v889
      %v940 = vadd.f32 %v765, %v890
      %v941 = vadd.f32 %v766, %v891
      %v942 = vadd.f32 %v767, %v892
      %v943 = vadd.f32 %v768, %v893
      %v944 = vadd.f32 %v769, %v894
      %v945 = vadd.f32 %v770, %v895
      %v946 = vadd.f32 %v771, %v896
      %v947 = vadd.f32 %v772, %v897
      %v948 = vadd.f32 %v773, %v898
      %v949 = vadd.f32 %v774, %v899
      %v950 = vadd.f32 %v775, %v900
      %v951 = vadd.f32 %v776, %v901
      %v952 = vadd.f32 %v777, %v902
      %v953 = vadd.f32 %v778, %v903
      %v954 = vld [vmem:[%s374 + $0x18] sm:$0xff]
      %v955 = vld [vmem:[%s374 + $0x58] sm:$0xff]
      %v956 = vld [vmem:[%s374 + $0x98] sm:$0xff]
      %v957 = vld [vmem:[%s374 + $0xd8] sm:$0xff]
      %v958 = vld [vmem:[%s374 + $0x118] sm:$0xff]
      %v959 = vld [vmem:[%s374 + $0x158] sm:$0xff]
      %v960 = vld [vmem:[%s374 + $0x198] sm:$0xff]
      %v961 = vld [vmem:[%s374 + $0x1d8] sm:$0xff]
      %v962 = vld [vmem:[%s374 + $0x218] sm:$0xff]
      %v963 = vld [vmem:[%s374 + $0x258] sm:$0xff]
      %v964 = vld [vmem:[%s374 + $0x298] sm:$0xff]
      %v965 = vld [vmem:[%s374 + $0x2d8] sm:$0xff]
      %v966 = vld [vmem:[%s374 + $0x318] sm:$0xff]
      %v967 = vld [vmem:[%s374 + $0x358] sm:$0xff]
      %v968 = vld [vmem:[%s374 + $0x398] sm:$0xff]
      %v969 = vld [vmem:[%s374 + $0x3d8] sm:$0xff]
      %v970 = vld [vmem:[%s374 + $0x418] sm:$0xff]
      %v971 = vld [vmem:[%s374 + $0x458] sm:$0xff]
      %v972 = vld [vmem:[%s374 + $0x498] sm:$0xff]
      %v973 = vld [vmem:[%s374 + $0x4d8] sm:$0xff]
      %v974 = vld [vmem:[%s374 + $0x518] sm:$0xff]
      %v975 = vld [vmem:[%s374 + $0x558] sm:$0xff]
      %v976 = vld [vmem:[%s374 + $0x598] sm:$0xff]
      %v977 = vld [vmem:[%s374 + $0x5d8] sm:$0xff]
      %v978 = vld [vmem:[%s374 + $0x618] sm:$0xff]
      %v979 = vunpack.c.l.bf16 %v954
      %v980 = vunpack.c.h.bf16 %v954
      %v981 = vunpack.c.l.bf16 %v955
      %v982 = vunpack.c.h.bf16 %v955
      %v983 = vunpack.c.l.bf16 %v956
      %v984 = vunpack.c.h.bf16 %v956
      %v985 = vunpack.c.l.bf16 %v957
      %v986 = vunpack.c.h.bf16 %v957
      %v987 = vunpack.c.l.bf16 %v958
      %v988 = vunpack.c.h.bf16 %v958
      %v989 = vunpack.c.l.bf16 %v959
      %v990 = vunpack.c.h.bf16 %v959
      %v991 = vunpack.c.l.bf16 %v960
      %v992 = vunpack.c.h.bf16 %v960
      %v993 = vunpack.c.l.bf16 %v961
      %v994 = vunpack.c.h.bf16 %v961
      %v995 = vunpack.c.l.bf16 %v962
      %v996 = vunpack.c.h.bf16 %v962
      %v997 = vunpack.c.l.bf16 %v963
      %v998 = vunpack.c.h.bf16 %v963
      %v999 = vunpack.c.l.bf16 %v964
      %v1000 = vunpack.c.h.bf16 %v964
      %v1001 = vunpack.c.l.bf16 %v965
      %v1002 = vunpack.c.h.bf16 %v965
      %v1003 = vunpack.c.l.bf16 %v966
      %v1004 = vunpack.c.h.bf16 %v966
      %v1005 = vunpack.c.l.bf16 %v967
      %v1006 = vunpack.c.h.bf16 %v967
      %v1007 = vunpack.c.l.bf16 %v968
      %v1008 = vunpack.c.h.bf16 %v968
      %v1009 = vunpack.c.l.bf16 %v969
      %v1010 = vunpack.c.h.bf16 %v969
      %v1011 = vunpack.c.l.bf16 %v970
      %v1012 = vunpack.c.h.bf16 %v970
      %v1013 = vunpack.c.l.bf16 %v971
      %v1014 = vunpack.c.h.bf16 %v971
      %v1015 = vunpack.c.l.bf16 %v972
      %v1016 = vunpack.c.h.bf16 %v972
      %v1017 = vunpack.c.l.bf16 %v973
      %v1018 = vunpack.c.h.bf16 %v973
      %v1019 = vunpack.c.l.bf16 %v974
      %v1020 = vunpack.c.h.bf16 %v974
      %v1021 = vunpack.c.l.bf16 %v975
      %v1022 = vunpack.c.h.bf16 %v975
      %v1023 = vunpack.c.l.bf16 %v976
      %v1024 = vunpack.c.h.bf16 %v976
      %v1025 = vunpack.c.l.bf16 %v977
      %v1026 = vunpack.c.h.bf16 %v977
      %v1027 = vunpack.c.l.bf16 %v978
      %v1028 = vunpack.c.h.bf16 %v978
      %v1029 = vmul.f32 %v475, %v979
      %v1030 = vmul.f32 %v477, %v980
      %v1031 = vmul.f32 %v475, %v981
      %v1032 = vmul.f32 %v477, %v982
      %v1033 = vmul.f32 %v475, %v983
      %v1034 = vmul.f32 %v477, %v984
      %v1035 = vmul.f32 %v475, %v985
      %v1036 = vmul.f32 %v477, %v986
      %v1037 = vmul.f32 %v475, %v987
      %v1038 = vmul.f32 %v477, %v988
      %v1039 = vmul.f32 %v475, %v989
      %v1040 = vmul.f32 %v477, %v990
      %v1041 = vmul.f32 %v475, %v991
      %v1042 = vmul.f32 %v477, %v992
      %v1043 = vmul.f32 %v475, %v993
      %v1044 = vmul.f32 %v477, %v994
      %v1045 = vmul.f32 %v475, %v995
      %v1046 = vmul.f32 %v477, %v996
      %v1047 = vmul.f32 %v475, %v997
      %v1048 = vmul.f32 %v477, %v998
      %v1049 = vmul.f32 %v475, %v999
      %v1050 = vmul.f32 %v477, %v1000
      %v1051 = vmul.f32 %v475, %v1001
      %v1052 = vmul.f32 %v477, %v1002
      %v1053 = vmul.f32 %v475, %v1003
      %v1054 = vmul.f32 %v477, %v1004
      %v1055 = vmul.f32 %v475, %v1005
      %v1056 = vmul.f32 %v477, %v1006
      %v1057 = vmul.f32 %v475, %v1007
      %v1058 = vmul.f32 %v477, %v1008
      %v1059 = vmul.f32 %v475, %v1009
      %v1060 = vmul.f32 %v477, %v1010
      %v1061 = vmul.f32 %v475, %v1011
      %v1062 = vmul.f32 %v477, %v1012
      %v1063 = vmul.f32 %v475, %v1013
      %v1064 = vmul.f32 %v477, %v1014
      %v1065 = vmul.f32 %v475, %v1015
      %v1066 = vmul.f32 %v477, %v1016
      %v1067 = vmul.f32 %v475, %v1017
      %v1068 = vmul.f32 %v477, %v1018
      %v1069 = vmul.f32 %v475, %v1019
      %v1070 = vmul.f32 %v477, %v1020
      %v1071 = vmul.f32 %v475, %v1021
      %v1072 = vmul.f32 %v477, %v1022
      %v1073 = vmul.f32 %v475, %v1023
      %v1074 = vmul.f32 %v477, %v1024
      %v1075 = vmul.f32 %v475, %v1025
      %v1076 = vmul.f32 %v477, %v1026
      %v1077 = vmul.f32 %v475, %v1027
      %v1078 = vmul.f32 %v477, %v1028
      %v1079 = vadd.f32 %v904, %v1029
      %v1080 = vadd.f32 %v905, %v1030
      %v1081 = vadd.f32 %v906, %v1031
      %v1082 = vadd.f32 %v907, %v1032
      %v1083 = vadd.f32 %v908, %v1033
      %v1084 = vadd.f32 %v909, %v1034
      %v1085 = vadd.f32 %v910, %v1035
      %v1086 = vadd.f32 %v911, %v1036
      %v1087 = vadd.f32 %v912, %v1037
      %v1088 = vadd.f32 %v913, %v1038
      %v1089 = vadd.f32 %v914, %v1039
      %v1090 = vadd.f32 %v915, %v1040
      %v1091 = vadd.f32 %v916, %v1041
      %v1092 = vadd.f32 %v917, %v1042
      %v1093 = vadd.f32 %v918, %v1043
      %v1094 = vadd.f32 %v919, %v1044
      %v1095 = vadd.f32 %v920, %v1045
      %v1096 = vadd.f32 %v921, %v1046
      %v1097 = vadd.f32 %v922, %v1047
      %v1098 = vadd.f32 %v923, %v1048
      %v1099 = vadd.f32 %v924, %v1049
      %v1100 = vadd.f32 %v925, %v1050
      %v1101 = vadd.f32 %v926, %v1051
      %v1102 = vadd.f32 %v927, %v1052
      %v1103 = vadd.f32 %v928, %v1053
      %v1104 = vadd.f32 %v929, %v1054
      %v1105 = vadd.f32 %v930, %v1055
      %v1106 = vadd.f32 %v931, %v1056
      %v1107 = vadd.f32 %v932, %v1057
      %v1108 = vadd.f32 %v933, %v1058
      %v1109 = vadd.f32 %v934, %v1059
      %v1110 = vadd.f32 %v935, %v1060
      %v1111 = vadd.f32 %v936, %v1061
      %v1112 = vadd.f32 %v937, %v1062
      %v1113 = vadd.f32 %v938, %v1063
      %v1114 = vadd.f32 %v939, %v1064
      %v1115 = vadd.f32 %v940, %v1065
      %v1116 = vadd.f32 %v941, %v1066
      %v1117 = vadd.f32 %v942, %v1067
      %v1118 = vadd.f32 %v943, %v1068
      %v1119 = vadd.f32 %v944, %v1069
      %v1120 = vadd.f32 %v945, %v1070
      %v1121 = vadd.f32 %v946, %v1071
      %v1122 = vadd.f32 %v947, %v1072
      %v1123 = vadd.f32 %v948, %v1073
      %v1124 = vadd.f32 %v949, %v1074
      %v1125 = vadd.f32 %v950, %v1075
      %v1126 = vadd.f32 %v951, %v1076
      %v1127 = vadd.f32 %v952, %v1077
      %v1128 = vadd.f32 %v953, %v1078
      %v1129 = vmax.f32 %v1079, %v1083
      %v1130 = vmax.f32 %v1081, %v1085
      %v1131 = vmax.f32 %v1129, %v1087
      %v1132 = vmax.f32 %v1130, %v1089
      %v1133 = vmax.f32 %v1131, %v1091
      %v1134 = vmax.f32 %v1132, %v1093
      %v1135 = vmax.f32 %v1133, %v1095
      %v1136 = vmax.f32 %v1134, %v1097
      %v1137 = vmax.f32 %v1135, %v1099
      %v1138 = vmax.f32 %v1136, %v1101
      %v1139 = vmax.f32 %v1137, %v1103
      %v1140 = vmax.f32 %v1138, %v1105
      %v1141 = vmax.f32 %v1139, %v1107
      %v1142 = vmax.f32 %v1140, %v1109
      %v1143 = vmax.f32 %v1141, %v1111
      %v1144 = vmax.f32 %v1142, %v1113
      %v1145 = vmax.f32 %v1143, %v1115
      %v1146 = vmax.f32 %v1144, %v1117
      %v1147 = vmax.f32 %v1145, %v1119
      %v1148 = vmax.f32 %v1146, %v1121
      %v1149 = vmax.f32 %v1147, %v1123
      %v1150 = vmax.f32 %v1148, %v1125
      %v1151 = vmax.f32 %v1149, %v1127
      %v1152 = vmax.f32 %v1151, %v1150
      %v1153 = vmax.f32 %v1080, %v1084
      %v1154 = vmax.f32 %v1082, %v1086
      %v1155 = vmax.f32 %v1153, %v1088
      %v1156 = vmax.f32 %v1154, %v1090
      %v1157 = vmax.f32 %v1155, %v1092
      %v1158 = vmax.f32 %v1156, %v1094
      %v1159 = vmax.f32 %v1157, %v1096
      %v1160 = vmax.f32 %v1158, %v1098
      %v1161 = vmax.f32 %v1159, %v1100
      %v1162 = vmax.f32 %v1160, %v1102
      %v1163 = vmax.f32 %v1161, %v1104
      %v1164 = vmax.f32 %v1162, %v1106
      %v1165 = vmax.f32 %v1163, %v1108
      %v1166 = vmax.f32 %v1164, %v1110
      %v1167 = vmax.f32 %v1165, %v1112
      %v1168 = vmax.f32 %v1166, %v1114
      %v1169 = vmax.f32 %v1167, %v1116
      %v1170 = vmax.f32 %v1168, %v1118
      %v1171 = vmax.f32 %v1169, %v1120
      %v1172 = vmax.f32 %v1170, %v1122
      %v1173 = vmax.f32 %v1171, %v1124
      %v1174 = vmax.f32 %v1172, %v1126
      %v1175 = vmax.f32 %v1173, %v1128
      %v1176 = vmax.f32 %v1175, %v1174
      %v1177 = vsub.f32 %v1079, %v1152
      %v1178 = vsub.f32 %v1080, %v1176
      %v1179 = vsub.f32 %v1081, %v1152
      %v1180 = vsub.f32 %v1082, %v1176
      %v1181 = vsub.f32 %v1083, %v1152
      %v1182 = vsub.f32 %v1084, %v1176
      %v1183 = vsub.f32 %v1085, %v1152
      %v1184 = vsub.f32 %v1086, %v1176
      %v1185 = vsub.f32 %v1087, %v1152
      %v1186 = vsub.f32 %v1088, %v1176
      %v1187 = vsub.f32 %v1089, %v1152
      %v1188 = vsub.f32 %v1090, %v1176
      %v1189 = vsub.f32 %v1091, %v1152
      %v1190 = vsub.f32 %v1092, %v1176
      %v1191 = vsub.f32 %v1093, %v1152
      %v1192 = vsub.f32 %v1094, %v1176
      %v1193 = vsub.f32 %v1095, %v1152
      %v1194 = vsub.f32 %v1096, %v1176
      %v1195 = vsub.f32 %v1097, %v1152
      %v1196 = vsub.f32 %v1098, %v1176
      %v1197 = vsub.f32 %v1099, %v1152
      %v1198 = vsub.f32 %v1100, %v1176
      %v1199 = vsub.f32 %v1101, %v1152
      %v1200 = vsub.f32 %v1102, %v1176
      %v1201 = vsub.f32 %v1103, %v1152
      %v1202 = vsub.f32 %v1104, %v1176
      %v1203 = vsub.f32 %v1105, %v1152
      %v1204 = vsub.f32 %v1106, %v1176
      %v1205 = vsub.f32 %v1107, %v1152
      %v1206 = vsub.f32 %v1108, %v1176
      %v1207 = vsub.f32 %v1109, %v1152
      %v1208 = vsub.f32 %v1110, %v1176
      %v1209 = vsub.f32 %v1111, %v1152
      %v1210 = vsub.f32 %v1112, %v1176
      %v1211 = vsub.f32 %v1113, %v1152
      %v1212 = vsub.f32 %v1114, %v1176
      %v1213 = vsub.f32 %v1115, %v1152
      %v1214 = vsub.f32 %v1116, %v1176
      %v1215 = vsub.f32 %v1117, %v1152
      %v1216 = vsub.f32 %v1118, %v1176
      %v1217 = vsub.f32 %v1119, %v1152
      %v1218 = vsub.f32 %v1120, %v1176
      %v1219 = vsub.f32 %v1121, %v1152
      %v1220 = vsub.f32 %v1122, %v1176
      %v1221 = vsub.f32 %v1123, %v1152
      %v1222 = vsub.f32 %v1124, %v1176
      %v1223 = vsub.f32 %v1125, %v1152
      %v1224 = vsub.f32 %v1126, %v1176
      %v1225 = vsub.f32 %v1127, %v1152
      %v1226 = vsub.f32 %v1128, %v1176
      %v1227 = vmul.f32 %v1177, 1.442695
      %v1228 = vpow.pop %v1227
      %v1229 = vmul.f32 %v1178, 1.442695
      %v1230 = vpow.pop %v1229
      %v1231 = vmul.f32 %v1179, 1.442695
      %v1232 = vpow.pop %v1231
      %v1233 = vmul.f32 %v1180, 1.442695
      %v1234 = vpow.pop %v1233
      %v1235 = vmul.f32 %v1181, 1.442695
      %v1236 = vpow.pop %v1235
      %v1237 = vmul.f32 %v1182, 1.442695
      %v1238 = vpow.pop %v1237
      %v1239 = vmul.f32 %v1183, 1.442695
      %v1240 = vpow.pop %v1239
      %v1241 = vmul.f32 %v1184, 1.442695
      %v1242 = vpow.pop %v1241
      %v1243 = vmul.f32 %v1185, 1.442695
      %v1244 = vpow.pop %v1243
      %v1245 = vmul.f32 %v1186, 1.442695
      %v1246 = vpow.pop %v1245
      %v1247 = vmul.f32 %v1187, 1.442695
      %v1248 = vpow.pop %v1247
      %v1249 = vmul.f32 %v1188, 1.442695
      %v1250 = vpow.pop %v1249
      %v1251 = vmul.f32 %v1189, 1.442695
      %v1252 = vpow.pop %v1251
      %v1253 = vmul.f32 %v1190, 1.442695
      %v1254 = vpow.pop %v1253
      %v1255 = vmul.f32 %v1191, 1.442695
      %v1256 = vpow.pop %v1255
      %v1257 = vmul.f32 %v1192, 1.442695
      %v1258 = vpow.pop %v1257
      %v1259 = vmul.f32 %v1193, 1.442695
      %v1260 = vpow.pop %v1259
      %v1261 = vmul.f32 %v1194, 1.442695
      %v1262 = vpow.pop %v1261
      %v1263 = vmul.f32 %v1195, 1.442695
      %v1264 = vpow.pop %v1263
      %v1265 = vmul.f32 %v1196, 1.442695
      %v1266 = vpow.pop %v1265
      %v1267 = vmul.f32 %v1197, 1.442695
      %v1268 = vpow.pop %v1267
      %v1269 = vmul.f32 %v1198, 1.442695
      %v1270 = vpow.pop %v1269
      %v1271 = vmul.f32 %v1199, 1.442695
      %v1272 = vpow.pop %v1271
      %v1273 = vmul.f32 %v1200, 1.442695
      %v1274 = vpow.pop %v1273
      %v1275 = vmul.f32 %v1201, 1.442695
      %v1276 = vpow.pop %v1275
      %v1277 = vmul.f32 %v1202, 1.442695
      %v1278 = vpow.pop %v1277
      %v1279 = vmul.f32 %v1203, 1.442695
      %v1280 = vpow.pop %v1279
      %v1281 = vmul.f32 %v1204, 1.442695
      %v1282 = vpow.pop %v1281
      %v1283 = vmul.f32 %v1205, 1.442695
      %v1284 = vpow.pop %v1283
      %v1285 = vmul.f32 %v1206, 1.442695
      %v1286 = vpow.pop %v1285
      %v1287 = vmul.f32 %v1207, 1.442695
      %v1288 = vpow.pop %v1287
      %v1289 = vmul.f32 %v1208, 1.442695
      %v1290 = vpow.pop %v1289
      %v1291 = vmul.f32 %v1209, 1.442695
      %v1292 = vpow.pop %v1291
      %v1293 = vmul.f32 %v1210, 1.442695
      %v1294 = vpow.pop %v1293
      %v1295 = vmul.f32 %v1211, 1.442695
      %v1296 = vpow.pop %v1295
      %v1297 = vmul.f32 %v1212, 1.442695
      %v1298 = vpow.pop %v1297
      %v1299 = vmul.f32 %v1213, 1.442695
      %v1300 = vpow.pop %v1299
      %v1301 = vmul.f32 %v1214, 1.442695
      %v1302 = vpow.pop %v1301
      %v1303 = vmul.f32 %v1215, 1.442695
      %v1304 = vpow.pop %v1303
      %v1305 = vmul.f32 %v1216, 1.442695
      %v1306 = vpow.pop %v1305
      %v1307 = vmul.f32 %v1217, 1.442695
      %v1308 = vpow.pop %v1307
      %v1309 = vmul.f32 %v1218, 1.442695
      %v1310 = vpow.pop %v1309
      %v1311 = vmul.f32 %v1219, 1.442695
      %v1312 = vpow.pop %v1311
      %v1313 = vmul.f32 %v1220, 1.442695
      %v1314 = vpow.pop %v1313
      %v1315 = vmul.f32 %v1221, 1.442695
      %v1316 = vpow.pop %v1315
      %v1317 = vmul.f32 %v1222, 1.442695
      %v1318 = vpow.pop %v1317
      %v1319 = vmul.f32 %v1223, 1.442695
      %v1320 = vpow.pop %v1319
      %v1321 = vmul.f32 %v1224, 1.442695
      %v1322 = vpow.pop %v1321
      %v1323 = vmul.f32 %v1225, 1.442695
      %v1324 = vpow.pop %v1323
      %v1325 = vmul.f32 %v1226, 1.442695
      %v1326 = vpow.pop %v1325
      %v1327 = vadd.f32 %v1228, %v1232
      %v1328 = vadd.f32 %v1327, %v1236
      %v1329 = vadd.f32 %v1328, %v1240
      %v1330 = vadd.f32 %v1329, %v1244
      %v1331 = vadd.f32 %v1330, %v1248
      %v1332 = vadd.f32 %v1331, %v1252
      %v1333 = vadd.f32 %v1332, %v1256
      %v1334 = vadd.f32 %v1333, %v1260
      %v1335 = vadd.f32 %v1334, %v1264
      %v1336 = vadd.f32 %v1335, %v1268
      %v1337 = vadd.f32 %v1336, %v1272
      %v1338 = vadd.f32 %v1337, %v1276
      %v1339 = vadd.f32 %v1338, %v1280
      %v1340 = vadd.f32 %v1339, %v1284
      %v1341 = vadd.f32 %v1340, %v1288
      %v1342 = vadd.f32 %v1341, %v1292
      %v1343 = vadd.f32 %v1342, %v1296
      %v1344 = vadd.f32 %v1343, %v1300
      %v1345 = vadd.f32 %v1344, %v1304
      %v1346 = vadd.f32 %v1345, %v1308
      %v1347 = vadd.f32 %v1346, %v1312
      %v1348 = vadd.f32 %v1347, %v1316
      %v1349 = vadd.f32 %v1348, %v1320
      %v1350 = vadd.f32 %v1349, %v1324
      %v1351 = vadd.f32 %v1230, %v1234
      %v1352 = vadd.f32 %v1351, %v1238
      %v1353 = vadd.f32 %v1352, %v1242
      %v1354 = vadd.f32 %v1353, %v1246
      %v1355 = vadd.f32 %v1354, %v1250
      %v1356 = vadd.f32 %v1355, %v1254
      %v1357 = vadd.f32 %v1356, %v1258
      %v1358 = vadd.f32 %v1357, %v1262
      %v1359 = vadd.f32 %v1358, %v1266
      %v1360 = vadd.f32 %v1359, %v1270
      %v1361 = vadd.f32 %v1360, %v1274
      %v1362 = vadd.f32 %v1361, %v1278
      %v1363 = vadd.f32 %v1362, %v1282
      %v1364 = vadd.f32 %v1363, %v1286
      %v1365 = vadd.f32 %v1364, %v1290
      %v1366 = vadd.f32 %v1365, %v1294
      %v1367 = vadd.f32 %v1366, %v1298
      %v1368 = vadd.f32 %v1367, %v1302
      %v1369 = vadd.f32 %v1368, %v1306
      %v1370 = vadd.f32 %v1369, %v1310
      %v1371 = vadd.f32 %v1370, %v1314
      %v1372 = vadd.f32 %v1371, %v1318
      %v1373 = vadd.f32 %v1372, %v1322
      %v1374 = vadd.f32 %v1373, %v1326
      %v1375 = vrcp.pop %v1350
      %v1376 = vrcp.pop %v1374
      %v1377 = vld [vmem:[%s374 + $0x20] sm:$0xff]
      %v1378 = vld [vmem:[%s374 + $0x60] sm:$0xff]
      %v1379 = vld [vmem:[%s374 + $0xa0] sm:$0xff]
      %v1380 = vld [vmem:[%s374 + $0xe0] sm:$0xff]
      %v1381 = vld [vmem:[%s374 + $0x120] sm:$0xff]
      %v1382 = vld [vmem:[%s374 + $0x160] sm:$0xff]
      %v1383 = vld [vmem:[%s374 + $0x1a0] sm:$0xff]
      %v1384 = vld [vmem:[%s374 + $0x1e0] sm:$0xff]
      %v1385 = vld [vmem:[%s374 + $0x220] sm:$0xff]
      %v1386 = vld [vmem:[%s374 + $0x260] sm:$0xff]
      %v1387 = vld [vmem:[%s374 + $0x2a0] sm:$0xff]
      %v1388 = vld [vmem:[%s374 + $0x2e0] sm:$0xff]
      %v1389 = vld [vmem:[%s374 + $0x320] sm:$0xff]
      %v1390 = vld [vmem:[%s374 + $0x360] sm:$0xff]
      %v1391 = vld [vmem:[%s374 + $0x3a0] sm:$0xff]
      %v1392 = vld [vmem:[%s374 + $0x3e0] sm:$0xff]
      %v1393 = vld [vmem:[%s374 + $0x420] sm:$0xff]
      %v1394 = vld [vmem:[%s374 + $0x460] sm:$0xff]
      %v1395 = vld [vmem:[%s374 + $0x4a0] sm:$0xff]
      %v1396 = vld [vmem:[%s374 + $0x4e0] sm:$0xff]
      %v1397 = vld [vmem:[%s374 + $0x520] sm:$0xff]
      %v1398 = vld [vmem:[%s374 + $0x560] sm:$0xff]
      %v1399 = vld [vmem:[%s374 + $0x5a0] sm:$0xff]
      %v1400 = vld [vmem:[%s374 + $0x5e0] sm:$0xff]
      %v1401 = vld [vmem:[%s374 + $0x620] sm:$0xff]
      %v1402 = vunpack.c.l.bf16 %v1377
      %v1403 = vunpack.c.h.bf16 %v1377
      %v1404 = vunpack.c.l.bf16 %v1378
      %v1405 = vunpack.c.h.bf16 %v1378
      %v1406 = vunpack.c.l.bf16 %v1379
      %v1407 = vunpack.c.h.bf16 %v1379
      %v1408 = vunpack.c.l.bf16 %v1380
      %v1409 = vunpack.c.h.bf16 %v1380
      %v1410 = vunpack.c.l.bf16 %v1381
      %v1411 = vunpack.c.h.bf16 %v1381
      %v1412 = vunpack.c.l.bf16 %v1382
      %v1413 = vunpack.c.h.bf16 %v1382
      %v1414 = vunpack.c.l.bf16 %v1383
      %v1415 = vunpack.c.h.bf16 %v1383
      %v1416 = vunpack.c.l.bf16 %v1384
      %v1417 = vunpack.c.h.bf16 %v1384
      %v1418 = vunpack.c.l.bf16 %v1385
      %v1419 = vunpack.c.h.bf16 %v1385
      %v1420 = vunpack.c.l.bf16 %v1386
      %v1421 = vunpack.c.h.bf16 %v1386
      %v1422 = vunpack.c.l.bf16 %v1387
      %v1423 = vunpack.c.h.bf16 %v1387
      %v1424 = vunpack.c.l.bf16 %v1388
      %v1425 = vunpack.c.h.bf16 %v1388
      %v1426 = vunpack.c.l.bf16 %v1389
      %v1427 = vunpack.c.h.bf16 %v1389
      %v1428 = vunpack.c.l.bf16 %v1390
      %v1429 = vunpack.c.h.bf16 %v1390
      %v1430 = vunpack.c.l.bf16 %v1391
      %v1431 = vunpack.c.h.bf16 %v1391
      %v1432 = vunpack.c.l.bf16 %v1392
      %v1433 = vunpack.c.h.bf16 %v1392
      %v1434 = vunpack.c.l.bf16 %v1393
      %v1435 = vunpack.c.h.bf16 %v1393
      %v1436 = vunpack.c.l.bf16 %v1394
      %v1437 = vunpack.c.h.bf16 %v1394
      %v1438 = vunpack.c.l.bf16 %v1395
      %v1439 = vunpack.c.h.bf16 %v1395
      %v1440 = vunpack.c.l.bf16 %v1396
      %v1441 = vunpack.c.h.bf16 %v1396
      %v1442 = vunpack.c.l.bf16 %v1397
      %v1443 = vunpack.c.h.bf16 %v1397
      %v1444 = vunpack.c.l.bf16 %v1398
      %v1445 = vunpack.c.h.bf16 %v1398
      %v1446 = vunpack.c.l.bf16 %v1399
      %v1447 = vunpack.c.h.bf16 %v1399
      %v1448 = vunpack.c.l.bf16 %v1400
      %v1449 = vunpack.c.h.bf16 %v1400
      %v1450 = vunpack.c.l.bf16 %v1401
      %v1451 = vunpack.c.h.bf16 %v1401
      %v1452 = vmul.f32 %v1228, %v1402
      %v1453 = vmul.f32 %v1230, %v1403
      %v1454 = vmul.f32 %v1232, %v1404
      %v1455 = vmul.f32 %v1234, %v1405
      %v1456 = vmul.f32 %v1236, %v1406
      %v1457 = vmul.f32 %v1238, %v1407
      %v1458 = vmul.f32 %v1240, %v1408
      %v1459 = vmul.f32 %v1242, %v1409
      %v1460 = vmul.f32 %v1244, %v1410
      %v1461 = vmul.f32 %v1246, %v1411
      %v1462 = vmul.f32 %v1248, %v1412
      %v1463 = vmul.f32 %v1250, %v1413
      %v1464 = vmul.f32 %v1252, %v1414
      %v1465 = vmul.f32 %v1254, %v1415
      %v1466 = vmul.f32 %v1256, %v1416
      %v1467 = vmul.f32 %v1258, %v1417
      %v1468 = vmul.f32 %v1260, %v1418
      %v1469 = vmul.f32 %v1262, %v1419
      %v1470 = vmul.f32 %v1264, %v1420
      %v1471 = vmul.f32 %v1266, %v1421
      %v1472 = vmul.f32 %v1268, %v1422
      %v1473 = vmul.f32 %v1270, %v1423
      %v1474 = vmul.f32 %v1272, %v1424
      %v1475 = vmul.f32 %v1274, %v1425
      %v1476 = vmul.f32 %v1276, %v1426
      %v1477 = vmul.f32 %v1278, %v1427
      %v1478 = vmul.f32 %v1280, %v1428
      %v1479 = vmul.f32 %v1282, %v1429
      %v1480 = vmul.f32 %v1284, %v1430
      %v1481 = vmul.f32 %v1286, %v1431
      %v1482 = vmul.f32 %v1288, %v1432
      %v1483 = vmul.f32 %v1290, %v1433
      %v1484 = vmul.f32 %v1292, %v1434
      %v1485 = vmul.f32 %v1294, %v1435
      %v1486 = vmul.f32 %v1296, %v1436
      %v1487 = vmul.f32 %v1298, %v1437
      %v1488 = vmul.f32 %v1300, %v1438
      %v1489 = vmul.f32 %v1302, %v1439
      %v1490 = vmul.f32 %v1304, %v1440
      %v1491 = vmul.f32 %v1306, %v1441
      %v1492 = vmul.f32 %v1308, %v1442
      %v1493 = vmul.f32 %v1310, %v1443
      %v1494 = vmul.f32 %v1312, %v1444
      %v1495 = vmul.f32 %v1314, %v1445
      %v1496 = vmul.f32 %v1316, %v1446
      %v1497 = vmul.f32 %v1318, %v1447
      %v1498 = vmul.f32 %v1320, %v1448
      %v1499 = vmul.f32 %v1322, %v1449
      %v1500 = vmul.f32 %v1324, %v1450
      %v1501 = vmul.f32 %v1326, %v1451
      %v1502 = vadd.f32 %v1452, %v1454
      %v1503 = vadd.f32 %v1502, %v1456
      %v1504 = vadd.f32 %v1503, %v1458
      %v1505 = vadd.f32 %v1504, %v1460
      %v1506 = vadd.f32 %v1505, %v1462
      %v1507 = vadd.f32 %v1506, %v1464
      %v1508 = vadd.f32 %v1507, %v1466
      %v1509 = vadd.f32 %v1508, %v1468
      %v1510 = vadd.f32 %v1509, %v1470
      %v1511 = vadd.f32 %v1510, %v1472
      %v1512 = vadd.f32 %v1511, %v1474
      %v1513 = vadd.f32 %v1512, %v1476
      %v1514 = vadd.f32 %v1513, %v1478
      %v1515 = vadd.f32 %v1514, %v1480
      %v1516 = vadd.f32 %v1515, %v1482
      %v1517 = vadd.f32 %v1516, %v1484
      %v1518 = vadd.f32 %v1517, %v1486
      %v1519 = vadd.f32 %v1518, %v1488
      %v1520 = vadd.f32 %v1519, %v1490
      %v1521 = vadd.f32 %v1520, %v1492
      %v1522 = vadd.f32 %v1521, %v1494
      %v1523 = vadd.f32 %v1522, %v1496
      %v1524 = vadd.f32 %v1523, %v1498
      %v1525 = vadd.f32 %v1524, %v1500
      %v1526 = vadd.f32 %v1453, %v1455
      %v1527 = vadd.f32 %v1526, %v1457
      %v1528 = vadd.f32 %v1527, %v1459
      %v1529 = vadd.f32 %v1528, %v1461
      %v1530 = vadd.f32 %v1529, %v1463
      %v1531 = vadd.f32 %v1530, %v1465
      %v1532 = vadd.f32 %v1531, %v1467
      %v1533 = vadd.f32 %v1532, %v1469
      %v1534 = vadd.f32 %v1533, %v1471
      %v1535 = vadd.f32 %v1534, %v1473
      %v1536 = vadd.f32 %v1535, %v1475
      %v1537 = vadd.f32 %v1536, %v1477
      %v1538 = vadd.f32 %v1537, %v1479
      %v1539 = vadd.f32 %v1538, %v1481
      %v1540 = vadd.f32 %v1539, %v1483
      %v1541 = vadd.f32 %v1540, %v1485
      %v1542 = vadd.f32 %v1541, %v1487
      %v1543 = vadd.f32 %v1542, %v1489
      %v1544 = vadd.f32 %v1543, %v1491
      %v1545 = vadd.f32 %v1544, %v1493
      %v1546 = vadd.f32 %v1545, %v1495
      %v1547 = vadd.f32 %v1546, %v1497
      %v1548 = vadd.f32 %v1547, %v1499
      %v1549 = vadd.f32 %v1548, %v1501
      %v1550 = vmul.f32 %v1525, %v1375
      %v1551 = vmul.f32 %v1549, %v1376
      %v1552 = vld [vmem:[%s374 + $0x28] sm:$0xff]
      %v1553 = vld [vmem:[%s374 + $0x68] sm:$0xff]
      %v1554 = vld [vmem:[%s374 + $0xa8] sm:$0xff]
      %v1555 = vld [vmem:[%s374 + $0xe8] sm:$0xff]
      %v1556 = vld [vmem:[%s374 + $0x128] sm:$0xff]
      %v1557 = vld [vmem:[%s374 + $0x168] sm:$0xff]
      %v1558 = vld [vmem:[%s374 + $0x1a8] sm:$0xff]
      %v1559 = vld [vmem:[%s374 + $0x1e8] sm:$0xff]
      %v1560 = vld [vmem:[%s374 + $0x228] sm:$0xff]
      %v1561 = vld [vmem:[%s374 + $0x268] sm:$0xff]
      %v1562 = vld [vmem:[%s374 + $0x2a8] sm:$0xff]
      %v1563 = vld [vmem:[%s374 + $0x2e8] sm:$0xff]
      %v1564 = vld [vmem:[%s374 + $0x328] sm:$0xff]
      %v1565 = vld [vmem:[%s374 + $0x368] sm:$0xff]
      %v1566 = vld [vmem:[%s374 + $0x3a8] sm:$0xff]
      %v1567 = vld [vmem:[%s374 + $0x3e8] sm:$0xff]
      %v1568 = vld [vmem:[%s374 + $0x428] sm:$0xff]
      %v1569 = vld [vmem:[%s374 + $0x468] sm:$0xff]
      %v1570 = vld [vmem:[%s374 + $0x4a8] sm:$0xff]
      %v1571 = vld [vmem:[%s374 + $0x4e8] sm:$0xff]
      %v1572 = vld [vmem:[%s374 + $0x528] sm:$0xff]
      %v1573 = vld [vmem:[%s374 + $0x568] sm:$0xff]
      %v1574 = vld [vmem:[%s374 + $0x5a8] sm:$0xff]
      %v1575 = vld [vmem:[%s374 + $0x5e8] sm:$0xff]
      %v1576 = vld [vmem:[%s374 + $0x628] sm:$0xff]
      %v1577 = vunpack.c.l.bf16 %v1552
      %v1578 = vunpack.c.h.bf16 %v1552
      %v1579 = vunpack.c.l.bf16 %v1553
      %v1580 = vunpack.c.h.bf16 %v1553
      %v1581 = vunpack.c.l.bf16 %v1554
      %v1582 = vunpack.c.h.bf16 %v1554
      %v1583 = vunpack.c.l.bf16 %v1555
      %v1584 = vunpack.c.h.bf16 %v1555
      %v1585 = vunpack.c.l.bf16 %v1556
      %v1586 = vunpack.c.h.bf16 %v1556
      %v1587 = vunpack.c.l.bf16 %v1557
      %v1588 = vunpack.c.h.bf16 %v1557
      %v1589 = vunpack.c.l.bf16 %v1558
      %v1590 = vunpack.c.h.bf16 %v1558
      %v1591 = vunpack.c.l.bf16 %v1559
      %v1592 = vunpack.c.h.bf16 %v1559
      %v1593 = vunpack.c.l.bf16 %v1560
      %v1594 = vunpack.c.h.bf16 %v1560
      %v1595 = vunpack.c.l.bf16 %v1561
      %v1596 = vunpack.c.h.bf16 %v1561
      %v1597 = vunpack.c.l.bf16 %v1562
      %v1598 = vunpack.c.h.bf16 %v1562
      %v1599 = vunpack.c.l.bf16 %v1563
      %v1600 = vunpack.c.h.bf16 %v1563
      %v1601 = vunpack.c.l.bf16 %v1564
      %v1602 = vunpack.c.h.bf16 %v1564
      %v1603 = vunpack.c.l.bf16 %v1565
      %v1604 = vunpack.c.h.bf16 %v1565
      %v1605 = vunpack.c.l.bf16 %v1566
      %v1606 = vunpack.c.h.bf16 %v1566
      %v1607 = vunpack.c.l.bf16 %v1567
      %v1608 = vunpack.c.h.bf16 %v1567
      %v1609 = vunpack.c.l.bf16 %v1568
      %v1610 = vunpack.c.h.bf16 %v1568
      %v1611 = vunpack.c.l.bf16 %v1569
      %v1612 = vunpack.c.h.bf16 %v1569
      %v1613 = vunpack.c.l.bf16 %v1570
      %v1614 = vunpack.c.h.bf16 %v1570
      %v1615 = vunpack.c.l.bf16 %v1571
      %v1616 = vunpack.c.h.bf16 %v1571
      %v1617 = vunpack.c.l.bf16 %v1572
      %v1618 = vunpack.c.h.bf16 %v1572
      %v1619 = vunpack.c.l.bf16 %v1573
      %v1620 = vunpack.c.h.bf16 %v1573
      %v1621 = vunpack.c.l.bf16 %v1574
      %v1622 = vunpack.c.h.bf16 %v1574
      %v1623 = vunpack.c.l.bf16 %v1575
      %v1624 = vunpack.c.h.bf16 %v1575
      %v1625 = vunpack.c.l.bf16 %v1576
      %v1626 = vunpack.c.h.bf16 %v1576
      %v1627 = vmul.f32 %v1228, %v1577
      %v1628 = vmul.f32 %v1230, %v1578
      %v1629 = vmul.f32 %v1232, %v1579
      %v1630 = vmul.f32 %v1234, %v1580
      %v1631 = vmul.f32 %v1236, %v1581
      %v1632 = vmul.f32 %v1238, %v1582
      %v1633 = vmul.f32 %v1240, %v1583
      %v1634 = vmul.f32 %v1242, %v1584
      %v1635 = vmul.f32 %v1244, %v1585
      %v1636 = vmul.f32 %v1246, %v1586
      %v1637 = vmul.f32 %v1248, %v1587
      %v1638 = vmul.f32 %v1250, %v1588
      %v1639 = vmul.f32 %v1252, %v1589
      %v1640 = vmul.f32 %v1254, %v1590
      %v1641 = vmul.f32 %v1256, %v1591
      %v1642 = vmul.f32 %v1258, %v1592
      %v1643 = vmul.f32 %v1260, %v1593
      %v1644 = vmul.f32 %v1262, %v1594
      %v1645 = vmul.f32 %v1264, %v1595
      %v1646 = vmul.f32 %v1266, %v1596
      %v1647 = vmul.f32 %v1268, %v1597
      %v1648 = vmul.f32 %v1270, %v1598
      %v1649 = vmul.f32 %v1272, %v1599
      %v1650 = vmul.f32 %v1274, %v1600
      %v1651 = vmul.f32 %v1276, %v1601
      %v1652 = vmul.f32 %v1278, %v1602
      %v1653 = vmul.f32 %v1280, %v1603
      %v1654 = vmul.f32 %v1282, %v1604
      %v1655 = vmul.f32 %v1284, %v1605
      %v1656 = vmul.f32 %v1286, %v1606
      %v1657 = vmul.f32 %v1288, %v1607
      %v1658 = vmul.f32 %v1290, %v1608
      %v1659 = vmul.f32 %v1292, %v1609
      %v1660 = vmul.f32 %v1294, %v1610
      %v1661 = vmul.f32 %v1296, %v1611
      %v1662 = vmul.f32 %v1298, %v1612
      %v1663 = vmul.f32 %v1300, %v1613
      %v1664 = vmul.f32 %v1302, %v1614
      %v1665 = vmul.f32 %v1304, %v1615
      %v1666 = vmul.f32 %v1306, %v1616
      %v1667 = vmul.f32 %v1308, %v1617
      %v1668 = vmul.f32 %v1310, %v1618
      %v1669 = vmul.f32 %v1312, %v1619
      %v1670 = vmul.f32 %v1314, %v1620
      %v1671 = vmul.f32 %v1316, %v1621
      %v1672 = vmul.f32 %v1318, %v1622
      %v1673 = vmul.f32 %v1320, %v1623
      %v1674 = vmul.f32 %v1322, %v1624
      %v1675 = vmul.f32 %v1324, %v1625
      %v1676 = vmul.f32 %v1326, %v1626
      %v1677 = vadd.f32 %v1627, %v1629
      %v1678 = vadd.f32 %v1677, %v1631
      %v1679 = vadd.f32 %v1678, %v1633
      %v1680 = vadd.f32 %v1679, %v1635
      %v1681 = vadd.f32 %v1680, %v1637
      %v1682 = vadd.f32 %v1681, %v1639
      %v1683 = vadd.f32 %v1682, %v1641
      %v1684 = vadd.f32 %v1683, %v1643
      %v1685 = vadd.f32 %v1684, %v1645
      %v1686 = vadd.f32 %v1685, %v1647
      %v1687 = vadd.f32 %v1686, %v1649
      %v1688 = vadd.f32 %v1687, %v1651
      %v1689 = vadd.f32 %v1688, %v1653
      %v1690 = vadd.f32 %v1689, %v1655
      %v1691 = vadd.f32 %v1690, %v1657
      %v1692 = vadd.f32 %v1691, %v1659
      %v1693 = vadd.f32 %v1692, %v1661
      %v1694 = vadd.f32 %v1693, %v1663
      %v1695 = vadd.f32 %v1694, %v1665
      %v1696 = vadd.f32 %v1695, %v1667
      %v1697 = vadd.f32 %v1696, %v1669
      %v1698 = vadd.f32 %v1697, %v1671
      %v1699 = vadd.f32 %v1698, %v1673
      %v1700 = vadd.f32 %v1699, %v1675
      %v1701 = vadd.f32 %v1628, %v1630
      %v1702 = vadd.f32 %v1701, %v1632
      %v1703 = vadd.f32 %v1702, %v1634
      %v1704 = vadd.f32 %v1703, %v1636
      %v1705 = vadd.f32 %v1704, %v1638
      %v1706 = vadd.f32 %v1705, %v1640
      %v1707 = vadd.f32 %v1706, %v1642
      %v1708 = vadd.f32 %v1707, %v1644
      %v1709 = vadd.f32 %v1708, %v1646
      %v1710 = vadd.f32 %v1709, %v1648
      %v1711 = vadd.f32 %v1710, %v1650
      %v1712 = vadd.f32 %v1711, %v1652
      %v1713 = vadd.f32 %v1712, %v1654
      %v1714 = vadd.f32 %v1713, %v1656
      %v1715 = vadd.f32 %v1714, %v1658
      %v1716 = vadd.f32 %v1715, %v1660
      %v1717 = vadd.f32 %v1716, %v1662
      %v1718 = vadd.f32 %v1717, %v1664
      %v1719 = vadd.f32 %v1718, %v1666
      %v1720 = vadd.f32 %v1719, %v1668
      %v1721 = vadd.f32 %v1720, %v1670
      %v1722 = vadd.f32 %v1721, %v1672
      %v1723 = vadd.f32 %v1722, %v1674
      %v1724 = vadd.f32 %v1723, %v1676
      %v1725 = vmul.f32 %v1700, %v1375
      %v1726 = vmul.f32 %v1724, %v1376
      %v1727 = vld [vmem:[%s374 + $0x30] sm:$0xff]
      %v1728 = vld [vmem:[%s374 + $0x70] sm:$0xff]
      %v1729 = vld [vmem:[%s374 + $0xb0] sm:$0xff]
      %v1730 = vld [vmem:[%s374 + $0xf0] sm:$0xff]
      %v1731 = vld [vmem:[%s374 + $0x130] sm:$0xff]
      %v1732 = vld [vmem:[%s374 + $0x170] sm:$0xff]
      %v1733 = vld [vmem:[%s374 + $0x1b0] sm:$0xff]
      %v1734 = vld [vmem:[%s374 + $0x1f0] sm:$0xff]
      %v1735 = vld [vmem:[%s374 + $0x230] sm:$0xff]
      %v1736 = vld [vmem:[%s374 + $0x270] sm:$0xff]
      %v1737 = vld [vmem:[%s374 + $0x2b0] sm:$0xff]
      %v1738 = vld [vmem:[%s374 + $0x2f0] sm:$0xff]
      %v1739 = vld [vmem:[%s374 + $0x330] sm:$0xff]
      %v1740 = vld [vmem:[%s374 + $0x370] sm:$0xff]
      %v1741 = vld [vmem:[%s374 + $0x3b0] sm:$0xff]
      %v1742 = vld [vmem:[%s374 + $0x3f0] sm:$0xff]
      %v1743 = vld [vmem:[%s374 + $0x430] sm:$0xff]
      %v1744 = vld [vmem:[%s374 + $0x470] sm:$0xff]
      %v1745 = vld [vmem:[%s374 + $0x4b0] sm:$0xff]
      %v1746 = vld [vmem:[%s374 + $0x4f0] sm:$0xff]
      %v1747 = vld [vmem:[%s374 + $0x530] sm:$0xff]
      %v1748 = vld [vmem:[%s374 + $0x570] sm:$0xff]
      %v1749 = vld [vmem:[%s374 + $0x5b0] sm:$0xff]
      %v1750 = vld [vmem:[%s374 + $0x5f0] sm:$0xff]
      %v1751 = vld [vmem:[%s374 + $0x630] sm:$0xff]
      %v1752 = vunpack.c.l.bf16 %v1727
      %v1753 = vunpack.c.h.bf16 %v1727
      %v1754 = vunpack.c.l.bf16 %v1728
      %v1755 = vunpack.c.h.bf16 %v1728
      %v1756 = vunpack.c.l.bf16 %v1729
      %v1757 = vunpack.c.h.bf16 %v1729
      %v1758 = vunpack.c.l.bf16 %v1730
      %v1759 = vunpack.c.h.bf16 %v1730
      %v1760 = vunpack.c.l.bf16 %v1731
      %v1761 = vunpack.c.h.bf16 %v1731
      %v1762 = vunpack.c.l.bf16 %v1732
      %v1763 = vunpack.c.h.bf16 %v1732
      %v1764 = vunpack.c.l.bf16 %v1733
      %v1765 = vunpack.c.h.bf16 %v1733
      %v1766 = vunpack.c.l.bf16 %v1734
      %v1767 = vunpack.c.h.bf16 %v1734
      %v1768 = vunpack.c.l.bf16 %v1735
      %v1769 = vunpack.c.h.bf16 %v1735
      %v1770 = vunpack.c.l.bf16 %v1736
      %v1771 = vunpack.c.h.bf16 %v1736
      %v1772 = vunpack.c.l.bf16 %v1737
      %v1773 = vunpack.c.h.bf16 %v1737
      %v1774 = vunpack.c.l.bf16 %v1738
      %v1775 = vunpack.c.h.bf16 %v1738
      %v1776 = vunpack.c.l.bf16 %v1739
      %v1777 = vunpack.c.h.bf16 %v1739
      %v1778 = vunpack.c.l.bf16 %v1740
      %v1779 = vunpack.c.h.bf16 %v1740
      %v1780 = vunpack.c.l.bf16 %v1741
      %v1781 = vunpack.c.h.bf16 %v1741
      %v1782 = vunpack.c.l.bf16 %v1742
      %v1783 = vunpack.c.h.bf16 %v1742
      %v1784 = vunpack.c.l.bf16 %v1743
      %v1785 = vunpack.c.h.bf16 %v1743
      %v1786 = vunpack.c.l.bf16 %v1744
      %v1787 = vunpack.c.h.bf16 %v1744
      %v1788 = vunpack.c.l.bf16 %v1745
      %v1789 = vunpack.c.h.bf16 %v1745
      %v1790 = vunpack.c.l.bf16 %v1746
      %v1791 = vunpack.c.h.bf16 %v1746
      %v1792 = vunpack.c.l.bf16 %v1747
      %v1793 = vunpack.c.h.bf16 %v1747
      %v1794 = vunpack.c.l.bf16 %v1748
      %v1795 = vunpack.c.h.bf16 %v1748
      %v1796 = vunpack.c.l.bf16 %v1749
      %v1797 = vunpack.c.h.bf16 %v1749
      %v1798 = vunpack.c.l.bf16 %v1750
      %v1799 = vunpack.c.h.bf16 %v1750
      %v1800 = vunpack.c.l.bf16 %v1751
      %v1801 = vunpack.c.h.bf16 %v1751
      %v1802 = vmul.f32 %v1228, %v1752
      %v1803 = vmul.f32 %v1230, %v1753
      %v1804 = vmul.f32 %v1232, %v1754
      %v1805 = vmul.f32 %v1234, %v1755
      %v1806 = vmul.f32 %v1236, %v1756
      %v1807 = vmul.f32 %v1238, %v1757
      %v1808 = vmul.f32 %v1240, %v1758
      %v1809 = vmul.f32 %v1242, %v1759
      %v1810 = vmul.f32 %v1244, %v1760
      %v1811 = vmul.f32 %v1246, %v1761
      %v1812 = vmul.f32 %v1248, %v1762
      %v1813 = vmul.f32 %v1250, %v1763
      %v1814 = vmul.f32 %v1252, %v1764
      %v1815 = vmul.f32 %v1254, %v1765
      %v1816 = vmul.f32 %v1256, %v1766
      %v1817 = vmul.f32 %v1258, %v1767
      %v1818 = vmul.f32 %v1260, %v1768
      %v1819 = vmul.f32 %v1262, %v1769
      %v1820 = vmul.f32 %v1264, %v1770
      %v1821 = vmul.f32 %v1266, %v1771
      %v1822 = vmul.f32 %v1268, %v1772
      %v1823 = vmul.f32 %v1270, %v1773
      %v1824 = vmul.f32 %v1272, %v1774
      %v1825 = vmul.f32 %v1274, %v1775
      %v1826 = vmul.f32 %v1276, %v1776
      %v1827 = vmul.f32 %v1278, %v1777
      %v1828 = vmul.f32 %v1280, %v1778
      %v1829 = vmul.f32 %v1282, %v1779
      %v1830 = vmul.f32 %v1284, %v1780
      %v1831 = vmul.f32 %v1286, %v1781
      %v1832 = vmul.f32 %v1288, %v1782
      %v1833 = vmul.f32 %v1290, %v1783
      %v1834 = vmul.f32 %v1292, %v1784
      %v1835 = vmul.f32 %v1294, %v1785
      %v1836 = vmul.f32 %v1296, %v1786
      %v1837 = vmul.f32 %v1298, %v1787
      %v1838 = vmul.f32 %v1300, %v1788
      %v1839 = vmul.f32 %v1302, %v1789
      %v1840 = vmul.f32 %v1304, %v1790
      %v1841 = vmul.f32 %v1306, %v1791
      %v1842 = vmul.f32 %v1308, %v1792
      %v1843 = vmul.f32 %v1310, %v1793
      %v1844 = vmul.f32 %v1312, %v1794
      %v1845 = vmul.f32 %v1314, %v1795
      %v1846 = vmul.f32 %v1316, %v1796
      %v1847 = vmul.f32 %v1318, %v1797
      %v1848 = vmul.f32 %v1320, %v1798
      %v1849 = vmul.f32 %v1322, %v1799
      %v1850 = vmul.f32 %v1324, %v1800
      %v1851 = vmul.f32 %v1326, %v1801
      %v1852 = vadd.f32 %v1802, %v1804
      %v1853 = vadd.f32 %v1852, %v1806
      %v1854 = vadd.f32 %v1853, %v1808
      %v1855 = vadd.f32 %v1854, %v1810
      %v1856 = vadd.f32 %v1855, %v1812
      %v1857 = vadd.f32 %v1856, %v1814
      %v1858 = vadd.f32 %v1857, %v1816
      %v1859 = vadd.f32 %v1858, %v1818
      %v1860 = vadd.f32 %v1859, %v1820
      %v1861 = vadd.f32 %v1860, %v1822
      %v1862 = vadd.f32 %v1861, %v1824
      %v1863 = vadd.f32 %v1862, %v1826
      %v1864 = vadd.f32 %v1863, %v1828
      %v1865 = vadd.f32 %v1864, %v1830
      %v1866 = vadd.f32 %v1865, %v1832
      %v1867 = vadd.f32 %v1866, %v1834
      %v1868 = vadd.f32 %v1867, %v1836
      %v1869 = vadd.f32 %v1868, %v1838
      %v1870 = vadd.f32 %v1869, %v1840
      %v1871 = vadd.f32 %v1870, %v1842
      %v1872 = vadd.f32 %v1871, %v1844
      %v1873 = vadd.f32 %v1872, %v1846
      %v1874 = vadd.f32 %v1873, %v1848
      %v1875 = vadd.f32 %v1874, %v1850
      %v1876 = vadd.f32 %v1803, %v1805
      %v1877 = vadd.f32 %v1876, %v1807
      %v1878 = vadd.f32 %v1877, %v1809
      %v1879 = vadd.f32 %v1878, %v1811
      %v1880 = vadd.f32 %v1879, %v1813
      %v1881 = vadd.f32 %v1880, %v1815
      %v1882 = vadd.f32 %v1881, %v1817
      %v1883 = vadd.f32 %v1882, %v1819
      %v1884 = vadd.f32 %v1883, %v1821
      %v1885 = vadd.f32 %v1884, %v1823
      %v1886 = vadd.f32 %v1885, %v1825
      %v1887 = vadd.f32 %v1886, %v1827
      %v1888 = vadd.f32 %v1887, %v1829
      %v1889 = vadd.f32 %v1888, %v1831
      %v1890 = vadd.f32 %v1889, %v1833
      %v1891 = vadd.f32 %v1890, %v1835
      %v1892 = vadd.f32 %v1891, %v1837
      %v1893 = vadd.f32 %v1892, %v1839
      %v1894 = vadd.f32 %v1893, %v1841
      %v1895 = vadd.f32 %v1894, %v1843
      %v1896 = vadd.f32 %v1895, %v1845
      %v1897 = vadd.f32 %v1896, %v1847
      %v1898 = vadd.f32 %v1897, %v1849
      %v1899 = vadd.f32 %v1898, %v1851
      %v1900 = vmul.f32 %v1875, %v1375
      %v1901 = vmul.f32 %v1899, %v1376
      %v1902 = vld [vmem:[%s374 + $0x38] sm:$0xff]
      %v1903 = vld [vmem:[%s374 + $0x78] sm:$0xff]
      %v1904 = vld [vmem:[%s374 + $0xb8] sm:$0xff]
      %v1905 = vld [vmem:[%s374 + $0xf8] sm:$0xff]
      %v1906 = vld [vmem:[%s374 + $0x138] sm:$0xff]
      %v1907 = vld [vmem:[%s374 + $0x178] sm:$0xff]
      %v1908 = vld [vmem:[%s374 + $0x1b8] sm:$0xff]
      %v1909 = vld [vmem:[%s374 + $0x1f8] sm:$0xff]
      %v1910 = vld [vmem:[%s374 + $0x238] sm:$0xff]
      %v1911 = vld [vmem:[%s374 + $0x278] sm:$0xff]
      %v1912 = vld [vmem:[%s374 + $0x2b8] sm:$0xff]
      %v1913 = vld [vmem:[%s374 + $0x2f8] sm:$0xff]
      %v1914 = vld [vmem:[%s374 + $0x338] sm:$0xff]
      %v1915 = vld [vmem:[%s374 + $0x378] sm:$0xff]
      %v1916 = vld [vmem:[%s374 + $0x3b8] sm:$0xff]
      %v1917 = vld [vmem:[%s374 + $0x3f8] sm:$0xff]
      %v1918 = vld [vmem:[%s374 + $0x438] sm:$0xff]
      %v1919 = vld [vmem:[%s374 + $0x478] sm:$0xff]
      %v1920 = vld [vmem:[%s374 + $0x4b8] sm:$0xff]
      %v1921 = vld [vmem:[%s374 + $0x4f8] sm:$0xff]
      %v1922 = vld [vmem:[%s374 + $0x538] sm:$0xff]
      %v1923 = vld [vmem:[%s374 + $0x578] sm:$0xff]
      %v1924 = vld [vmem:[%s374 + $0x5b8] sm:$0xff]
      %v1925 = vld [vmem:[%s374 + $0x5f8] sm:$0xff]
      %v1926 = vld [vmem:[%s374 + $0x638] sm:$0xff]
      %v1927 = vunpack.c.l.bf16 %v1902
      %v1928 = vunpack.c.h.bf16 %v1902
      %v1929 = vunpack.c.l.bf16 %v1903
      %v1930 = vunpack.c.h.bf16 %v1903
      %v1931 = vunpack.c.l.bf16 %v1904
      %v1932 = vunpack.c.h.bf16 %v1904
      %v1933 = vunpack.c.l.bf16 %v1905
      %v1934 = vunpack.c.h.bf16 %v1905
      %v1935 = vunpack.c.l.bf16 %v1906
      %v1936 = vunpack.c.h.bf16 %v1906
      %v1937 = vunpack.c.l.bf16 %v1907
      %v1938 = vunpack.c.h.bf16 %v1907
      %v1939 = vunpack.c.l.bf16 %v1908
      %v1940 = vunpack.c.h.bf16 %v1908
      %v1941 = vunpack.c.l.bf16 %v1909
      %v1942 = vunpack.c.h.bf16 %v1909
      %v1943 = vunpack.c.l.bf16 %v1910
      %v1944 = vunpack.c.h.bf16 %v1910
      %v1945 = vunpack.c.l.bf16 %v1911
      %v1946 = vunpack.c.h.bf16 %v1911
      %v1947 = vunpack.c.l.bf16 %v1912
      %v1948 = vunpack.c.h.bf16 %v1912
      %v1949 = vunpack.c.l.bf16 %v1913
      %v1950 = vunpack.c.h.bf16 %v1913
      %v1951 = vunpack.c.l.bf16 %v1914
      %v1952 = vunpack.c.h.bf16 %v1914
      %v1953 = vunpack.c.l.bf16 %v1915
      %v1954 = vunpack.c.h.bf16 %v1915
      %v1955 = vunpack.c.l.bf16 %v1916
      %v1956 = vunpack.c.h.bf16 %v1916
      %v1957 = vunpack.c.l.bf16 %v1917
      %v1958 = vunpack.c.h.bf16 %v1917
      %v1959 = vunpack.c.l.bf16 %v1918
      %v1960 = vunpack.c.h.bf16 %v1918
      %v1961 = vunpack.c.l.bf16 %v1919
      %v1962 = vunpack.c.h.bf16 %v1919
      %v1963 = vunpack.c.l.bf16 %v1920
      %v1964 = vunpack.c.h.bf16 %v1920
      %v1965 = vunpack.c.l.bf16 %v1921
      %v1966 = vunpack.c.h.bf16 %v1921
      %v1967 = vunpack.c.l.bf16 %v1922
      %v1968 = vunpack.c.h.bf16 %v1922
      %v1969 = vunpack.c.l.bf16 %v1923
      %v1970 = vunpack.c.h.bf16 %v1923
      %v1971 = vunpack.c.l.bf16 %v1924
      %v1972 = vunpack.c.h.bf16 %v1924
      %v1973 = vunpack.c.l.bf16 %v1925
      %v1974 = vunpack.c.h.bf16 %v1925
      %v1975 = vunpack.c.l.bf16 %v1926
      %v1976 = vunpack.c.h.bf16 %v1926
      %v1977 = vmul.f32 %v1228, %v1927
      %v1978 = vmul.f32 %v1230, %v1928
      %v1979 = vmul.f32 %v1232, %v1929
      %v1980 = vmul.f32 %v1234, %v1930
      %v1981 = vmul.f32 %v1236, %v1931
      %v1982 = vmul.f32 %v1238, %v1932
      %v1983 = vmul.f32 %v1240, %v1933
      %v1984 = vmul.f32 %v1242, %v1934
      %v1985 = vmul.f32 %v1244, %v1935
      %v1986 = vmul.f32 %v1246, %v1936
      %v1987 = vmul.f32 %v1248, %v1937
      %v1988 = vmul.f32 %v1250, %v1938
      %v1989 = vmul.f32 %v1252, %v1939
      %v1990 = vmul.f32 %v1254, %v1940
      %v1991 = vmul.f32 %v1256, %v1941
      %v1992 = vmul.f32 %v1258, %v1942
      %v1993 = vmul.f32 %v1260, %v1943
      %v1994 = vmul.f32 %v1262, %v1944
      %v1995 = vmul.f32 %v1264, %v1945
      %v1996 = vmul.f32 %v1266, %v1946
      %v1997 = vmul.f32 %v1268, %v1947
      %v1998 = vmul.f32 %v1270, %v1948
      %v1999 = vmul.f32 %v1272, %v1949
      %v2000 = vmul.f32 %v1274, %v1950
      %v2001 = vmul.f32 %v1276, %v1951
      %v2002 = vmul.f32 %v1278, %v1952
      %v2003 = vmul.f32 %v1280, %v1953
      %v2004 = vmul.f32 %v1282, %v1954
      %v2005 = vmul.f32 %v1284, %v1955
      %v2006 = vmul.f32 %v1286, %v1956
      %v2007 = vmul.f32 %v1288, %v1957
      %v2008 = vmul.f32 %v1290, %v1958
      %v2009 = vmul.f32 %v1292, %v1959
      %v2010 = vmul.f32 %v1294, %v1960
      %v2011 = vmul.f32 %v1296, %v1961
      %v2012 = vmul.f32 %v1298, %v1962
      %v2013 = vmul.f32 %v1300, %v1963
      %v2014 = vmul.f32 %v1302, %v1964
      %v2015 = vmul.f32 %v1304, %v1965
      %v2016 = vmul.f32 %v1306, %v1966
      %v2017 = vmul.f32 %v1308, %v1967
      %v2018 = vmul.f32 %v1310, %v1968
      %v2019 = vmul.f32 %v1312, %v1969
      %v2020 = vmul.f32 %v1314, %v1970
      %v2021 = vmul.f32 %v1316, %v1971
      %v2022 = vmul.f32 %v1318, %v1972
      %v2023 = vmul.f32 %v1320, %v1973
      %v2024 = vmul.f32 %v1322, %v1974
      %v2025 = vmul.f32 %v1324, %v1975
      %v2026 = vmul.f32 %v1326, %v1976
      %v2027 = vadd.f32 %v1977, %v1979
      %v2028 = vadd.f32 %v2027, %v1981
      %v2029 = vadd.f32 %v2028, %v1983
      %v2030 = vadd.f32 %v2029, %v1985
      %v2031 = vadd.f32 %v2030, %v1987
      %v2032 = vadd.f32 %v2031, %v1989
      %v2033 = vadd.f32 %v2032, %v1991
      %v2034 = vadd.f32 %v2033, %v1993
      %v2035 = vadd.f32 %v2034, %v1995
      %v2036 = vadd.f32 %v2035, %v1997
      %v2037 = vadd.f32 %v2036, %v1999
      %v2038 = vadd.f32 %v2037, %v2001
      %v2039 = vadd.f32 %v2038, %v2003
      %v2040 = vadd.f32 %v2039, %v2005
      %v2041 = vadd.f32 %v2040, %v2007
      %v2042 = vadd.f32 %v2041, %v2009
      %v2043 = vadd.f32 %v2042, %v2011
      %v2044 = vadd.f32 %v2043, %v2013
      %v2045 = vadd.f32 %v2044, %v2015
      %v2046 = vadd.f32 %v2045, %v2017
      %v2047 = vadd.f32 %v2046, %v2019
      %v2048 = vadd.f32 %v2047, %v2021
      %v2049 = vadd.f32 %v2048, %v2023
      %v2050 = vadd.f32 %v2049, %v2025
      %v2051 = vadd.f32 %v1978, %v1980
      %v2052 = vadd.f32 %v2051, %v1982
      %v2053 = vadd.f32 %v2052, %v1984
      %v2054 = vadd.f32 %v2053, %v1986
      %v2055 = vadd.f32 %v2054, %v1988
      %v2056 = vadd.f32 %v2055, %v1990
      %v2057 = vadd.f32 %v2056, %v1992
      %v2058 = vadd.f32 %v2057, %v1994
      %v2059 = vadd.f32 %v2058, %v1996
      %v2060 = vadd.f32 %v2059, %v1998
      %v2061 = vadd.f32 %v2060, %v2000
      %v2062 = vadd.f32 %v2061, %v2002
      %v2063 = vadd.f32 %v2062, %v2004
      %v2064 = vadd.f32 %v2063, %v2006
      %v2065 = vadd.f32 %v2064, %v2008
      %v2066 = vadd.f32 %v2065, %v2010
      %v2067 = vadd.f32 %v2066, %v2012
      %v2068 = vadd.f32 %v2067, %v2014
      %v2069 = vadd.f32 %v2068, %v2016
      %v2070 = vadd.f32 %v2069, %v2018
      %v2071 = vadd.f32 %v2070, %v2020
      %v2072 = vadd.f32 %v2071, %v2022
      %v2073 = vadd.f32 %v2072, %v2024
      %v2074 = vadd.f32 %v2073, %v2026
      %v2075 = vmul.f32 %v2050, %v1375
      %v2076 = vmul.f32 %v2074, %v1376
      %v2077 = vpack.c.bf16 %v1725, %v1550
      %v2078 = vpack.c.bf16 %v1726, %v1551
      %v2079 = vpack.c.bf16 %v2075, %v1900
      %v2080 = vpack.c.bf16 %v2076, %v1901
      %v2081 = vld [vmem:[%s3] sm:$0xf]
      %v2082 = vld [vmem:[%s3 + $0x4] sm:$0xf]
      %v2083 = vld [vmem:[%s3 + $0x8] sm:$0xf]
      %v2084 = vld [vmem:[%s3 + $0xc] sm:$0xf]
      %v2089 = vunpack.c.l.b16 %v2081
      %v2090 = vunpack.c.l.b16 %v2082
      %v2091 = vunpack.c.l.b16 %v2083
      %v2092 = vunpack.c.l.b16 %v2084
      %v2093 = vpack.c.b16 %v2090, %v2089
      %v2094 = vpack.c.b16 %v2092, %v2091
      %v2096 = vsel %vm419, %v2093, 0
      %v2099 = vsel %vm419, %v2094, 0
      %2101 = vmatprep.subr.bf16.mxu0 %v2078
      %2102 = vmatpush1.bf16.msra.mxu0 %v2077
      %2103 = vmatprep.subr.bf16.mxu0 %v2080
      %2104 = vmatpush1.bf16.msra.mxu0 %v2079
      %2105 = vmatprep.subr.bf16.mxu0 0
      %2106 = vmatpush1.bf16.msra.mxu0 0
      %2107 = vmatprep.subr.bf16.mxu0 0
      %2108 = vmatpush1.bf16.msra.mxu0 0
      %2109 = vmatprep.subr.bf16.mxu0 0
      %2110 = vmatpush1.bf16.msra.mxu0 0
      %2111 = vmatprep.subr.bf16.mxu0 0
      %2112 = vmatpush1.bf16.msra.mxu0 0
      %2113 = vmatprep.subr.bf16.mxu0 0
      %2114 = vmatpush1.bf16.msra.mxu0 0
      %2115 = vmatprep.subr.bf16.mxu0 0
      %2116 = vmatpush1.bf16.msra.mxu0 0
      %2117 = vmatprep.subr.bf16.mxu0 0
      %2118 = vmatpush1.bf16.msra.mxu0 0
      %2119 = vmatprep.subr.bf16.mxu0 0
      %2120 = vmatpush1.bf16.msra.mxu0 0
      %2121 = vmatprep.subr.bf16.mxu0 0
      %2122 = vmatpush1.bf16.msra.mxu0 0
      %2123 = vmatprep.subr.bf16.mxu0 0
      %2124 = vmatpush1.bf16.msra.mxu0 0
      %2125 = vmatprep.subr.bf16.mxu0 0
      %2126 = vmatpush1.bf16.msra.mxu0 0
      %2127 = vmatprep.subr.bf16.mxu0 0
      %2128 = vmatpush1.bf16.msra.mxu0 0
      %2129 = vmatprep.subr.bf16.mxu0 0
      %2130 = vmatpush1.bf16.msra.mxu0 0
      %2131 = vmatprep.subr.bf16.mxu0 0
      %2132 = vmatpush1.bf16.msra.mxu0 0
      %2133 = vmatprep.mubr.bf16.mxu0 0
      %2134 = vmatmul.mubr.bf16.gmra.mrb[0].mxu0 %v2096
      %v2135 = vpop.f32.mrb[0].mxu0
      %v2136 = vadd.f32 0.0, %v2135
      %v2137 = vpop.f32.mrb[0].mxu0
      %v2138 = vadd.f32 0.0, %v2137
      %v2139 = vpop.f32.mrb[0].mxu0
      %v2140 = vadd.f32 0.0, %v2139
      %v2141 = vpop.f32.mrb[0].mxu0
      %v2142 = vadd.f32 0.0, %v2141
      %2143 = vmatprep.mubr.bf16.mxu0 0
      %2144 = vmatmul.mubr.bf16.gmra.mrb[0].mxu0 %v2099
      %v2145 = vpop.f32.mrb[0].mxu0
      %v2146 = vadd.f32 0.0, %v2145
      %v2147 = vpop.f32.mrb[0].mxu0
      %v2148 = vadd.f32 0.0, %v2147
      %v2149 = vpop.f32.mrb[0].mxu0
      %v2150 = vadd.f32 0.0, %v2149
      %v2151 = vpop.f32.mrb[0].mxu0
      %v2152 = vadd.f32 0.0, %v2151
      %2153 = vdwg.mxu0
      %v2154 = vld [vmem:[%s4] sm:$0xf]
      %v2155 = vld [vmem:[%s4 + $0x4] sm:$0xf]
      %v2156 = vld [vmem:[%s4 + $0x8] sm:$0xf]
      %v2157 = vld [vmem:[%s4 + $0xc] sm:$0xf]
      %v2158 = vld [vmem:[%s4 + $0x10] sm:$0xf]
      %v2159 = vld [vmem:[%s4 + $0x14] sm:$0xf]
      %v2160 = vld [vmem:[%s4 + $0x18] sm:$0xf]
      %v2161 = vld [vmem:[%s4 + $0x1c] sm:$0xf]
      %v2162 = vpack.c.bf16 %v2140, %v2136
      %v2163 = vpack.c.bf16 %v2142, %v2138
      %v2164 = vpack.c.bf16 %v2150, %v2146
      %v2165 = vpack.c.bf16 %v2152, %v2148
      %v2166 = vld [vmem:[%s5] sm:$0xff]
      %v2167 = vld [vmem:[%s5 + $0x8] sm:$0xff]
      %v2168 = vld [vmem:[%s5 + $0x10] sm:$0xff]
      %v2169 = vld [vmem:[%s5 + $0x18] sm:$0xff]
      %v2170 = vld [vmem:[%s5 + $0x20] sm:$0xff]
      %v2171 = vld [vmem:[%s5 + $0x28] sm:$0xff]
      %v2172 = vld [vmem:[%s5 + $0x30] sm:$0xff]
      %v2173 = vld [vmem:[%s5 + $0x38] sm:$0xff]
      %2175 = vset.pattern.permute.xlu0 0
      %2176 = vperm.xlu0 %2175, %v2166
      %v2177 = vpop.permute.xlu0 %2176
      %2180 = vset.pattern.permute.xlu0 0
      %2181 = vperm.xlu0 %2180, %v2167
      %v2182 = vpop.permute.xlu0 %2181
      %2185 = vset.pattern.permute.xlu0 0
      %2186 = vperm.xlu0 %2185, %v2168
      %v2187 = vpop.permute.xlu0 %2186
      %2190 = vset.pattern.permute.xlu0 0
      %2191 = vperm.xlu0 %2190, %v2169
      %v2192 = vpop.permute.xlu0 %2191
      %2195 = vset.pattern.permute.xlu0 0
      %2196 = vperm.xlu0 %2195, %v2170
      %v2197 = vpop.permute.xlu0 %2196
      %2200 = vset.pattern.permute.xlu0 0
      %2201 = vperm.xlu0 %2200, %v2171
      %v2202 = vpop.permute.xlu0 %2201
      %2205 = vset.pattern.permute.xlu0 0
      %2206 = vperm.xlu0 %2205, %v2172
      %v2207 = vpop.permute.xlu0 %2206
      %2210 = vset.pattern.permute.xlu0 0
      %2211 = vperm.xlu0 %2210, %v2173
      %v2212 = vpop.permute.xlu0 %2211
      %v2222 = vunpack.c.l.b16 %v2154
      %v2223 = vunpack.c.l.b16 %v2155
      %v2224 = vunpack.c.l.b16 %v2156
      %v2225 = vunpack.c.l.b16 %v2157
      %v2226 = vunpack.c.l.b16 %v2158
      %v2227 = vunpack.c.l.b16 %v2159
      %v2228 = vunpack.c.l.b16 %v2160
      %v2229 = vunpack.c.l.b16 %v2161
      %v2230 = vpack.c.b16 %v2223, %v2222
      %v2231 = vpack.c.b16 %v2225, %v2224
      %v2232 = vpack.c.b16 %v2227, %v2226
      %v2233 = vpack.c.b16 %v2229, %v2228
      %v2235 = vsel %vm419, %v2230, 0
      %v2238 = vsel %vm419, %v2231, 0
      %v2241 = vsel %vm419, %v2232, 0
      %v2244 = vsel %vm419, %v2233, 0
      %2246 = vmatprep.subr.bf16.mxu0 %v2163
      %2247 = vmatpush1.bf16.msra.mxu0 %v2162
      %2248 = vmatprep.subr.bf16.mxu0 %v2165
      %2249 = vmatpush1.bf16.msra.mxu0 %v2164
      %2250 = vmatprep.subr.bf16.mxu0 0
      %2251 = vmatpush1.bf16.msra.mxu0 0
      %2252 = vmatprep.subr.bf16.mxu0 0
      %2253 = vmatpush1.bf16.msra.mxu0 0
      %2254 = vmatprep.subr.bf16.mxu0 0
      %2255 = vmatpush1.bf16.msra.mxu0 0
      %2256 = vmatprep.subr.bf16.mxu0 0
      %2257 = vmatpush1.bf16.msra.mxu0 0
      %2258 = vmatprep.subr.bf16.mxu0 0
      %2259 = vmatpush1.bf16.msra.mxu0 0
      %2260 = vmatprep.subr.bf16.mxu0 0
      %2261 = vmatpush1.bf16.msra.mxu0 0
      %2262 = vmatprep.subr.bf16.mxu0 0
      %2263 = vmatpush1.bf16.msra.mxu0 0
      %2264 = vmatprep.subr.bf16.mxu0 0
      %2265 = vmatpush1.bf16.msra.mxu0 0
      %2266 = vmatprep.subr.bf16.mxu0 0
      %2267 = vmatpush1.bf16.msra.mxu0 0
      %2268 = vmatprep.subr.bf16.mxu0 0
      %2269 = vmatpush1.bf16.msra.mxu0 0
      %2270 = vmatprep.subr.bf16.mxu0 0
      %2271 = vmatpush1.bf16.msra.mxu0 0
      %2272 = vmatprep.subr.bf16.mxu0 0
      %2273 = vmatpush1.bf16.msra.mxu0 0
      %2274 = vmatprep.subr.bf16.mxu0 0
      %2275 = vmatpush1.bf16.msra.mxu0 0
      %2276 = vmatprep.subr.bf16.mxu0 0
      %2277 = vmatpush1.bf16.msra.mxu0 0
      %2278 = vmatprep.mubr.bf16.mxu0 0
      %2279 = vmatmul.mubr.bf16.gmra.mrb[0].mxu0 %v2235
      %v2280 = vpop.f32.mrb[0].mxu0
      %v2281 = vadd.f32 %v2177, %v2280
      %v2282 = vpop.f32.mrb[0].mxu0
      %v2283 = vadd.f32 %v2177, %v2282
      %v2284 = vpop.f32.mrb[0].mxu0
      %v2285 = vadd.f32 %v2182, %v2284
      %v2286 = vpop.f32.mrb[0].mxu0
      %v2287 = vadd.f32 %v2182, %v2286
      %2288 = vmatprep.mubr.bf16.mxu0 0
      %2289 = vmatmul.mubr.bf16.gmra.mrb[0].mxu0 %v2238
      %v2290 = vpop.f32.mrb[0].mxu0
      %v2291 = vadd.f32 %v2187, %v2290
      %v2292 = vpop.f32.mrb[0].mxu0
      %v2293 = vadd.f32 %v2187, %v2292
      %v2294 = vpop.f32.mrb[0].mxu0
      %v2295 = vadd.f32 %v2192, %v2294
      %v2296 = vpop.f32.mrb[0].mxu0
      %v2297 = vadd.f32 %v2192, %v2296
      %2298 = vmatprep.mubr.bf16.mxu0 0
      %2299 = vmatmul.mubr.bf16.gmra.mrb[0].mxu0 %v2241
      %v2300 = vpop.f32.mrb[0].mxu0
      %v2301 = vadd.f32 %v2197, %v2300
      %v2302 = vpop.f32.mrb[0].mxu0
      %v2303 = vadd.f32 %v2197, %v2302
      %v2304 = vpop.f32.mrb[0].mxu0
      %v2305 = vadd.f32 %v2202, %v2304
      %v2306 = vpop.f32.mrb[0].mxu0
      %v2307 = vadd.f32 %v2202, %v2306
      %2308 = vmatprep.mubr.bf16.mxu0 0
      %2309 = vmatmul.mubr.bf16.gmra.mrb[0].mxu0 %v2244
      %v2310 = vpop.f32.mrb[0].mxu0
      %v2311 = vadd.f32 %v2207, %v2310
      %v2312 = vpop.f32.mrb[0].mxu0
      %v2313 = vadd.f32 %v2207, %v2312
      %v2314 = vpop.f32.mrb[0].mxu0
      %v2315 = vadd.f32 %v2212, %v2314
      %v2316 = vpop.f32.mrb[0].mxu0
      %v2317 = vadd.f32 %v2212, %v2316
      %2318 = vdwg.mxu0
      %vm2319 = vcmp.gt.f32.partialorder %v2281, 0.0
      %vm2320 = vcmp.gt.f32.partialorder %v2283, 0.0
      %vm2321 = vcmp.gt.f32.partialorder %v2285, 0.0
      %vm2322 = vcmp.gt.f32.partialorder %v2287, 0.0
      %vm2323 = vcmp.gt.f32.partialorder %v2291, 0.0
      %vm2324 = vcmp.gt.f32.partialorder %v2293, 0.0
      %vm2325 = vcmp.gt.f32.partialorder %v2295, 0.0
      %vm2326 = vcmp.gt.f32.partialorder %v2297, 0.0
      %vm2327 = vcmp.gt.f32.partialorder %v2301, 0.0
      %vm2328 = vcmp.gt.f32.partialorder %v2303, 0.0
      %vm2329 = vcmp.gt.f32.partialorder %v2305, 0.0
      %vm2330 = vcmp.gt.f32.partialorder %v2307, 0.0
      %vm2331 = vcmp.gt.f32.partialorder %v2311, 0.0
      %vm2332 = vcmp.gt.f32.partialorder %v2313, 0.0
      %vm2333 = vcmp.gt.f32.partialorder %v2315, 0.0
      %vm2334 = vcmp.gt.f32.partialorder %v2317, 0.0
      %v2335 = vmul.f32 %v2281, 0.2
      %v2336 = vmul.f32 %v2283, 0.2
      %v2337 = vmul.f32 %v2285, 0.2
      %v2338 = vmul.f32 %v2287, 0.2
      %v2339 = vmul.f32 %v2291, 0.2
      %v2340 = vmul.f32 %v2293, 0.2
      %v2341 = vmul.f32 %v2295, 0.2
      %v2342 = vmul.f32 %v2297, 0.2
      %v2343 = vmul.f32 %v2301, 0.2
      %v2344 = vmul.f32 %v2303, 0.2
      %v2345 = vmul.f32 %v2305, 0.2
      %v2346 = vmul.f32 %v2307, 0.2
      %v2347 = vmul.f32 %v2311, 0.2
      %v2348 = vmul.f32 %v2313, 0.2
      %v2349 = vmul.f32 %v2315, 0.2
      %v2350 = vmul.f32 %v2317, 0.2
      %v2351 = vsel %vm2319, %v2281, %v2335
      %v2352 = vsel %vm2320, %v2283, %v2336
      %v2353 = vsel %vm2321, %v2285, %v2337
      %v2354 = vsel %vm2322, %v2287, %v2338
      %v2355 = vsel %vm2323, %v2291, %v2339
      %v2356 = vsel %vm2324, %v2293, %v2340
      %v2357 = vsel %vm2325, %v2295, %v2341
      %v2358 = vsel %vm2326, %v2297, %v2342
      %v2359 = vsel %vm2327, %v2301, %v2343
      %v2360 = vsel %vm2328, %v2303, %v2344
      %v2361 = vsel %vm2329, %v2305, %v2345
      %v2362 = vsel %vm2330, %v2307, %v2346
      %v2363 = vsel %vm2331, %v2311, %v2347
      %v2364 = vsel %vm2332, %v2313, %v2348
      %v2365 = vsel %vm2333, %v2315, %v2349
      %v2366 = vsel %vm2334, %v2317, %v2350
      %v2367 = vld [vmem:[%s6] sm:$0xf]
      %v2368 = vld [vmem:[%s6 + $0x4] sm:$0xf]
      %v2369 = vld [vmem:[%s6 + $0x8] sm:$0xf]
      %v2370 = vld [vmem:[%s6 + $0xc] sm:$0xf]
      %v2371 = vpack.c.bf16 %v2353, %v2351
      %v2372 = vpack.c.bf16 %v2354, %v2352
      %v2373 = vpack.c.bf16 %v2357, %v2355
      %v2374 = vpack.c.bf16 %v2358, %v2356
      %v2375 = vpack.c.bf16 %v2361, %v2359
      %v2376 = vpack.c.bf16 %v2362, %v2360
      %v2377 = vpack.c.bf16 %v2365, %v2363
      %v2378 = vpack.c.bf16 %v2366, %v2364
      %v2383 = vunpack.c.l.b16 %v2367
      %v2384 = vunpack.c.l.b16 %v2368
      %v2385 = vunpack.c.l.b16 %v2369
      %v2386 = vunpack.c.l.b16 %v2370
      %v2387 = vpack.c.b16 %v2384, %v2383
      %v2388 = vpack.c.b16 %v2386, %v2385
      %vm2389 = vcmask 523264
      %v2391 = vsel %vm2389, %v2387, 0
      %v2394 = vsel %vm2389, %v2388, 0
      %2396 = vmatprep.subr.bf16.mxu0 %v2372
      %2397 = vmatpush1.bf16.msra.mxu0 %v2371
      %2398 = vmatprep.subr.bf16.mxu0 %v2374
      %2399 = vmatpush1.bf16.msra.mxu0 %v2373
      %2400 = vmatprep.subr.bf16.mxu0 %v2376
      %2401 = vmatpush1.bf16.msra.mxu0 %v2375
      %2402 = vmatprep.subr.bf16.mxu0 %v2378
      %2403 = vmatpush1.bf16.msra.mxu0 %v2377
      %2404 = vmatprep.subr.bf16.mxu0 0
      %2405 = vmatpush1.bf16.msra.mxu0 0
      %2406 = vmatprep.subr.bf16.mxu0 0
      %2407 = vmatpush1.bf16.msra.mxu0 0
      %2408 = vmatprep.subr.bf16.mxu0 0
      %2409 = vmatpush1.bf16.msra.mxu0 0
      %2410 = vmatprep.subr.bf16.mxu0 0
      %2411 = vmatpush1.bf16.msra.mxu0 0
      %2412 = vmatprep.subr.bf16.mxu0 0
      %2413 = vmatpush1.bf16.msra.mxu0 0
      %2414 = vmatprep.subr.bf16.mxu0 0
      %2415 = vmatpush1.bf16.msra.mxu0 0
      %2416 = vmatprep.subr.bf16.mxu0 0
      %2417 = vmatpush1.bf16.msra.mxu0 0
      %2418 = vmatprep.subr.bf16.mxu0 0
      %2419 = vmatpush1.bf16.msra.mxu0 0
      %2420 = vmatprep.subr.bf16.mxu0 0
      %2421 = vmatpush1.bf16.msra.mxu0 0
      %2422 = vmatprep.subr.bf16.mxu0 0
      %2423 = vmatpush1.bf16.msra.mxu0 0
      %2424 = vmatprep.subr.bf16.mxu0 0
      %2425 = vmatpush1.bf16.msra.mxu0 0
      %2426 = vmatprep.subr.bf16.mxu0 0
      %2427 = vmatpush1.bf16.msra.mxu0 0
      %2428 = vmatprep.mubr.bf16.mxu0 0
      %2429 = vmatmul.mubr.bf16.gmra.mrb[0].mxu0 %v2391
      %v2430 = vpop.f32.mrb[0].mxu0
      %v2431 = vadd.f32 0.0, %v2430
      %v2432 = vpop.f32.mrb[0].mxu0
      %v2433 = vadd.f32 0.0, %v2432
      %v2434 = vpop.f32.mrb[0].mxu0
      %v2435 = vadd.f32 0.0, %v2434
      %v2436 = vpop.f32.mrb[0].mxu0
      %v2437 = vadd.f32 0.0, %v2436
      %2438 = vmatprep.mubr.bf16.mxu0 0
      %2439 = vmatmul.mubr.bf16.gmra.mrb[0].mxu0 %v2394
      %v2440 = vpop.f32.mrb[0].mxu0
      %v2441 = vadd.f32 0.0, %v2440
      %v2442 = vpop.f32.mrb[0].mxu0
      %v2443 = vadd.f32 0.0, %v2442
      %v2444 = vpop.f32.mrb[0].mxu0
      %v2445 = vadd.f32 0.0, %v2444
      %v2446 = vpop.f32.mrb[0].mxu0
      %v2447 = vadd.f32 0.0, %v2446
      %2448 = vdwg.mxu0
      %v2449 = vadd.f32 %v2136, %v2431
      %v2450 = vadd.f32 %v2138, %v2433
      %v2451 = vadd.f32 %v2140, %v2435
      %v2452 = vadd.f32 %v2142, %v2437
      %v2453 = vadd.f32 %v2146, %v2441
      %v2454 = vadd.f32 %v2148, %v2443
      %v2455 = vadd.f32 %v2150, %v2445
      %v2456 = vadd.f32 %v2152, %v2447
      %v2457 = vld [vmem:[%s7] sm:$0xff]
      %v2458 = vld [vmem:[%s7 + $0x8] sm:$0xff]
      %v2459 = vld [vmem:[%s7 + $0x10] sm:$0xff]
      %v2460 = vld [vmem:[%s7 + $0x18] sm:$0xff]
      %2462 = vset.pattern.permute.xlu0 0
      %2463 = vperm.xlu0 %2462, %v2457
      %v2464 = vpop.permute.xlu0 %2463
      %2467 = vset.pattern.permute.xlu0 0
      %2468 = vperm.xlu0 %2467, %v2458
      %v2469 = vpop.permute.xlu0 %2468
      %2472 = vset.pattern.permute.xlu0 0
      %2473 = vperm.xlu0 %2472, %v2459
      %v2474 = vpop.permute.xlu0 %2473
      %2477 = vset.pattern.permute.xlu0 0
      %2478 = vperm.xlu0 %2477, %v2460
      %v2479 = vpop.permute.xlu0 %2478
      %v2481 = vadd.f32 %v2449, %v2464
      %v2482 = vadd.f32 %v2450, %v2464
      %v2483 = vadd.f32 %v2451, %v2469
      %v2484 = vadd.f32 %v2452, %v2469
      %v2485 = vadd.f32 %v2453, %v2474
      %v2486 = vadd.f32 %v2454, %v2474
      %v2487 = vadd.f32 %v2455, %v2479
      %v2488 = vadd.f32 %v2456, %v2479
      %v2489 = vadd.f32 %v2481, %v2482
      %v2490 = vadd.f32 %v2489, %v2483
      %v2491 = vadd.f32 %v2490, %v2484
      %v2492 = vadd.f32 %v2491, %v2485
      %v2493 = vadd.f32 %v2492, %v2486
      %v2494 = vadd.f32 %v2493, %v2487
      %v2495 = vadd.f32 %v2494, %v2488
      %2496 = vadd.xlane.f32.xlu0 %v2495
      %v2497 = vpop.xlane.xlu0 %2496
      %v2498 = vrot.slane %v2497, 4
      %v2499 = vadd.f32 %v2497, %v2498
      %v2500 = vrot.slane %v2499, 2
      %v2501 = vadd.f32 %v2499, %v2500
      %v2502 = vrot.slane %v2501, 1
      %v2503 = vadd.f32 %v2501, %v2502
      %s2504 = vtos %v2503
      %v2505 = vrcp.pop 8192.0
      %s2506 = vtos %v2505
      %s2507 = smul.f32 %s2504, %s2506
      %v2508 = vmul.f32 %v2481, %v2481
      %v2509 = vmul.f32 %v2482, %v2482
      %v2510 = vmul.f32 %v2483, %v2483
      %v2511 = vmul.f32 %v2484, %v2484
      %v2512 = vmul.f32 %v2485, %v2485
      %v2513 = vmul.f32 %v2486, %v2486
      %v2514 = vmul.f32 %v2487, %v2487
      %v2515 = vmul.f32 %v2488, %v2488
      %v2516 = vadd.f32 %v2508, %v2509
      %v2517 = vadd.f32 %v2516, %v2510
      %v2518 = vadd.f32 %v2517, %v2511
      %v2519 = vadd.f32 %v2518, %v2512
      %v2520 = vadd.f32 %v2519, %v2513
      %v2521 = vadd.f32 %v2520, %v2514
      %v2522 = vadd.f32 %v2521, %v2515
      %2523 = vadd.xlane.f32.xlu0 %v2522
      %v2524 = vpop.xlane.xlu0 %2523
      %v2525 = vrot.slane %v2524, 4
      %v2526 = vadd.f32 %v2524, %v2525
      %v2527 = vrot.slane %v2526, 2
      %v2528 = vadd.f32 %v2526, %v2527
      %v2529 = vrot.slane %v2528, 1
      %v2530 = vadd.f32 %v2528, %v2529
      %s2531 = vtos %v2530
      %v2532 = vrcp.pop 8192.0
      %s2533 = vtos %v2532
      %s2534 = smul.f32 %s2531, %s2533
      %s2535 = smul.f32 %s2507, %s2507
      %s2536 = ssub.f32 %s2534, %s2535
      %s2537 = sadd.f32 %s2536, 1e-05
      %v2538 = vstv %s2537
      %v2539 = vrsqrt.pop %v2538
      %s2540 = vtos %v2539
      %v2541 = vstv %s2507
      %v2542 = vsub.f32 %v2481, %v2541
      %v2543 = vsub.f32 %v2482, %v2541
      %v2544 = vsub.f32 %v2483, %v2541
      %v2545 = vsub.f32 %v2484, %v2541
      %v2546 = vsub.f32 %v2485, %v2541
      %v2547 = vsub.f32 %v2486, %v2541
      %v2548 = vsub.f32 %v2487, %v2541
      %v2549 = vsub.f32 %v2488, %v2541
      %v2550 = vstv %s2540
      %v2551 = vmul.f32 %v2542, %v2550
      %v2552 = vmul.f32 %v2543, %v2550
      %v2553 = vmul.f32 %v2544, %v2550
      %v2554 = vmul.f32 %v2545, %v2550
      %v2555 = vmul.f32 %v2546, %v2550
      %v2556 = vmul.f32 %v2547, %v2550
      %v2557 = vmul.f32 %v2548, %v2550
      %v2558 = vmul.f32 %v2549, %v2550
      %v2559 = vld [vmem:[%s8] sm:$0xff]
      %v2560 = vld [vmem:[%s8 + $0x8] sm:$0xff]
      %v2561 = vld [vmem:[%s8 + $0x10] sm:$0xff]
      %v2562 = vld [vmem:[%s8 + $0x18] sm:$0xff]
      %2564 = vset.pattern.permute.xlu0 0
      %2565 = vperm.xlu0 %2564, %v2559
      %v2566 = vpop.permute.xlu0 %2565
      %2569 = vset.pattern.permute.xlu0 0
      %2570 = vperm.xlu0 %2569, %v2560
      %v2571 = vpop.permute.xlu0 %2570
      %2574 = vset.pattern.permute.xlu0 0
      %2575 = vperm.xlu0 %2574, %v2561
      %v2576 = vpop.permute.xlu0 %2575
      %2579 = vset.pattern.permute.xlu0 0
      %2580 = vperm.xlu0 %2579, %v2562
      %v2581 = vpop.permute.xlu0 %2580
      %v2583 = vmul.f32 %v2551, %v2566
      %v2584 = vmul.f32 %v2552, %v2566
      %v2585 = vmul.f32 %v2553, %v2571
      %v2586 = vmul.f32 %v2554, %v2571
      %v2587 = vmul.f32 %v2555, %v2576
      %v2588 = vmul.f32 %v2556, %v2576
      %v2589 = vmul.f32 %v2557, %v2581
      %v2590 = vmul.f32 %v2558, %v2581
      %v2591 = vld [vmem:[%s9] sm:$0xff]
      %v2592 = vld [vmem:[%s9 + $0x8] sm:$0xff]
      %v2593 = vld [vmem:[%s9 + $0x10] sm:$0xff]
      %v2594 = vld [vmem:[%s9 + $0x18] sm:$0xff]
      %2596 = vset.pattern.permute.xlu0 0
      %2597 = vperm.xlu0 %2596, %v2591
      %v2598 = vpop.permute.xlu0 %2597
      %2601 = vset.pattern.permute.xlu0 0
      %2602 = vperm.xlu0 %2601, %v2592
      %v2603 = vpop.permute.xlu0 %2602
      %2606 = vset.pattern.permute.xlu0 0
      %2607 = vperm.xlu0 %2606, %v2593
      %v2608 = vpop.permute.xlu0 %2607
      %2611 = vset.pattern.permute.xlu0 0
      %2612 = vperm.xlu0 %2611, %v2594
      %v2613 = vpop.permute.xlu0 %2612
      %v2615 = vadd.f32 %v2583, %v2598
      %v2616 = vadd.f32 %v2584, %v2598
      %v2617 = vadd.f32 %v2585, %v2603
      %v2618 = vadd.f32 %v2586, %v2603
      %v2619 = vadd.f32 %v2587, %v2608
      %v2620 = vadd.f32 %v2588, %v2608
      %v2621 = vadd.f32 %v2589, %v2613
      %v2622 = vadd.f32 %v2590, %v2613
      %2623 = vst [vmem:[%s379] sm:$0xff] %v2615
      %2624 = vst [vmem:[%s379 + $0x8] sm:$0xff] %v2616
      %2625 = vst [vmem:[%s379 + $0x10] sm:$0xff] %v2617
      %2626 = vst [vmem:[%s379 + $0x18] sm:$0xff] %v2618
      %2627 = vst [vmem:[%s379 + $0x20] sm:$0xff] %v2619
      %2628 = vst [vmem:[%s379 + $0x28] sm:$0xff] %v2620
      %2629 = vst [vmem:[%s379 + $0x30] sm:$0xff] %v2621
      %2630 = vst [vmem:[%s379 + $0x38] sm:$0xff] %v2622
      %p2631 = scmp.lt.s32.totalorder %s21, 1
      %s2632 = scalar_select %p2631, %s21, 1
      %s2633 = smul.addr %s2632, 8
      %s2634 = smul.addr %s2633, 8
      %s2635 = scalar_lea.vmem %s10, %s2634
      // Predicated region
      $region61: #{transformer_forward.3} parent=59 // pred_check
        %p2636 = pneg %p259
      $region62: #{transformer_forward.3} parent=59 // pred_check_branch
        %2638 = sbr.rel (%p2636) target = $region64
      $region63: #{transformer_forward.3} parent=59 // pred_region
        _
      $region64: #{transformer_forward.3} parent=59 // pred_fallthru
        _
    $region60: #{transformer_forward.3} parent=5 // pred_fallthru
      _
    %p2639 = scmp.le.s32.totalorder 2, %s16
    // Predicated region
    $region65: #{transformer_forward.3} parent=5 // pred_check
      %p2640 = pneg %p2639
    $region66: #{transformer_forward.3} parent=5 // pred_check_branch
      %2642 = sbr.rel (%p2640) target = $region68
    $region67: #{transformer_forward.3} parent=5 // pred_region
      %s2643 = ssub.s32 %s16, 2
      // Predicated region
      $region69: #{transformer_forward.3} parent=67 // pred_check
        %p2644 = pneg %p265
      $region70: #{transformer_forward.3} parent=67 // pred_check_branch
        %2646 = sbr.rel (%p2644) target = $region72
      $region71: #{transformer_forward.3} parent=67 // pred_region
        %p2647 = scmp.lt.s32.totalorder %s22, 1
        %s2648 = scalar_select %p2647, %s22, 1
        %s2649 = smul.addr %s2648, 8
        %s2650 = smul.addr %s2649, 8
        %s2651 = scalar_lea.vmem %s10, %s2650
      $region72: #{transformer_forward.3} parent=67 // pred_fallthru
        _
    $region68: #{transformer_forward.3} parent=5 // pred_fallthru
      _
  $region6: #{transformer_forward.3} parent=0 // loop_footer
    %s20 = sadd.s32 1, %s16
  $region7: #{transformer_forward.3} parent=0 // loop_footer_branch
    %15 = sbr.rel target = $region3
  $region8: #{transformer_forward.3} parent=0 // loop_exit
    _

</llo_original>
